<compile_context>
chip_gen: v7x
topology: tpu7x:2x2x1
jax: 0.10.0
libtpu: 0.0.40
codegen_flags: <defaults>
</compile_context>

<pallas_src>
import functools

import jax
import jax.numpy as jnp
import numpy as np
from jax.experimental import pallas as pl
from jax.experimental.pallas import tpu as pltpu


def _scatter_matrix(scale, D):
    """One-hot lane-scatter matrix R of shape (s*s*D, s*D*s).

    R[(sw*s + sd)*D + d, sw*D*s + d*s + sd] = 1; exactly one nonzero per
    column (this is what makes the matmul an exact permutation)."""
    s = scale
    K = s * s * D
    k = np.arange(K)
    sw = k // (s * D)
    sd = (k // D) % s
    d = k % D
    col = sw * (D * s) + d * s + sd
    R = np.zeros((K, s * D * s), dtype=np.float32)
    R[k, col] = 1.0
    return R


def _pixel_shuffle3d_kernel(x_ref, r_ref, o_ref, *, scale, c_block, block_h,
                            W, D, split_f32):
    """x_ref: (1, c_block*s**3, block_h*W, D)   input rows ((h, w) flattened)
    r_ref: (s*s*D, s*D*s) bf16                  one-hot scatter matrix
    o_ref: (1, c_block, block_h*s*W, s*D*s)     dense output row slab; column
                                                sw*D*s + d*s + sd <-> (w*s+sw, d*s+sd)
    """
    s = scale
    sDs = s * D * s
    R = r_ref[...]                                     # (s*s*D, sDs) bf16

    for co in range(c_block):                          # out channels this step
        row_groups = []
        for sh in range(s):                            # output sub-row
            # Lane-concatenate the s**2 (sw, sd) sub-channels of this (co, sh):
            #   LHS[:, (sw*s+sd)*D + d] = x[..., sw, sd, :, d]
            base = co * s ** 3 + sh * s * s
            parts = [x_ref[0, base + k2] for k2 in range(s * s)]
            lhs = jnp.concatenate(parts, axis=-1)      # (block_h*W, s*s*D)

            if split_f32:
                # Exact f32 permutation with three single-pass bf16 matmuls:
                # lhs == hi + mid + lo exactly (each term bf16-representable),
                # each output column of R has exactly one nonzero, and all
                # accumulation happens in f32, so the sum reconstructs lhs.
                hi = lhs.astype(jnp.bfloat16)
                r1 = lhs - hi.astype(jnp.float32)
                mid = r1.astype(jnp.bfloat16)
                lo = (r1 - mid.astype(jnp.float32)).astype(jnp.bfloat16)
                out = (jnp.dot(hi, R, preferred_element_type=jnp.float32)
                       + jnp.dot(mid, R, preferred_element_type=jnp.float32)
                       + jnp.dot(lo, R, preferred_element_type=jnp.float32))
            else:
                # bf16 input: single DEFAULT-precision pass; one nonzero
                # product per column + f32 accumulate -> exact.
                out = jnp.dot(lhs, R, preferred_element_type=jnp.float32)

            row_groups.append(out.reshape(block_h, 1, W, sDs))

        # Interleave the s sub-rows (output row (th*s + sh) <- row_groups[sh][th])
        # and store the whole (block_h*s*W, sDs) slab with one dense store.
        slab = jnp.concatenate(row_groups, axis=1)     # (block_h, s, W, sDs)
        slab = slab.reshape(block_h * s * W, sDs)
        o_ref[0, co] = slab.astype(o_ref.dtype)


def _vmem_limit_bytes():
    """Generation-aware VMEM budget (v7x has only 64 MiB per TensorCore)."""
    try:
        cap = pltpu.get_tpu_info().vmem_capacity_bytes
    except Exception:
        cap = 64 * 1024 * 1024
    return int(min(cap // 2, 48 * 1024 * 1024))


def pixel_shuffle3d_ref(x, scale):
    """Pure-JAX reference matching the PyTorch module exactly."""
    B, C, H, W, D = x.shape
    s = scale
    n = C // s ** 3
    v = x.reshape(B, n, s, s, s, H, W, D)
    p = jnp.transpose(v, (0, 1, 5, 2, 6, 3, 7, 4))
    return p.reshape(B, n, H * s, W * s, D * s)


def pixel_shuffle3d(x, scale, *, block_h=None, c_block=None):
    """Pallas implementation of PixelShuffle3d.forward."""
    B, C, H, W, D = x.shape
    s = int(scale)
    assert C % (s ** 3) == 0, "channels must be divisible by scale**3"
    n_out = C // s ** 3

    if s == 1:
        return x.reshape(B, n_out, H, W, D)

    if x.dtype == jnp.float32:
        split_f32 = True
    elif x.dtype == jnp.bfloat16:
        split_f32 = False
    else:
        # TODO(synk): int / fp8 / f16 dtypes use the XLA path (exactness of the
        # one-hot matmul scatter only guaranteed for f32 / bf16).
        return pixel_shuffle3d_ref(x, s)

    itemsize = x.dtype.itemsize
    sDs = s * D * s

    vmem_limit = _vmem_limit_bytes()
    # Per-direction single-buffer block budget: big enough (O(MiB)) to amortize
    # the ~0.35us per-step overhead, small enough that double-buffered in+out
    # blocks plus kernel temporaries fit comfortably on every generation.
    block_budget = min(2 * 1024 * 1024, vmem_limit // 8)

    row_bytes = (s ** 3) * W * D * itemsize        # one H row of one out-chan

    if block_h is None:
        block_h = H                                # prefer one contiguous DMA
        for cand in range(H, 0, -1):
            if H % cand:
                continue
            if cand * row_bytes > block_budget:
                continue
            # (8,128) BlockSpec rule on the flattened (H*W) axis: a partial
            # block must keep the second-minor dim a multiple of 8 sublanes.
            if cand != H and (cand * W) % 8 != 0:
                continue
            block_h = cand
            break
    assert H % block_h == 0
    if block_h != H:
        assert (block_h * W) % 8 == 0, "partial H blocks need block_h*W % 8 == 0"

    if c_block is None:
        c_block = 1
        blk_bytes = block_h * row_bytes
        max_steps = B * n_out * (H // block_h)
        min_steps = 2 if max_steps >= 2 else 1     # keep both v7x TCs busy
        for cand in range(n_out, 0, -1):
            if n_out % cand:
                continue
            if cand * s > 32:                      # cap the in-kernel unroll
                continue
            steps = B * (n_out // cand) * (H // block_h)
            if cand * blk_bytes <= block_budget and steps >= min_steps:
                c_block = cand
                break
    assert n_out % c_block == 0

    grid = (B, n_out // c_block, H // block_h)

    # Lane/sublane-dense views: both reshapes are contiguous (free).
    x_flat = x.reshape(B, C, H * W, D)
    R = jnp.asarray(_scatter_matrix(s, D), dtype=jnp.bfloat16)

    kernel = functools.partial(_pixel_shuffle3d_kernel, scale=s,
                               c_block=c_block, block_h=block_h, W=W, D=D,
                               split_f32=split_f32)

    in_specs = [
        pl.BlockSpec((1, c_block * s ** 3, block_h * W, D),
                     lambda b, c, hb: (b, c, hb, 0)),
        pl.BlockSpec((s * s * D, sDs), lambda b, c, hb: (0, 0)),
    ]
    out_spec = pl.BlockSpec((1, c_block, block_h * s * W, sDs),
                            lambda b, c, hb: (b, c, hb, 0))

    passes = 3 if split_f32 else 1
    flops = 2 * B * n_out * s * passes * (H * W) * (s * s * D) * sDs
    bytes_moved = 2 * x.size * itemsize + int(R.size) * R.dtype.itemsize
    cost = pl.CostEstimate(flops=flops, transcendentals=0,
                           bytes_accessed=bytes_moved)

    out_flat = pl.pallas_call(
        kernel,
        out_shape=jax.ShapeDtypeStruct((B, n_out, H * s * W, sDs), x.dtype),
        grid_spec=pltpu.PrefetchScalarGridSpec(
            num_scalar_prefetch=0,
            grid=grid,
            in_specs=in_specs,
            out_specs=out_spec),
        compiler_params=pltpu.CompilerParams(
            dimension_semantics=("parallel", "parallel", "parallel"),
            vmem_limit_bytes=vmem_limit),
        cost_estimate=cost,
    )(x_flat, R)

    # Contiguous (free) reshape back to the canonical 5D output layout:
    # (..., H*s*W, s*D*s) -> (..., H*s, W*s, D*s).
    return out_flat.reshape(B, n_out, H * s, W * s, D * s)


if __name__ == "__main__":
    scale = 2
    B, n_out, H, W, D = 2, 2, 16, 8, 32
    C = n_out * scale ** 3  # 16

    key = jax.random.PRNGKey(0)
    x = jax.random.normal(key, (B, C, H, W, D), dtype=jnp.float32)

    # f32 path (three-term bf16 split).
    out = jax.block_until_ready(pixel_shuffle3d(x, scale))
    ref = jax.block_until_ready(pixel_shuffle3d_ref(x, scale))
    assert out.shape == (B, n_out, H * scale, W * scale, D * scale)
    assert np.allclose(np.asarray(out), np.asarray(ref), atol=1e-5, rtol=0.0), \
        "PixelShuffle3d kernel mismatch vs reference (f32)"

    # bf16 path (single-pass matmul branch).
    xb = x.astype(jnp.bfloat16)
    outb = jax.block_until_ready(pixel_shuffle3d(xb, scale))
    refb = pixel_shuffle3d_ref(xb, scale)
    assert np.allclose(np.asarray(outb, dtype=np.float32),
                       np.asarray(refb, dtype=np.float32),
                       atol=2e-2, rtol=0.0), \
        "PixelShuffle3d kernel mismatch vs reference (bf16)"

    print("KERNEL_OK")
</pallas_src>

<mosaic_0001>
module attributes {stable_mosaic.version = 11 : i64} {
  func.func @_pixel_shuffle3d_kernel(%arg0: i32, %arg1: i32, %arg2: i32, %arg3: memref<1x16x128x32xf32, #tpu.memory_space<vmem>>, %arg4: memref<128x128xbf16, #tpu.memory_space<vmem>>, %arg5: memref<1x2x256x128xf32, #tpu.memory_space<vmem>>) attributes {dimension_semantics = [#tpu.dimension_semantics<parallel>, #tpu.dimension_semantics<parallel>, #tpu.dimension_semantics<parallel>], iteration_bounds = array<i64: 2, 1, 1>, scalar_prefetch = 0 : i64, scratch_operands = 0 : i64, tpu.core_type = #tpu.core_type<tc>, window_params = [{transform_indices = @transform_0, window_bounds = array<i64: 1, 16, 128, 32>}, {pipeline_mode = #tpu.pipeline_mode<synchronous>, transform_indices = @transform_1, window_bounds = array<i64: 128, 128>}, {transform_indices = @transform_2, window_bounds = array<i64: 1, 2, 256, 128>}]} {
    %c0 = arith.constant 0 : index
    %c0_0 = arith.constant 0 : index
    %0 = vector.load %arg4[%c0, %c0_0] : memref<128x128xbf16, #tpu.memory_space<vmem>>, vector<128x128xbf16>
    %c0_1 = arith.constant 0 : index
    %c0_2 = arith.constant 0 : index
    %c0_3 = arith.constant 0 : index
    %c0_4 = arith.constant 0 : index
    %1 = vector.load %arg3[%c0_1, %c0_2, %c0_3, %c0_4] : memref<1x16x128x32xf32, #tpu.memory_space<vmem>>, vector<1x1x128x32xf32>
    %2 = vector.shape_cast %1 : vector<1x1x128x32xf32> to vector<128x32xf32>
    %c0_5 = arith.constant 0 : index
    %c1 = arith.constant 1 : index
    %c0_6 = arith.constant 0 : index
    %c0_7 = arith.constant 0 : index
    %3 = vector.load %arg3[%c0_5, %c1, %c0_6, %c0_7] : memref<1x16x128x32xf32, #tpu.memory_space<vmem>>, vector<1x1x128x32xf32>
    %4 = vector.shape_cast %3 : vector<1x1x128x32xf32> to vector<128x32xf32>
    %c0_8 = arith.constant 0 : index
    %c2 = arith.constant 2 : index
    %c0_9 = arith.constant 0 : index
    %c0_10 = arith.constant 0 : index
    %5 = vector.load %arg3[%c0_8, %c2, %c0_9, %c0_10] : memref<1x16x128x32xf32, #tpu.memory_space<vmem>>, vector<1x1x128x32xf32>
    %6 = vector.shape_cast %5 : vector<1x1x128x32xf32> to vector<128x32xf32>
    %c0_11 = arith.constant 0 : index
    %c3 = arith.constant 3 : index
    %c0_12 = arith.constant 0 : index
    %c0_13 = arith.constant 0 : index
    %7 = vector.load %arg3[%c0_11, %c3, %c0_12, %c0_13] : memref<1x16x128x32xf32, #tpu.memory_space<vmem>>, vector<1x1x128x32xf32>
    %8 = vector.shape_cast %7 : vector<1x1x128x32xf32> to vector<128x32xf32>
    %9 = tpu.concatenate %2, %4, %6, %8 in 1 : vector<128x32xf32>, vector<128x32xf32>, vector<128x32xf32>, vector<128x32xf32> -> vector<128x128xf32>
    %10 = arith.truncf %9 : vector<128x128xf32> to vector<128x128xbf16>
    %11 = arith.extf %10 : vector<128x128xbf16> to vector<128x128xf32>
    %12 = arith.subf %9, %11 : vector<128x128xf32>
    %13 = arith.truncf %12 : vector<128x128xf32> to vector<128x128xbf16>
    %14 = arith.extf %13 : vector<128x128xbf16> to vector<128x128xf32>
    %15 = arith.subf %12, %14 : vector<128x128xf32>
    %16 = arith.truncf %15 : vector<128x128xf32> to vector<128x128xbf16>
    %cst = arith.constant dense<0.000000e+00> : vector<128x128xf32>
    %17 = tpu.matmul %10, %0, %cst {dimension_numbers = #tpu.dot_dimension_numbers<[1], [0], [0], [1], [0, 0, 1, 1], [], []>} : vector<128x128xbf16>, vector<128x128xbf16>, vector<128x128xf32> -> vector<128x128xf32>
    %cst_14 = arith.constant dense<0.000000e+00> : vector<128x128xf32>
    %18 = tpu.matmul %13, %0, %cst_14 {dimension_numbers = #tpu.dot_dimension_numbers<[1], [0], [0], [1], [0, 0, 1, 1], [], []>} : vector<128x128xbf16>, vector<128x128xbf16>, vector<128x128xf32> -> vector<128x128xf32>
    %19 = arith.addf %17, %18 : vector<128x128xf32>
    %cst_15 = arith.constant dense<0.000000e+00> : vector<128x128xf32>
    %20 = tpu.matmul %16, %0, %cst_15 {dimension_numbers = #tpu.dot_dimension_numbers<[1], [0], [0], [1], [0, 0, 1, 1], [], []>} : vector<128x128xbf16>, vector<128x128xbf16>, vector<128x128xf32> -> vector<128x128xf32>
    %21 = arith.addf %19, %20 : vector<128x128xf32>
    %22 = vector.shape_cast %21 : vector<128x128xf32> to vector<16x1x8x128xf32>
    %c0_16 = arith.constant 0 : index
    %c4 = arith.constant 4 : index
    %c0_17 = arith.constant 0 : index
    %c0_18 = arith.constant 0 : index
    %23 = vector.load %arg3[%c0_16, %c4, %c0_17, %c0_18] : memref<1x16x128x32xf32, #tpu.memory_space<vmem>>, vector<1x1x128x32xf32>
    %24 = vector.shape_cast %23 : vector<1x1x128x32xf32> to vector<128x32xf32>
    %c0_19 = arith.constant 0 : index
    %c5 = arith.constant 5 : index
    %c0_20 = arith.constant 0 : index
    %c0_21 = arith.constant 0 : index
    %25 = vector.load %arg3[%c0_19, %c5, %c0_20, %c0_21] : memref<1x16x128x32xf32, #tpu.memory_space<vmem>>, vector<1x1x128x32xf32>
    %26 = vector.shape_cast %25 : vector<1x1x128x32xf32> to vector<128x32xf32>
    %c0_22 = arith.constant 0 : index
    %c6 = arith.constant 6 : index
    %c0_23 = arith.constant 0 : index
    %c0_24 = arith.constant 0 : index
    %27 = vector.load %arg3[%c0_22, %c6, %c0_23, %c0_24] : memref<1x16x128x32xf32, #tpu.memory_space<vmem>>, vector<1x1x128x32xf32>
    %28 = vector.shape_cast %27 : vector<1x1x128x32xf32> to vector<128x32xf32>
    %c0_25 = arith.constant 0 : index
    %c7 = arith.constant 7 : index
    %c0_26 = arith.constant 0 : index
    %c0_27 = arith.constant 0 : index
    %29 = vector.load %arg3[%c0_25, %c7, %c0_26, %c0_27] : memref<1x16x128x32xf32, #tpu.memory_space<vmem>>, vector<1x1x128x32xf32>
    %30 = vector.shape_cast %29 : vector<1x1x128x32xf32> to vector<128x32xf32>
    %31 = tpu.concatenate %24, %26, %28, %30 in 1 : vector<128x32xf32>, vector<128x32xf32>, vector<128x32xf32>, vector<128x32xf32> -> vector<128x128xf32>
    %32 = arith.truncf %31 : vector<128x128xf32> to vector<128x128xbf16>
    %33 = arith.extf %32 : vector<128x128xbf16> to vector<128x128xf32>
    %34 = arith.subf %31, %33 : vector<128x128xf32>
    %35 = arith.truncf %34 : vector<128x128xf32> to vector<128x128xbf16>
    %36 = arith.extf %35 : vector<128x128xbf16> to vector<128x128xf32>
    %37 = arith.subf %34, %36 : vector<128x128xf32>
    %38 = arith.truncf %37 : vector<128x128xf32> to vector<128x128xbf16>
    %cst_28 = arith.constant dense<0.000000e+00> : vector<128x128xf32>
    %39 = tpu.matmul %32, %0, %cst_28 {dimension_numbers = #tpu.dot_dimension_numbers<[1], [0], [0], [1], [0, 0, 1, 1], [], []>} : vector<128x128xbf16>, vector<128x128xbf16>, vector<128x128xf32> -> vector<128x128xf32>
    %cst_29 = arith.constant dense<0.000000e+00> : vector<128x128xf32>
    %40 = tpu.matmul %35, %0, %cst_29 {dimension_numbers = #tpu.dot_dimension_numbers<[1], [0], [0], [1], [0, 0, 1, 1], [], []>} : vector<128x128xbf16>, vector<128x128xbf16>, vector<128x128xf32> -> vector<128x128xf32>
    %41 = arith.addf %39, %40 : vector<128x128xf32>
    %cst_30 = arith.constant dense<0.000000e+00> : vector<128x128xf32>
    %42 = tpu.matmul %38, %0, %cst_30 {dimension_numbers = #tpu.dot_dimension_numbers<[1], [0], [0], [1], [0, 0, 1, 1], [], []>} : vector<128x128xbf16>, vector<128x128xbf16>, vector<128x128xf32> -> vector<128x128xf32>
    %43 = arith.addf %41, %42 : vector<128x128xf32>
    %44 = vector.shape_cast %43 : vector<128x128xf32> to vector<16x1x8x128xf32>
    %45 = tpu.concatenate %22, %44 in 1 : vector<16x1x8x128xf32>, vector<16x1x8x128xf32> -> vector<16x2x8x128xf32>
    %46 = vector.shape_cast %45 : vector<16x2x8x128xf32> to vector<256x128xf32>
    %c0_31 = arith.constant 0 : index
    %c0_32 = arith.constant 0 : index
    %c0_33 = arith.constant 0 : index
    %c0_34 = arith.constant 0 : index
    %47 = vector.load %arg5[%c0_31, %c0_32, %c0_33, %c0_34] : memref<1x2x256x128xf32, #tpu.memory_space<vmem>>, vector<1x1x256x128xf32>
    %48 = vector.shape_cast %47 : vector<1x1x256x128xf32> to vector<256x128xf32>
    %49 = vector.shape_cast %46 : vector<256x128xf32> to vector<1x1x256x128xf32>
    tpu.vector_store %arg5[%c0_31, %c0_32, %c0_33, %c0_34], %49 {strides = array<i32>} : memref<1x2x256x128xf32, #tpu.memory_space<vmem>>, vector<1x1x256x128xf32>,
    %c0_35 = arith.constant 0 : index
    %c8 = arith.constant 8 : index
    %c0_36 = arith.constant 0 : index
    %c0_37 = arith.constant 0 : index
    %50 = vector.load %arg3[%c0_35, %c8, %c0_36, %c0_37] : memref<1x16x128x32xf32, #tpu.memory_space<vmem>>, vector<1x1x128x32xf32>
    %51 = vector.shape_cast %50 : vector<1x1x128x32xf32> to vector<128x32xf32>
    %c0_38 = arith.constant 0 : index
    %c9 = arith.constant 9 : index
    %c0_39 = arith.constant 0 : index
    %c0_40 = arith.constant 0 : index
    %52 = vector.load %arg3[%c0_38, %c9, %c0_39, %c0_40] : memref<1x16x128x32xf32, #tpu.memory_space<vmem>>, vector<1x1x128x32xf32>
    %53 = vector.shape_cast %52 : vector<1x1x128x32xf32> to vector<128x32xf32>
    %c0_41 = arith.constant 0 : index
    %c10 = arith.constant 10 : index
    %c0_42 = arith.constant 0 : index
    %c0_43 = arith.constant 0 : index
    %54 = vector.load %arg3[%c0_41, %c10, %c0_42, %c0_43] : memref<1x16x128x32xf32, #tpu.memory_space<vmem>>, vector<1x1x128x32xf32>
    %55 = vector.shape_cast %54 : vector<1x1x128x32xf32> to vector<128x32xf32>
    %c0_44 = arith.constant 0 : index
    %c11 = arith.constant 11 : index
    %c0_45 = arith.constant 0 : index
    %c0_46 = arith.constant 0 : index
    %56 = vector.load %arg3[%c0_44, %c11, %c0_45, %c0_46] : memref<1x16x128x32xf32, #tpu.memory_space<vmem>>, vector<1x1x128x32xf32>
    %57 = vector.shape_cast %56 : vector<1x1x128x32xf32> to vector<128x32xf32>
    %58 = tpu.concatenate %51, %53, %55, %57 in 1 : vector<128x32xf32>, vector<128x32xf32>, vector<128x32xf32>, vector<128x32xf32> -> vector<128x128xf32>
    %59 = arith.truncf %58 : vector<128x128xf32> to vector<128x128xbf16>
    %60 = arith.extf %59 : vector<128x128xbf16> to vector<128x128xf32>
    %61 = arith.subf %58, %60 : vector<128x128xf32>
    %62 = arith.truncf %61 : vector<128x128xf32> to vector<128x128xbf16>
    %63 = arith.extf %62 : vector<128x128xbf16> to vector<128x128xf32>
    %64 = arith.subf %61, %63 : vector<128x128xf32>
    %65 = arith.truncf %64 : vector<128x128xf32> to vector<128x128xbf16>
    %cst_47 = arith.constant dense<0.000000e+00> : vector<128x128xf32>
    %66 = tpu.matmul %59, %0, %cst_47 {dimension_numbers = #tpu.dot_dimension_numbers<[1], [0], [0], [1], [0, 0, 1, 1], [], []>} : vector<128x128xbf16>, vector<128x128xbf16>, vector<128x128xf32> -> vector<128x128xf32>
    %cst_48 = arith.constant dense<0.000000e+00> : vector<128x128xf32>
    %67 = tpu.matmul %62, %0, %cst_48 {dimension_numbers = #tpu.dot_dimension_numbers<[1], [0], [0], [1], [0, 0, 1, 1], [], []>} : vector<128x128xbf16>, vector<128x128xbf16>, vector<128x128xf32> -> vector<128x128xf32>
    %68 = arith.addf %66, %67 : vector<128x128xf32>
    %cst_49 = arith.constant dense<0.000000e+00> : vector<128x128xf32>
    %69 = tpu.matmul %65, %0, %cst_49 {dimension_numbers = #tpu.dot_dimension_numbers<[1], [0], [0], [1], [0, 0, 1, 1], [], []>} : vector<128x128xbf16>, vector<128x128xbf16>, vector<128x128xf32> -> vector<128x128xf32>
    %70 = arith.addf %68, %69 : vector<128x128xf32>
    %71 = vector.shape_cast %70 : vector<128x128xf32> to vector<16x1x8x128xf32>
    %c0_50 = arith.constant 0 : index
    %c12 = arith.constant 12 : index
    %c0_51 = arith.constant 0 : index
    %c0_52 = arith.constant 0 : index
    %72 = vector.load %arg3[%c0_50, %c12, %c0_51, %c0_52] : memref<1x16x128x32xf32, #tpu.memory_space<vmem>>, vector<1x1x128x32xf32>
    %73 = vector.shape_cast %72 : vector<1x1x128x32xf32> to vector<128x32xf32>
    %c0_53 = arith.constant 0 : index
    %c13 = arith.constant 13 : index
    %c0_54 = arith.constant 0 : index
    %c0_55 = arith.constant 0 : index
    %74 = vector.load %arg3[%c0_53, %c13, %c0_54, %c0_55] : memref<1x16x128x32xf32, #tpu.memory_space<vmem>>, vector<1x1x128x32xf32>
    %75 = vector.shape_cast %74 : vector<1x1x128x32xf32> to vector<128x32xf32>
    %c0_56 = arith.constant 0 : index
    %c14 = arith.constant 14 : index
    %c0_57 = arith.constant 0 : index
    %c0_58 = arith.constant 0 : index
    %76 = vector.load %arg3[%c0_56, %c14, %c0_57, %c0_58] : memref<1x16x128x32xf32, #tpu.memory_space<vmem>>, vector<1x1x128x32xf32>
    %77 = vector.shape_cast %76 : vector<1x1x128x32xf32> to vector<128x32xf32>
    %c0_59 = arith.constant 0 : index
    %c15 = arith.constant 15 : index
    %c0_60 = arith.constant 0 : index
    %c0_61 = arith.constant 0 : index
    %78 = vector.load %arg3[%c0_59, %c15, %c0_60, %c0_61] : memref<1x16x128x32xf32, #tpu.memory_space<vmem>>, vector<1x1x128x32xf32>
    %79 = vector.shape_cast %78 : vector<1x1x128x32xf32> to vector<128x32xf32>
    %80 = tpu.concatenate %73, %75, %77, %79 in 1 : vector<128x32xf32>, vector<128x32xf32>, vector<128x32xf32>, vector<128x32xf32> -> vector<128x128xf32>
    %81 = arith.truncf %80 : vector<128x128xf32> to vector<128x128xbf16>
    %82 = arith.extf %81 : vector<128x128xbf16> to vector<128x128xf32>
    %83 = arith.subf %80, %82 : vector<128x128xf32>
    %84 = arith.truncf %83 : vector<128x128xf32> to vector<128x128xbf16>
    %85 = arith.extf %84 : vector<128x128xbf16> to vector<128x128xf32>
    %86 = arith.subf %83, %85 : vector<128x128xf32>
    %87 = arith.truncf %86 : vector<128x128xf32> to vector<128x128xbf16>
    %cst_62 = arith.constant dense<0.000000e+00> : vector<128x128xf32>
    %88 = tpu.matmul %81, %0, %cst_62 {dimension_numbers = #tpu.dot_dimension_numbers<[1], [0], [0], [1], [0, 0, 1, 1], [], []>} : vector<128x128xbf16>, vector<128x128xbf16>, vector<128x128xf32> -> vector<128x128xf32>
    %cst_63 = arith.constant dense<0.000000e+00> : vector<128x128xf32>
    %89 = tpu.matmul %84, %0, %cst_63 {dimension_numbers = #tpu.dot_dimension_numbers<[1], [0], [0], [1], [0, 0, 1, 1], [], []>} : vector<128x128xbf16>, vector<128x128xbf16>, vector<128x128xf32> -> vector<128x128xf32>
    %90 = arith.addf %88, %89 : vector<128x128xf32>
    %cst_64 = arith.constant dense<0.000000e+00> : vector<128x128xf32>
    %91 = tpu.matmul %87, %0, %cst_64 {dimension_numbers = #tpu.dot_dimension_numbers<[1], [0], [0], [1], [0, 0, 1, 1], [], []>} : vector<128x128xbf16>, vector<128x128xbf16>, vector<128x128xf32> -> vector<128x128xf32>
    %92 = arith.addf %90, %91 : vector<128x128xf32>
    %93 = vector.shape_cast %92 : vector<128x128xf32> to vector<16x1x8x128xf32>
    %94 = tpu.concatenate %71, %93 in 1 : vector<16x1x8x128xf32>, vector<16x1x8x128xf32> -> vector<16x2x8x128xf32>
    %95 = vector.shape_cast %94 : vector<16x2x8x128xf32> to vector<256x128xf32>
    %c0_65 = arith.constant 0 : index
    %c1_66 = arith.constant 1 : index
    %c0_67 = arith.constant 0 : index
    %c0_68 = arith.constant 0 : index
    %96 = vector.load %arg5[%c0_65, %c1_66, %c0_67, %c0_68] : memref<1x2x256x128xf32, #tpu.memory_space<vmem>>, vector<1x1x256x128xf32>
    %97 = vector.shape_cast %96 : vector<1x1x256x128xf32> to vector<256x128xf32>
    %98 = vector.shape_cast %95 : vector<256x128xf32> to vector<1x1x256x128xf32>
    tpu.vector_store %arg5[%c0_65, %c1_66, %c0_67, %c0_68], %98 {strides = array<i32>} : memref<1x2x256x128xf32, #tpu.memory_space<vmem>>, vector<1x1x256x128xf32>,
    return
  }
  func.func @transform_0(%arg0: i32, %arg1: i32, %arg2: i32) -> (i32, i32, i32, i32) {
    %c0_i32 = arith.constant 0 : i32
    %c0_i32_0 = arith.constant 0 : i32
    return %arg0, %arg1, %arg2, %c0_i32 : i32, i32, i32, i32
  }
  func.func @transform_1(%arg0: i32, %arg1: i32, %arg2: i32) -> (i32, i32) {
    %c0_i32 = arith.constant 0 : i32
    %c0_i32_0 = arith.constant 0 : i32
    %c0_i32_1 = arith.constant 0 : i32
    return %c0_i32, %c0_i32_0 : i32, i32
  }
  func.func @transform_2(%arg0: i32, %arg1: i32, %arg2: i32) -> (i32, i32, i32, i32) {
    %c0_i32 = arith.constant 0 : i32
    %c0_i32_0 = arith.constant 0 : i32
    return %arg0, %arg1, %arg2, %c0_i32 : i32, i32, i32, i32
  }
}

</mosaic_0001>

<llo_original>
// kernel: tpu_custom_call.1
$region0: #{tpu_custom_call.1}
  #allocation0 [shape = 'u32[]', space=smem, size = 0x4, offset = 0x4, fixed_abs, tag = 'smem constant byte address 0x4 - core index']
  #allocation1 [shape = 'u32[144,128]{1,0:T(1,128)}', space=vmem, size = 0x12000, scoped, tag = 'internal scratch']
  %s0 = inlined_call_operand.vmem [shape: f32[2,16,128,32], index: 0, kind: input, shape index: {}]
  %s1 = inlined_call_operand.vmem [shape: bf16[128,128], index: 1, kind: input, shape index: {}]
  %s2 = inlined_call_operand.hbm [shape: f32[2,2,256,128], index: 2, kind: output, shape index: {}]
  %s3 = sld [smem:[#allocation0]]
  $region41: #{tpu_custom_call.1} parent=0
    _
  %s5 = ssub.s32 1, %s3
  %s6 = scalar_select 0, %s5, %s3
  $region1: #{tpu_custom_call.1} parent=0
    #allocation2 [shape = 'u8[524288]{0}', space=vmem, size = 0x80000, scoped, tag = 'output window, operand 0']
    #allocation3 [shape = 's32[2]{0}', space=sflag, size = 0x8, scoped, tag = 'scoped memory for tpu_custom_call.1']
    %7 = vsyncpa [#allocation3], 0
    %s8 = scalar_lea.sflag [#allocation3], 1
    %9 = vsyncpa %s8, 0
    loop: start=0, step=1, limit=4
    $region2: #{tpu_custom_call.1} parent=1 // loop_pre_header
      _
    $region3: #{tpu_custom_call.1} parent=1 // loop_header
      %s11 = sphi 0, %s15
      %p12 = scmp.ge.s32.totalorder %s11, 4
      %s18 = sphi 0, %s37
      %s19 = sphi 0, %s33
      %s20 = sphi 0, %s29
      %s21 = sphi 0, %s18
      %s22 = sphi 0, %s19
      %s23 = sphi 0, %s20
      %s24 = sphi 0, %s21
      %s25 = sphi 0, %s22
      %s26 = sphi 0, %s23
      %s44 = sphi 0, %s46
      %s47 = sphi 0, %s44
      %s48 = sphi 0, %s47
      %s64 = sphi 0, %s48
      %s68 = sphi 0, %s68
      %s70 = sphi 0, %s68
      %s71 = sphi 0, %s70
      %s85 = sphi 0, %s71
      %s95 = sphi 0, %s97
      %s98 = sphi 0, %s95
      %s99 = sphi 0, %s98
      %s115 = sphi 0, %s99
    $region4: #{tpu_custom_call.1} parent=1 // loop_header_branch
      %14 = sbr.rel (%p12) target = $region8
    $region5: #{tpu_custom_call.1} parent=1 // loop_body
      %s16 = ssub.s32 %s11, 1
      %s17 = ssub.s32 %s11, 2
      %s27 = sadd.s32 1, %s20
      %p28 = scmp.ge.s32.totalorder %s27, 1
      %s29 = scalar_select %p28, 0, %s27
      %s30 = sadd.s32 1, %s19
      %s31 = scalar_select %p28, %s30, %s19
      %p32 = scmp.ge.s32.totalorder %s31, 1
      %s33 = scalar_select %p32, 0, %s31
      %s34 = sadd.s32 1, %s18
      %s35 = scalar_select %p32, %s34, %s18
      %p36 = scmp.ge.s32.totalorder %s35, 2
      %s37 = scalar_select %p36, 0, %s35
      %s38 = ssub.s32 %s18, %s37
      %s39 = ssub.s32 %s19, %s33
      %s40 = sor.u32 %s38, %s39
      %s41 = ssub.s32 %s20, %s29
      %s42 = sor.u32 %s40, %s41
      %p43 = scmp.eq.s32.totalorder %s42, 0
      %s45 = sadd.s32 %s44, 1
      %s46 = scalar_select %p43, %s44, %s45
      %p49 = pneg %p43
      %p50 = scmp.eq.s32.totalorder %s11, 1
      %p51 = por %p49, %p50
      %p52 = scmp.ne.s32.totalorder %s44, %s47
      %p53 = scmp.eq.s32.totalorder %s11, 0
      %p54 = por %p52, %p53
      %p55 = scmp.ne.s32.totalorder %s44, %s47
      %p56 = scmp.eq.s32.totalorder %s16, 1
      %p57 = por %p55, %p56
      %p58 = scmp.ne.s32.totalorder %s47, %s48
      %p59 = scmp.eq.s32.totalorder %s16, 0
      %p60 = por %p58, %p59
      %p61 = scmp.ne.s32.totalorder %s47, %s48
      %p62 = scmp.eq.s32.totalorder %s17, 1
      %p63 = por %p61, %p62
      %p65 = scmp.ne.s32.totalorder %s48, %s64
      %p66 = scmp.eq.s32.totalorder %s17, 0
      %p67 = por %p65, %p66
      %s69 = sadd.s32 %s68, 1
      %p72 = scmp.eq.s32.totalorder %s11, 1
      %p73 = scmp.ne.s32.totalorder %s68, %s70
      %p74 = scmp.eq.s32.totalorder %s11, 0
      %p75 = por %p73, %p74
      %p76 = scmp.ne.s32.totalorder %s68, %s70
      %p77 = scmp.eq.s32.totalorder %s16, 1
      %p78 = por %p76, %p77
      %p79 = scmp.ne.s32.totalorder %s70, %s71
      %p80 = scmp.eq.s32.totalorder %s16, 0
      %p81 = por %p79, %p80
      %p82 = scmp.ne.s32.totalorder %s70, %s71
      %p83 = scmp.eq.s32.totalorder %s17, 1
      %p84 = por %p82, %p83
      %p86 = scmp.ne.s32.totalorder %s71, %s85
      %p87 = scmp.eq.s32.totalorder %s17, 0
      %p88 = por %p86, %p87
      %s89 = ssub.s32 %s18, %s37
      %s90 = ssub.s32 %s19, %s33
      %s91 = sor.u32 %s89, %s90
      %s92 = ssub.s32 %s20, %s29
      %s93 = sor.u32 %s91, %s92
      %p94 = scmp.eq.s32.totalorder %s93, 0
      %s96 = sadd.s32 %s95, 1
      %s97 = scalar_select %p94, %s95, %s96
      %p100 = pneg %p94
      %p101 = scmp.eq.s32.totalorder %s11, 1
      %p102 = por %p100, %p101
      %p103 = scmp.ne.s32.totalorder %s95, %s98
      %p104 = scmp.eq.s32.totalorder %s11, 0
      %p105 = por %p103, %p104
      %p106 = scmp.ne.s32.totalorder %s95, %s98
      %p107 = scmp.eq.s32.totalorder %s16, 1
      %p108 = por %p106, %p107
      %p109 = scmp.ne.s32.totalorder %s98, %s99
      %p110 = scmp.eq.s32.totalorder %s16, 0
      %p111 = por %p109, %p110
      %p112 = scmp.ne.s32.totalorder %s98, %s99
      %p113 = scmp.eq.s32.totalorder %s17, 1
      %p114 = por %p112, %p113
      %p116 = scmp.ne.s32.totalorder %s99, %s115
      %p117 = scmp.eq.s32.totalorder %s17, 0
      %p118 = por %p116, %p117
      %p119 = scmp.le.s32.totalorder 1, %s11
      %p120 = scmp.lt.s32.totalorder %s11, 3
      %p121 = pnand %p119, %p120
      %p122 = pneg %p121
      // Predicated region
      $region9: #{tpu_custom_call.1} parent=5 // pred_check
        _
      $region10: #{tpu_custom_call.1} parent=5 // pred_check_branch
        %124 = sbr.rel (%p121) target = $region12
      $region11: #{tpu_custom_call.1} parent=5 // pred_region
        %s125 = ssub.s32 %s11, 1
        // Predicated region
        $region13: #{tpu_custom_call.1} parent=11 // pred_check
          %p126 = pneg %p81
        $region14: #{tpu_custom_call.1} parent=11 // pred_check_branch
          %128 = sbr.rel (%p126) target = $region16
        $region15: #{tpu_custom_call.1} parent=11 // pred_region
          _
        $region16: #{tpu_custom_call.1} parent=11 // pred_fallthru
          _
      $region12: #{tpu_custom_call.1} parent=5 // pred_fallthru
        _
      %p129 = scmp.lt.s32.totalorder %s11, 2
      // Predicated region
      $region17: #{tpu_custom_call.1} parent=5 // pred_check
        %p130 = pneg %p129
      $region18: #{tpu_custom_call.1} parent=5 // pred_check_branch
        %132 = sbr.rel (%p130) target = $region20
      $region19: #{tpu_custom_call.1} parent=5 // pred_region
        // Predicated region
        $region21: #{tpu_custom_call.1} parent=19 // pred_check
          %p133 = pneg %p54
        $region22: #{tpu_custom_call.1} parent=19 // pred_check_branch
          %135 = sbr.rel (%p133) target = $region24
        $region23: #{tpu_custom_call.1} parent=19 // pred_region
          %s136 = smul.u32 16, %s19
          %s137 = smul.u32 16, %s20
          %p138 = scmp.lt.s32.totalorder %s18, 1
          %s139 = scalar_select %p138, %s18, 1
          %p140 = scmp.lt.s32.totalorder %s136, 15
          %s141 = scalar_select %p140, %s136, 15
          %p142 = scmp.lt.s32.totalorder %s137, 15
          %s143 = scalar_select %p142, %s137, 15
          %s144 = smul.addr %s141, 16
          %s145 = sadd.s32 %s143, %s144
          %s146 = smul.addr %s139, 256
          %s147 = sadd.s32 %s145, %s146
          %s148 = smul.addr %s147, 8
          %s149 = scalar_lea.vmem %s0, %s148
          %s150 = smul.u32 16, %s19
          %s151 = smul.u32 16, %s20
        $region24: #{tpu_custom_call.1} parent=19 // pred_fallthru
          _
      $region20: #{tpu_custom_call.1} parent=5 // pred_fallthru
        _
      %p152 = scmp.le.s32.totalorder 1, %s11
      %p153 = scmp.lt.s32.totalorder %s11, 3
      %p154 = pnand %p152, %p153
      %p155 = pneg %p154
      // Predicated region
      $region25: #{tpu_custom_call.1} parent=5 // pred_check
        _
      $region26: #{tpu_custom_call.1} parent=5 // pred_check_branch
        %157 = sbr.rel (%p154) target = $region28
      $region27: #{tpu_custom_call.1} parent=5 // pred_region
        %s158 = ssub.s32 %s11, 1
        %s159 = smul.u32 16, %s22
        %s160 = smul.u32 16, %s23
        %p161 = scmp.lt.s32.totalorder %s21, 1
        %s162 = scalar_select %p161, %s21, 1
        %p163 = scmp.lt.s32.totalorder %s159, 15
        %s164 = scalar_select %p163, %s159, 15
        %p165 = scmp.lt.s32.totalorder %s160, 15
        %s166 = scalar_select %p165, %s160, 15
        %s167 = smul.addr %s164, 16
        %s168 = sadd.s32 %s166, %s167
        %s169 = smul.addr %s162, 256
        %s170 = sadd.s32 %s168, %s169
        %s171 = smul.addr %s170, 8
        %s172 = scalar_lea.vmem %s0, %s171
        %p173 = pneg %p60
        %p174 = pneg %p57
        %p175 = pneg %p81
        %p176 = pneg %p78
        %p177 = pneg %p111
        %p178 = pneg %p108
        %s179 = sand.u32 %s98, 1
        %s180 = scalar_lea.sflag [#allocation3], %s179
        %s181 = sand.u32 %s98, 1
        %s182 = smul.addr %s181, 512
        %s183 = scalar_lea.vmem [#allocation2], %s182
        %s184 = smul.u32 16, %s22
        %s185 = smul.u32 16, %s23
        %p186 = scmp.lt.s32.totalorder %s21, 1
        %s187 = scalar_select %p186, %s21, 1
        %p188 = scmp.lt.s32.totalorder %s184, 15
        %s189 = scalar_select %p188, %s184, 15
        %p190 = scmp.lt.s32.totalorder %s185, 15
        %s191 = scalar_select %p190, %s185, 15
        %s192 = smul.addr %s189, 16
        %s193 = sadd.s32 %s191, %s192
        %s194 = smul.addr %s187, 256
        %s195 = sadd.s32 %s193, %s194
        %s196 = smul.addr %s195, 8
        %s197 = scalar_lea.vmem %s0, %s196
        %s198 = smul.u32 16, %s22
        %s199 = smul.u32 16, %s23
        %s200 = smul.u32 2, %s22
        %s201 = smul.u32 32, %s23
        %v203 = vld [vmem:[%s1] sm:$0xf]
        %v204 = vld [vmem:[%s1 + $0x4] sm:$0xf]
        %v205 = vld [vmem:[%s1 + $0x8] sm:$0xf]
        %v206 = vld [vmem:[%s1 + $0xc] sm:$0xf]
        %v207 = vld [vmem:[%s1 + $0x10] sm:$0xf]
        %v208 = vld [vmem:[%s1 + $0x14] sm:$0xf]
        %v209 = vld [vmem:[%s1 + $0x18] sm:$0xf]
        %v210 = vld [vmem:[%s1 + $0x1c] sm:$0xf]
        %v211 = vld [vmem:[%s1 + $0x20] sm:$0xf]
        %v212 = vld [vmem:[%s1 + $0x24] sm:$0xf]
        %v213 = vld [vmem:[%s1 + $0x28] sm:$0xf]
        %v214 = vld [vmem:[%s1 + $0x2c] sm:$0xf]
        %v215 = vld [vmem:[%s1 + $0x30] sm:$0xf]
        %v216 = vld [vmem:[%s1 + $0x34] sm:$0xf]
        %v217 = vld [vmem:[%s1 + $0x38] sm:$0xf]
        %v218 = vld [vmem:[%s1 + $0x3c] sm:$0xf]
        %v219 = vld [vmem:[%s197] sm:$0xff]
        %v220 = vld [vmem:[%s197 + $0x8] sm:$0xff]
        %v221 = vld [vmem:[%s197 + $0x10] sm:$0xff]
        %v222 = vld [vmem:[%s197 + $0x18] sm:$0xff]
        %v223 = vld [vmem:[%s197 + $0x20] sm:$0xff]
        %v224 = vld [vmem:[%s197 + $0x28] sm:$0xff]
        %v225 = vld [vmem:[%s197 + $0x30] sm:$0xff]
        %v226 = vld [vmem:[%s197 + $0x38] sm:$0xff]
        %v227 = vld [vmem:[%s197 + $0x40] sm:$0xff]
        %v228 = vld [vmem:[%s197 + $0x48] sm:$0xff]
        %v229 = vld [vmem:[%s197 + $0x50] sm:$0xff]
        %v230 = vld [vmem:[%s197 + $0x58] sm:$0xff]
        %v231 = vld [vmem:[%s197 + $0x60] sm:$0xff]
        %v232 = vld [vmem:[%s197 + $0x68] sm:$0xff]
        %v233 = vld [vmem:[%s197 + $0x70] sm:$0xff]
        %v234 = vld [vmem:[%s197 + $0x78] sm:$0xff]
        %s235 = scalar_lea.vmem %s197, 128
        %v236 = vld [vmem:[%s235] sm:$0xff]
        %v237 = vld [vmem:[%s235 + $0x8] sm:$0xff]
        %v238 = vld [vmem:[%s235 + $0x10] sm:$0xff]
        %v239 = vld [vmem:[%s235 + $0x18] sm:$0xff]
        %v240 = vld [vmem:[%s235 + $0x20] sm:$0xff]
        %v241 = vld [vmem:[%s235 + $0x28] sm:$0xff]
        %v242 = vld [vmem:[%s235 + $0x30] sm:$0xff]
        %v243 = vld [vmem:[%s235 + $0x38] sm:$0xff]
        %v244 = vld [vmem:[%s235 + $0x40] sm:$0xff]
        %v245 = vld [vmem:[%s235 + $0x48] sm:$0xff]
        %v246 = vld [vmem:[%s235 + $0x50] sm:$0xff]
        %v247 = vld [vmem:[%s235 + $0x58] sm:$0xff]
        %v248 = vld [vmem:[%s235 + $0x60] sm:$0xff]
        %v249 = vld [vmem:[%s235 + $0x68] sm:$0xff]
        %v250 = vld [vmem:[%s235 + $0x70] sm:$0xff]
        %v251 = vld [vmem:[%s235 + $0x78] sm:$0xff]
        %s252 = scalar_lea.vmem %s197, 256
        %v253 = vld [vmem:[%s252] sm:$0xff]
        %v254 = vld [vmem:[%s252 + $0x8] sm:$0xff]
        %v255 = vld [vmem:[%s252 + $0x10] sm:$0xff]
        %v256 = vld [vmem:[%s252 + $0x18] sm:$0xff]
        %v257 = vld [vmem:[%s252 + $0x20] sm:$0xff]
        %v258 = vld [vmem:[%s252 + $0x28] sm:$0xff]
        %v259 = vld [vmem:[%s252 + $0x30] sm:$0xff]
        %v260 = vld [vmem:[%s252 + $0x38] sm:$0xff]
        %v261 = vld [vmem:[%s252 + $0x40] sm:$0xff]
        %v262 = vld [vmem:[%s252 + $0x48] sm:$0xff]
        %v263 = vld [vmem:[%s252 + $0x50] sm:$0xff]
        %v264 = vld [vmem:[%s252 + $0x58] sm:$0xff]
        %v265 = vld [vmem:[%s252 + $0x60] sm:$0xff]
        %v266 = vld [vmem:[%s252 + $0x68] sm:$0xff]
        %v267 = vld [vmem:[%s252 + $0x70] sm:$0xff]
        %v268 = vld [vmem:[%s252 + $0x78] sm:$0xff]
        %s269 = scalar_lea.vmem %s197, 384
        %v270 = vld [vmem:[%s269] sm:$0xff]
        %v271 = vld [vmem:[%s269 + $0x8] sm:$0xff]
        %v272 = vld [vmem:[%s269 + $0x10] sm:$0xff]
        %v273 = vld [vmem:[%s269 + $0x18] sm:$0xff]
        %v274 = vld [vmem:[%s269 + $0x20] sm:$0xff]
        %v275 = vld [vmem:[%s269 + $0x28] sm:$0xff]
        %v276 = vld [vmem:[%s269 + $0x30] sm:$0xff]
        %v277 = vld [vmem:[%s269 + $0x38] sm:$0xff]
        %v278 = vld [vmem:[%s269 + $0x40] sm:$0xff]
        %v279 = vld [vmem:[%s269 + $0x48] sm:$0xff]
        %v280 = vld [vmem:[%s269 + $0x50] sm:$0xff]
        %v281 = vld [vmem:[%s269 + $0x58] sm:$0xff]
        %v282 = vld [vmem:[%s269 + $0x60] sm:$0xff]
        %v283 = vld [vmem:[%s269 + $0x68] sm:$0xff]
        %v284 = vld [vmem:[%s269 + $0x70] sm:$0xff]
        %v285 = vld [vmem:[%s269 + $0x78] sm:$0xff]
        %302 = vrot.lane.b32.xlu0 %v236, 32
        %v303 = vpop.permute.xlu0 %302
        %304 = vrot.lane.b32.xlu0 %v237, 32
        %v305 = vpop.permute.xlu0 %304
        %306 = vrot.lane.b32.xlu0 %v238, 32
        %v307 = vpop.permute.xlu0 %306
        %308 = vrot.lane.b32.xlu0 %v239, 32
        %v309 = vpop.permute.xlu0 %308
        %310 = vrot.lane.b32.xlu0 %v240, 32
        %v311 = vpop.permute.xlu0 %310
        %312 = vrot.lane.b32.xlu0 %v241, 32
        %v313 = vpop.permute.xlu0 %312
        %314 = vrot.lane.b32.xlu0 %v242, 32
        %v315 = vpop.permute.xlu0 %314
        %316 = vrot.lane.b32.xlu0 %v243, 32
        %v317 = vpop.permute.xlu0 %316
        %318 = vrot.lane.b32.xlu0 %v244, 32
        %v319 = vpop.permute.xlu0 %318
        %320 = vrot.lane.b32.xlu0 %v245, 32
        %v321 = vpop.permute.xlu0 %320
        %322 = vrot.lane.b32.xlu0 %v246, 32
        %v323 = vpop.permute.xlu0 %322
        %324 = vrot.lane.b32.xlu0 %v247, 32
        %v325 = vpop.permute.xlu0 %324
        %326 = vrot.lane.b32.xlu0 %v248, 32
        %v327 = vpop.permute.xlu0 %326
        %328 = vrot.lane.b32.xlu0 %v249, 32
        %v329 = vpop.permute.xlu0 %328
        %330 = vrot.lane.b32.xlu0 %v250, 32
        %v331 = vpop.permute.xlu0 %330
        %332 = vrot.lane.b32.xlu0 %v251, 32
        %v333 = vpop.permute.xlu0 %332
        %366 = vrot.lane.b32.xlu0 %v253, 64
        %v367 = vpop.permute.xlu0 %366
        %368 = vrot.lane.b32.xlu0 %v254, 64
        %v369 = vpop.permute.xlu0 %368
        %370 = vrot.lane.b32.xlu0 %v255, 64
        %v371 = vpop.permute.xlu0 %370
        %372 = vrot.lane.b32.xlu0 %v256, 64
        %v373 = vpop.permute.xlu0 %372
        %374 = vrot.lane.b32.xlu0 %v257, 64
        %v375 = vpop.permute.xlu0 %374
        %376 = vrot.lane.b32.xlu0 %v258, 64
        %v377 = vpop.permute.xlu0 %376
        %378 = vrot.lane.b32.xlu0 %v259, 64
        %v379 = vpop.permute.xlu0 %378
        %380 = vrot.lane.b32.xlu0 %v260, 64
        %v381 = vpop.permute.xlu0 %380
        %382 = vrot.lane.b32.xlu0 %v261, 64
        %v383 = vpop.permute.xlu0 %382
        %384 = vrot.lane.b32.xlu0 %v262, 64
        %v385 = vpop.permute.xlu0 %384
        %386 = vrot.lane.b32.xlu0 %v263, 64
        %v387 = vpop.permute.xlu0 %386
        %388 = vrot.lane.b32.xlu0 %v264, 64
        %v389 = vpop.permute.xlu0 %388
        %390 = vrot.lane.b32.xlu0 %v265, 64
        %v391 = vpop.permute.xlu0 %390
        %392 = vrot.lane.b32.xlu0 %v266, 64
        %v393 = vpop.permute.xlu0 %392
        %394 = vrot.lane.b32.xlu0 %v267, 64
        %v395 = vpop.permute.xlu0 %394
        %396 = vrot.lane.b32.xlu0 %v268, 64
        %v397 = vpop.permute.xlu0 %396
        %430 = vrot.lane.b32.xlu0 %v270, 96
        %v431 = vpop.permute.xlu0 %430
        %432 = vrot.lane.b32.xlu0 %v271, 96
        %v433 = vpop.permute.xlu0 %432
        %434 = vrot.lane.b32.xlu0 %v272, 96
        %v435 = vpop.permute.xlu0 %434
        %436 = vrot.lane.b32.xlu0 %v273, 96
        %v437 = vpop.permute.xlu0 %436
        %438 = vrot.lane.b32.xlu0 %v274, 96
        %v439 = vpop.permute.xlu0 %438
        %440 = vrot.lane.b32.xlu0 %v275, 96
        %v441 = vpop.permute.xlu0 %440
        %442 = vrot.lane.b32.xlu0 %v276, 96
        %v443 = vpop.permute.xlu0 %442
        %444 = vrot.lane.b32.xlu0 %v277, 96
        %v445 = vpop.permute.xlu0 %444
        %446 = vrot.lane.b32.xlu0 %v278, 96
        %v447 = vpop.permute.xlu0 %446
        %448 = vrot.lane.b32.xlu0 %v279, 96
        %v449 = vpop.permute.xlu0 %448
        %450 = vrot.lane.b32.xlu0 %v280, 96
        %v451 = vpop.permute.xlu0 %450
        %452 = vrot.lane.b32.xlu0 %v281, 96
        %v453 = vpop.permute.xlu0 %452
        %454 = vrot.lane.b32.xlu0 %v282, 96
        %v455 = vpop.permute.xlu0 %454
        %456 = vrot.lane.b32.xlu0 %v283, 96
        %v457 = vpop.permute.xlu0 %456
        %458 = vrot.lane.b32.xlu0 %v284, 96
        %v459 = vpop.permute.xlu0 %458
        %460 = vrot.lane.b32.xlu0 %v285, 96
        %v461 = vpop.permute.xlu0 %460
        %vm478 = vcmask 261120
        %v479 = vsel %vm478, %v219, %v303
        %v480 = vsel %vm478, %v220, %v305
        %v481 = vsel %vm478, %v221, %v307
        %v482 = vsel %vm478, %v222, %v309
        %v483 = vsel %vm478, %v223, %v311
        %v484 = vsel %vm478, %v224, %v313
        %v485 = vsel %vm478, %v225, %v315
        %v486 = vsel %vm478, %v226, %v317
        %v487 = vsel %vm478, %v227, %v319
        %v488 = vsel %vm478, %v228, %v321
        %v489 = vsel %vm478, %v229, %v323
        %v490 = vsel %vm478, %v230, %v325
        %v491 = vsel %vm478, %v231, %v327
        %v492 = vsel %vm478, %v232, %v329
        %v493 = vsel %vm478, %v233, %v331
        %v494 = vsel %vm478, %v234, %v333
        %vm495 = vcmask 523264
        %v496 = vsel %vm495, %v479, %v367
        %v497 = vsel %vm495, %v480, %v369
        %v498 = vsel %vm495, %v481, %v371
        %v499 = vsel %vm495, %v482, %v373
        %v500 = vsel %vm495, %v483, %v375
        %v501 = vsel %vm495, %v484, %v377
        %v502 = vsel %vm495, %v485, %v379
        %v503 = vsel %vm495, %v486, %v381
        %v504 = vsel %vm495, %v487, %v383
        %v505 = vsel %vm495, %v488, %v385
        %v506 = vsel %vm495, %v489, %v387
        %v507 = vsel %vm495, %v490, %v389
        %v508 = vsel %vm495, %v491, %v391
        %v509 = vsel %vm495, %v492, %v393
        %v510 = vsel %vm495, %v493, %v395
        %v511 = vsel %vm495, %v494, %v397
        %vm512 = vcmask 785408
        %v513 = vsel %vm512, %v496, %v431
        %v514 = vsel %vm512, %v497, %v433
        %v515 = vsel %vm512, %v498, %v435
        %v516 = vsel %vm512, %v499, %v437
        %v517 = vsel %vm512, %v500, %v439
        %v518 = vsel %vm512, %v501, %v441
        %v519 = vsel %vm512, %v502, %v443
        %v520 = vsel %vm512, %v503, %v445
        %v521 = vsel %vm512, %v504, %v447
        %v522 = vsel %vm512, %v505, %v449
        %v523 = vsel %vm512, %v506, %v451
        %v524 = vsel %vm512, %v507, %v453
        %v525 = vsel %vm512, %v508, %v455
        %v526 = vsel %vm512, %v509, %v457
        %v527 = vsel %vm512, %v510, %v459
        %v528 = vsel %vm512, %v511, %v461
        %v529 = vpack.c.bf16 %v514, %v513
        %v530 = vpack.c.bf16 %v516, %v515
        %v531 = vpack.c.bf16 %v518, %v517
        %v532 = vpack.c.bf16 %v520, %v519
        %v533 = vpack.c.bf16 %v522, %v521
        %v534 = vpack.c.bf16 %v524, %v523
        %v535 = vpack.c.bf16 %v526, %v525
        %v536 = vpack.c.bf16 %v528, %v527
        %v537 = vunpack.c.l.bf16 %v529
        %v538 = vunpack.c.h.bf16 %v529
        %v539 = vunpack.c.l.bf16 %v530
        %v540 = vunpack.c.h.bf16 %v530
        %v541 = vunpack.c.l.bf16 %v531
        %v542 = vunpack.c.h.bf16 %v531
        %v543 = vunpack.c.l.bf16 %v532
        %v544 = vunpack.c.h.bf16 %v532
        %v545 = vunpack.c.l.bf16 %v533
        %v546 = vunpack.c.h.bf16 %v533
        %v547 = vunpack.c.l.bf16 %v534
        %v548 = vunpack.c.h.bf16 %v534
        %v549 = vunpack.c.l.bf16 %v535
        %v550 = vunpack.c.h.bf16 %v535
        %v551 = vunpack.c.l.bf16 %v536
        %v552 = vunpack.c.h.bf16 %v536
        %v553 = vsub.f32 %v513, %v537
        %v554 = vsub.f32 %v514, %v538
        %v555 = vsub.f32 %v515, %v539
        %v556 = vsub.f32 %v516, %v540
        %v557 = vsub.f32 %v517, %v541
        %v558 = vsub.f32 %v518, %v542
        %v559 = vsub.f32 %v519, %v543
        %v560 = vsub.f32 %v520, %v544
        %v561 = vsub.f32 %v521, %v545
        %v562 = vsub.f32 %v522, %v546
        %v563 = vsub.f32 %v523, %v547
        %v564 = vsub.f32 %v524, %v548
        %v565 = vsub.f32 %v525, %v549
        %v566 = vsub.f32 %v526, %v550
        %v567 = vsub.f32 %v527, %v551
        %v568 = vsub.f32 %v528, %v552
        %v569 = vpack.c.bf16 %v554, %v553
        %v570 = vpack.c.bf16 %v556, %v555
        %v571 = vpack.c.bf16 %v558, %v557
        %v572 = vpack.c.bf16 %v560, %v559
        %v573 = vpack.c.bf16 %v562, %v561
        %v574 = vpack.c.bf16 %v564, %v563
        %v575 = vpack.c.bf16 %v566, %v565
        %v576 = vpack.c.bf16 %v568, %v567
        %v577 = vunpack.c.l.bf16 %v569
        %v578 = vunpack.c.h.bf16 %v569
        %v579 = vunpack.c.l.bf16 %v570
        %v580 = vunpack.c.h.bf16 %v570
        %v581 = vunpack.c.l.bf16 %v571
        %v582 = vunpack.c.h.bf16 %v571
        %v583 = vunpack.c.l.bf16 %v572
        %v584 = vunpack.c.h.bf16 %v572
        %v585 = vunpack.c.l.bf16 %v573
        %v586 = vunpack.c.h.bf16 %v573
        %v587 = vunpack.c.l.bf16 %v574
        %v588 = vunpack.c.h.bf16 %v574
        %v589 = vunpack.c.l.bf16 %v575
        %v590 = vunpack.c.h.bf16 %v575
        %v591 = vunpack.c.l.bf16 %v576
        %v592 = vunpack.c.h.bf16 %v576
        %v593 = vsub.f32 %v553, %v577
        %v594 = vsub.f32 %v554, %v578
        %v595 = vsub.f32 %v555, %v579
        %v596 = vsub.f32 %v556, %v580
        %v597 = vsub.f32 %v557, %v581
        %v598 = vsub.f32 %v558, %v582
        %v599 = vsub.f32 %v559, %v583
        %v600 = vsub.f32 %v560, %v584
        %v601 = vsub.f32 %v561, %v585
        %v602 = vsub.f32 %v562, %v586
        %v603 = vsub.f32 %v563, %v587
        %v604 = vsub.f32 %v564, %v588
        %v605 = vsub.f32 %v565, %v589
        %v606 = vsub.f32 %v566, %v590
        %v607 = vsub.f32 %v567, %v591
        %v608 = vsub.f32 %v568, %v592
        %v609 = vpack.c.bf16 %v594, %v593
        %v610 = vpack.c.bf16 %v596, %v595
        %v611 = vpack.c.bf16 %v598, %v597
        %v612 = vpack.c.bf16 %v600, %v599
        %v613 = vpack.c.bf16 %v602, %v601
        %v614 = vpack.c.bf16 %v604, %v603
        %v615 = vpack.c.bf16 %v606, %v605
        %v616 = vpack.c.bf16 %v608, %v607
        %v633 = vunpack.c.l.b16 %v203
        %v634 = vunpack.c.l.b16 %v204
        %v635 = vunpack.c.l.b16 %v205
        %v636 = vunpack.c.l.b16 %v206
        %v637 = vunpack.c.l.b16 %v207
        %v638 = vunpack.c.l.b16 %v208
        %v639 = vunpack.c.l.b16 %v209
        %v640 = vunpack.c.l.b16 %v210
        %v641 = vunpack.c.l.b16 %v211
        %v642 = vunpack.c.l.b16 %v212
        %v643 = vunpack.c.l.b16 %v213
        %v644 = vunpack.c.l.b16 %v214
        %v645 = vunpack.c.l.b16 %v215
        %v646 = vunpack.c.l.b16 %v216
        %v647 = vunpack.c.l.b16 %v217
        %v648 = vunpack.c.l.b16 %v218
        %v649 = vpack.c.b16 %v634, %v633
        %v650 = vpack.c.b16 %v636, %v635
        %v651 = vpack.c.b16 %v638, %v637
        %v652 = vpack.c.b16 %v640, %v639
        %v653 = vpack.c.b16 %v642, %v641
        %v654 = vpack.c.b16 %v644, %v643
        %v655 = vpack.c.b16 %v646, %v645
        %v656 = vpack.c.b16 %v648, %v647
        %665 = vmatprep.subr.bf16.mxu0 0
        %666 = vmatpush1.bf16.msra.mxu0 %v649
        %667 = vmatprep.subr.bf16.mxu0 0
        %668 = vmatpush1.bf16.msra.mxu0 %v650
        %669 = vmatprep.subr.bf16.mxu0 0
        %670 = vmatpush1.bf16.msra.mxu0 %v651
        %671 = vmatprep.subr.bf16.mxu0 0
        %672 = vmatpush1.bf16.msra.mxu0 %v652
        %673 = vmatprep.subr.bf16.mxu0 0
        %674 = vmatpush1.bf16.msra.mxu0 %v653
        %675 = vmatprep.subr.bf16.mxu0 0
        %676 = vmatpush1.bf16.msra.mxu0 %v654
        %677 = vmatprep.subr.bf16.mxu0 0
        %678 = vmatpush1.bf16.msra.mxu0 %v655
        %679 = vmatprep.subr.bf16.mxu0 0
        %680 = vmatpush1.bf16.msra.mxu0 %v656
        %681 = vmatprep.subr.bf16.mxu0 0
        %682 = vmatpush1.bf16.msra.mxu0 0
        %683 = vmatprep.subr.bf16.mxu0 0
        %684 = vmatpush1.bf16.msra.mxu0 0
        %685 = vmatprep.subr.bf16.mxu0 0
        %686 = vmatpush1.bf16.msra.mxu0 0
        %687 = vmatprep.subr.bf16.mxu0 0
        %688 = vmatpush1.bf16.msra.mxu0 0
        %689 = vmatprep.subr.bf16.mxu0 0
        %690 = vmatpush1.bf16.msra.mxu0 0
        %691 = vmatprep.subr.bf16.mxu0 0
        %692 = vmatpush1.bf16.msra.mxu0 0
        %693 = vmatprep.subr.bf16.mxu0 0
        %694 = vmatpush1.bf16.msra.mxu0 0
        %695 = vmatprep.subr.bf16.mxu0 0
        %696 = vmatpush1.bf16.msra.mxu0 0
        %697 = vmatprep.mubr.bf16.mxu0 0
        %698 = vmatmul.mubr.bf16.gmra.mrb[0].mxu0 %v569
        %v699 = vpop.f32.mrb[0].mxu0
        %v700 = vadd.f32 0.0, %v699
        %v701 = vpop.f32.mrb[0].mxu0
        %v702 = vpop.f32.mrb[0].mxu0
        %v703 = vadd.f32 0.0, %v702
        %v704 = vpop.f32.mrb[0].mxu0
        %705 = vmatprep.mubr.bf16.mxu0 0
        %706 = vmatmul.mubr.bf16.gmra.mrb[0].mxu0 %v570
        %v707 = vpop.f32.mrb[0].mxu0
        %v708 = vadd.f32 0.0, %v707
        %v709 = vpop.f32.mrb[0].mxu0
        %v710 = vpop.f32.mrb[0].mxu0
        %v711 = vadd.f32 0.0, %v710
        %v712 = vpop.f32.mrb[0].mxu0
        %713 = vmatprep.mubr.bf16.mxu0 0
        %714 = vmatmul.mubr.bf16.gmra.mrb[0].mxu0 %v571
        %v715 = vpop.f32.mrb[0].mxu0
        %v716 = vadd.f32 0.0, %v715
        %v717 = vpop.f32.mrb[0].mxu0
        %v718 = vpop.f32.mrb[0].mxu0
        %v719 = vadd.f32 0.0, %v718
        %v720 = vpop.f32.mrb[0].mxu0
        %721 = vmatprep.mubr.bf16.mxu0 0
        %722 = vmatmul.mubr.bf16.gmra.mrb[0].mxu0 %v572
        %v723 = vpop.f32.mrb[0].mxu0
        %v724 = vadd.f32 0.0, %v723
        %v725 = vpop.f32.mrb[0].mxu0
        %v726 = vpop.f32.mrb[0].mxu0
        %v727 = vadd.f32 0.0, %v726
        %v728 = vpop.f32.mrb[0].mxu0
        %729 = vmatprep.mubr.bf16.mxu0 0
        %730 = vmatmul.mubr.bf16.gmra.mrb[0].mxu0 %v573
        %v731 = vpop.f32.mrb[0].mxu0
        %v732 = vadd.f32 0.0, %v731
        %v733 = vpop.f32.mrb[0].mxu0
        %v734 = vpop.f32.mrb[0].mxu0
        %v735 = vadd.f32 0.0, %v734
        %v736 = vpop.f32.mrb[0].mxu0
        %737 = vmatprep.mubr.bf16.mxu0 0
        %738 = vmatmul.mubr.bf16.gmra.mrb[0].mxu0 %v574
        %v739 = vpop.f32.mrb[0].mxu0
        %v740 = vadd.f32 0.0, %v739
        %v741 = vpop.f32.mrb[0].mxu0
        %v742 = vpop.f32.mrb[0].mxu0
        %v743 = vadd.f32 0.0, %v742
        %v744 = vpop.f32.mrb[0].mxu0
        %745 = vmatprep.mubr.bf16.mxu0 0
        %746 = vmatmul.mubr.bf16.gmra.mrb[0].mxu0 %v575
        %v747 = vpop.f32.mrb[0].mxu0
        %v748 = vadd.f32 0.0, %v747
        %v749 = vpop.f32.mrb[0].mxu0
        %v750 = vpop.f32.mrb[0].mxu0
        %v751 = vadd.f32 0.0, %v750
        %v752 = vpop.f32.mrb[0].mxu0
        %753 = vmatprep.mubr.bf16.mxu0 0
        %754 = vmatmul.mubr.bf16.gmra.mrb[0].mxu0 %v576
        %v755 = vpop.f32.mrb[0].mxu0
        %v756 = vadd.f32 0.0, %v755
        %v757 = vpop.f32.mrb[0].mxu0
        %v758 = vpop.f32.mrb[0].mxu0
        %v759 = vadd.f32 0.0, %v758
        %v760 = vpop.f32.mrb[0].mxu0
        %761 = vdwg.mxu0
        %762 = vmatprep.subr.bf16.mxu0 0
        %763 = vmatpush1.bf16.msra.mxu0 %v649
        %764 = vmatprep.subr.bf16.mxu0 0
        %765 = vmatpush1.bf16.msra.mxu0 %v650
        %766 = vmatprep.subr.bf16.mxu0 0
        %767 = vmatpush1.bf16.msra.mxu0 %v651
        %768 = vmatprep.subr.bf16.mxu0 0
        %769 = vmatpush1.bf16.msra.mxu0 %v652
        %770 = vmatprep.subr.bf16.mxu0 0
        %771 = vmatpush1.bf16.msra.mxu0 %v653
        %772 = vmatprep.subr.bf16.mxu0 0
        %773 = vmatpush1.bf16.msra.mxu0 %v654
        %774 = vmatprep.subr.bf16.mxu0 0
        %775 = vmatpush1.bf16.msra.mxu0 %v655
        %776 = vmatprep.subr.bf16.mxu0 0
        %777 = vmatpush1.bf16.msra.mxu0 %v656
        %778 = vmatprep.subr.bf16.mxu0 0
        %779 = vmatpush1.bf16.msra.mxu0 0
        %780 = vmatprep.subr.bf16.mxu0 0
        %781 = vmatpush1.bf16.msra.mxu0 0
        %782 = vmatprep.subr.bf16.mxu0 0
        %783 = vmatpush1.bf16.msra.mxu0 0
        %784 = vmatprep.subr.bf16.mxu0 0
        %785 = vmatpush1.bf16.msra.mxu0 0
        %786 = vmatprep.subr.bf16.mxu0 0
        %787 = vmatpush1.bf16.msra.mxu0 0
        %788 = vmatprep.subr.bf16.mxu0 0
        %789 = vmatpush1.bf16.msra.mxu0 0
        %790 = vmatprep.subr.bf16.mxu0 0
        %791 = vmatpush1.bf16.msra.mxu0 0
        %792 = vmatprep.subr.bf16.mxu0 0
        %793 = vmatpush1.bf16.msra.mxu0 0
        %794 = vmatprep.mubr.bf16.mxu0 0
        %795 = vmatmul.mubr.bf16.gmra.mrb[0].mxu0 %v529
        %v796 = vpop.f32.mrb[0].mxu0
        %v797 = vadd.f32 %v700, %v796
        %v798 = vpop.f32.mrb[0].mxu0
        %v799 = vpop.f32.mrb[0].mxu0
        %v800 = vadd.f32 %v703, %v799
        %v801 = vpop.f32.mrb[0].mxu0
        %802 = vmatprep.mubr.bf16.mxu0 0
        %803 = vmatmul.mubr.bf16.gmra.mrb[0].mxu0 %v530
        %v804 = vpop.f32.mrb[0].mxu0
        %v805 = vadd.f32 %v708, %v804
        %v806 = vpop.f32.mrb[0].mxu0
        %v807 = vpop.f32.mrb[0].mxu0
        %v808 = vadd.f32 %v711, %v807
        %v809 = vpop.f32.mrb[0].mxu0
        %810 = vmatprep.mubr.bf16.mxu0 0
        %811 = vmatmul.mubr.bf16.gmra.mrb[0].mxu0 %v531
        %v812 = vpop.f32.mrb[0].mxu0
        %v813 = vadd.f32 %v716, %v812
        %v814 = vpop.f32.mrb[0].mxu0
        %v815 = vpop.f32.mrb[0].mxu0
        %v816 = vadd.f32 %v719, %v815
        %v817 = vpop.f32.mrb[0].mxu0
        %818 = vmatprep.mubr.bf16.mxu0 0
        %819 = vmatmul.mubr.bf16.gmra.mrb[0].mxu0 %v532
        %v820 = vpop.f32.mrb[0].mxu0
        %v821 = vadd.f32 %v724, %v820
        %v822 = vpop.f32.mrb[0].mxu0
        %v823 = vpop.f32.mrb[0].mxu0
        %v824 = vadd.f32 %v727, %v823
        %v825 = vpop.f32.mrb[0].mxu0
        %826 = vmatprep.mubr.bf16.mxu0 0
        %827 = vmatmul.mubr.bf16.gmra.mrb[0].mxu0 %v533
        %v828 = vpop.f32.mrb[0].mxu0
        %v829 = vadd.f32 %v732, %v828
        %v830 = vpop.f32.mrb[0].mxu0
        %v831 = vpop.f32.mrb[0].mxu0
        %v832 = vadd.f32 %v735, %v831
        %v833 = vpop.f32.mrb[0].mxu0
        %834 = vmatprep.mubr.bf16.mxu0 0
        %835 = vmatmul.mubr.bf16.gmra.mrb[0].mxu0 %v534
        %v836 = vpop.f32.mrb[0].mxu0
        %v837 = vadd.f32 %v740, %v836
        %v838 = vpop.f32.mrb[0].mxu0
        %v839 = vpop.f32.mrb[0].mxu0
        %v840 = vadd.f32 %v743, %v839
        %v841 = vpop.f32.mrb[0].mxu0
        %842 = vmatprep.mubr.bf16.mxu0 0
        %843 = vmatmul.mubr.bf16.gmra.mrb[0].mxu0 %v535
        %v844 = vpop.f32.mrb[0].mxu0
        %v845 = vadd.f32 %v748, %v844
        %v846 = vpop.f32.mrb[0].mxu0
        %v847 = vpop.f32.mrb[0].mxu0
        %v848 = vadd.f32 %v751, %v847
        %v849 = vpop.f32.mrb[0].mxu0
        %850 = vmatprep.mubr.bf16.mxu0 0
        %851 = vmatmul.mubr.bf16.gmra.mrb[0].mxu0 %v536
        %v852 = vpop.f32.mrb[0].mxu0
        %v853 = vadd.f32 %v756, %v852
        %v854 = vpop.f32.mrb[0].mxu0
        %v855 = vpop.f32.mrb[0].mxu0
        %v856 = vadd.f32 %v759, %v855
        %v857 = vpop.f32.mrb[0].mxu0
        %858 = vdwg.mxu0
        %859 = vmatprep.subr.bf16.mxu0 0
        %860 = vmatpush1.bf16.msra.mxu0 %v649
        %861 = vmatprep.subr.bf16.mxu0 0
        %862 = vmatpush1.bf16.msra.mxu0 %v650
        %863 = vmatprep.subr.bf16.mxu0 0
        %864 = vmatpush1.bf16.msra.mxu0 %v651
        %865 = vmatprep.subr.bf16.mxu0 0
        %866 = vmatpush1.bf16.msra.mxu0 %v652
        %867 = vmatprep.subr.bf16.mxu0 0
        %868 = vmatpush1.bf16.msra.mxu0 %v653
        %869 = vmatprep.subr.bf16.mxu0 0
        %870 = vmatpush1.bf16.msra.mxu0 %v654
        %871 = vmatprep.subr.bf16.mxu0 0
        %872 = vmatpush1.bf16.msra.mxu0 %v655
        %873 = vmatprep.subr.bf16.mxu0 0
        %874 = vmatpush1.bf16.msra.mxu0 %v656
        %875 = vmatprep.subr.bf16.mxu0 0
        %876 = vmatpush1.bf16.msra.mxu0 0
        %877 = vmatprep.subr.bf16.mxu0 0
        %878 = vmatpush1.bf16.msra.mxu0 0
        %879 = vmatprep.subr.bf16.mxu0 0
        %880 = vmatpush1.bf16.msra.mxu0 0
        %881 = vmatprep.subr.bf16.mxu0 0
        %882 = vmatpush1.bf16.msra.mxu0 0
        %883 = vmatprep.subr.bf16.mxu0 0
        %884 = vmatpush1.bf16.msra.mxu0 0
        %885 = vmatprep.subr.bf16.mxu0 0
        %886 = vmatpush1.bf16.msra.mxu0 0
        %887 = vmatprep.subr.bf16.mxu0 0
        %888 = vmatpush1.bf16.msra.mxu0 0
        %889 = vmatprep.subr.bf16.mxu0 0
        %890 = vmatpush1.bf16.msra.mxu0 0
        %891 = vmatprep.mubr.bf16.mxu0 0
        %892 = vmatmul.mubr.bf16.gmra.mrb[0].mxu0 %v609
        %v893 = vpop.f32.mrb[0].mxu0
        %v894 = vadd.f32 0.0, %v893
        %v895 = vpop.f32.mrb[0].mxu0
        %v896 = vpop.f32.mrb[0].mxu0
        %v897 = vadd.f32 0.0, %v896
        %v898 = vpop.f32.mrb[0].mxu0
        %899 = vmatprep.mubr.bf16.mxu0 0
        %900 = vmatmul.mubr.bf16.gmra.mrb[0].mxu0 %v610
        %v901 = vpop.f32.mrb[0].mxu0
        %v902 = vadd.f32 0.0, %v901
        %v903 = vpop.f32.mrb[0].mxu0
        %v904 = vpop.f32.mrb[0].mxu0
        %v905 = vadd.f32 0.0, %v904
        %v906 = vpop.f32.mrb[0].mxu0
        %907 = vmatprep.mubr.bf16.mxu0 0
        %908 = vmatmul.mubr.bf16.gmra.mrb[0].mxu0 %v611
        %v909 = vpop.f32.mrb[0].mxu0
        %v910 = vadd.f32 0.0, %v909
        %v911 = vpop.f32.mrb[0].mxu0
        %v912 = vpop.f32.mrb[0].mxu0
        %v913 = vadd.f32 0.0, %v912
        %v914 = vpop.f32.mrb[0].mxu0
        %915 = vmatprep.mubr.bf16.mxu0 0
        %916 = vmatmul.mubr.bf16.gmra.mrb[0].mxu0 %v612
        %v917 = vpop.f32.mrb[0].mxu0
        %v918 = vadd.f32 0.0, %v917
        %v919 = vpop.f32.mrb[0].mxu0
        %v920 = vpop.f32.mrb[0].mxu0
        %v921 = vadd.f32 0.0, %v920
        %v922 = vpop.f32.mrb[0].mxu0
        %923 = vmatprep.mubr.bf16.mxu0 0
        %924 = vmatmul.mubr.bf16.gmra.mrb[0].mxu0 %v613
        %v925 = vpop.f32.mrb[0].mxu0
        %v926 = vadd.f32 0.0, %v925
        %v927 = vpop.f32.mrb[0].mxu0
        %v928 = vpop.f32.mrb[0].mxu0
        %v929 = vadd.f32 0.0, %v928
        %v930 = vpop.f32.mrb[0].mxu0
        %931 = vmatprep.mubr.bf16.mxu0 0
        %932 = vmatmul.mubr.bf16.gmra.mrb[0].mxu0 %v614
        %v933 = vpop.f32.mrb[0].mxu0
        %v934 = vadd.f32 0.0, %v933
        %v935 = vpop.f32.mrb[0].mxu0
        %v936 = vpop.f32.mrb[0].mxu0
        %v937 = vadd.f32 0.0, %v936
        %v938 = vpop.f32.mrb[0].mxu0
        %939 = vmatprep.mubr.bf16.mxu0 0
        %940 = vmatmul.mubr.bf16.gmra.mrb[0].mxu0 %v615
        %v941 = vpop.f32.mrb[0].mxu0
        %v942 = vadd.f32 0.0, %v941
        %v943 = vpop.f32.mrb[0].mxu0
        %v944 = vpop.f32.mrb[0].mxu0
        %v945 = vadd.f32 0.0, %v944
        %v946 = vpop.f32.mrb[0].mxu0
        %947 = vmatprep.mubr.bf16.mxu0 0
        %948 = vmatmul.mubr.bf16.gmra.mrb[0].mxu0 %v616
        %v949 = vpop.f32.mrb[0].mxu0
        %v950 = vadd.f32 0.0, %v949
        %v951 = vpop.f32.mrb[0].mxu0
        %v952 = vpop.f32.mrb[0].mxu0
        %v953 = vadd.f32 0.0, %v952
        %v954 = vpop.f32.mrb[0].mxu0
        %955 = vdwg.mxu0
        %v956 = vadd.f32 %v797, %v894
        %v957 = vadd.f32 %v800, %v897
        %v958 = vadd.f32 %v805, %v902
        %v959 = vadd.f32 %v808, %v905
        %v960 = vadd.f32 %v813, %v910
        %v961 = vadd.f32 %v816, %v913
        %v962 = vadd.f32 %v821, %v918
        %v963 = vadd.f32 %v824, %v921
        %v964 = vadd.f32 %v829, %v926
        %v965 = vadd.f32 %v832, %v929
        %v966 = vadd.f32 %v837, %v934
        %v967 = vadd.f32 %v840, %v937
        %v968 = vadd.f32 %v845, %v942
        %v969 = vadd.f32 %v848, %v945
        %v970 = vadd.f32 %v853, %v950
        %v971 = vadd.f32 %v856, %v953
        %s972 = scalar_lea.vmem %s197, 512
        %v973 = vld [vmem:[%s972] sm:$0xff]
        %v974 = vld [vmem:[%s972 + $0x8] sm:$0xff]
        %v975 = vld [vmem:[%s972 + $0x10] sm:$0xff]
        %v976 = vld [vmem:[%s972 + $0x18] sm:$0xff]
        %v977 = vld [vmem:[%s972 + $0x20] sm:$0xff]
        %v978 = vld [vmem:[%s972 + $0x28] sm:$0xff]
        %v979 = vld [vmem:[%s972 + $0x30] sm:$0xff]
        %v980 = vld [vmem:[%s972 + $0x38] sm:$0xff]
        %v981 = vld [vmem:[%s972 + $0x40] sm:$0xff]
        %v982 = vld [vmem:[%s972 + $0x48] sm:$0xff]
        %v983 = vld [vmem:[%s972 + $0x50] sm:$0xff]
        %v984 = vld [vmem:[%s972 + $0x58] sm:$0xff]
        %v985 = vld [vmem:[%s972 + $0x60] sm:$0xff]
        %v986 = vld [vmem:[%s972 + $0x68] sm:$0xff]
        %v987 = vld [vmem:[%s972 + $0x70] sm:$0xff]
        %v988 = vld [vmem:[%s972 + $0x78] sm:$0xff]
        %s989 = scalar_lea.vmem %s197, 640
        %v990 = vld [vmem:[%s989] sm:$0xff]
        %v991 = vld [vmem:[%s989 + $0x8] sm:$0xff]
        %v992 = vld [vmem:[%s989 + $0x10] sm:$0xff]
        %v993 = vld [vmem:[%s989 + $0x18] sm:$0xff]
        %v994 = vld [vmem:[%s989 + $0x20] sm:$0xff]
        %v995 = vld [vmem:[%s989 + $0x28] sm:$0xff]
        %v996 = vld [vmem:[%s989 + $0x30] sm:$0xff]
        %v997 = vld [vmem:[%s989 + $0x38] sm:$0xff]
        %v998 = vld [vmem:[%s989 + $0x40] sm:$0xff]
        %v999 = vld [vmem:[%s989 + $0x48] sm:$0xff]
        %v1000 = vld [vmem:[%s989 + $0x50] sm:$0xff]
        %v1001 = vld [vmem:[%s989 + $0x58] sm:$0xff]
        %v1002 = vld [vmem:[%s989 + $0x60] sm:$0xff]
        %v1003 = vld [vmem:[%s989 + $0x68] sm:$0xff]
        %v1004 = vld [vmem:[%s989 + $0x70] sm:$0xff]
        %v1005 = vld [vmem:[%s989 + $0x78] sm:$0xff]
        %s1006 = scalar_lea.vmem %s197, 768
        %v1007 = vld [vmem:[%s1006] sm:$0xff]
        %v1008 = vld [vmem:[%s1006 + $0x8] sm:$0xff]
        %v1009 = vld [vmem:[%s1006 + $0x10] sm:$0xff]
        %v1010 = vld [vmem:[%s1006 + $0x18] sm:$0xff]
        %v1011 = vld [vmem:[%s1006 + $0x20] sm:$0xff]
        %v1012 = vld [vmem:[%s1006 + $0x28] sm:$0xff]
        %v1013 = vld [vmem:[%s1006 + $0x30] sm:$0xff]
        %v1014 = vld [vmem:[%s1006 + $0x38] sm:$0xff]
        %v1015 = vld [vmem:[%s1006 + $0x40] sm:$0xff]
        %v1016 = vld [vmem:[%s1006 + $0x48] sm:$0xff]
        %v1017 = vld [vmem:[%s1006 + $0x50] sm:$0xff]
        %v1018 = vld [vmem:[%s1006 + $0x58] sm:$0xff]
        %v1019 = vld [vmem:[%s1006 + $0x60] sm:$0xff]
        %v1020 = vld [vmem:[%s1006 + $0x68] sm:$0xff]
        %v1021 = vld [vmem:[%s1006 + $0x70] sm:$0xff]
        %v1022 = vld [vmem:[%s1006 + $0x78] sm:$0xff]
        %s1023 = scalar_lea.vmem %s197, 896
        %v1024 = vld [vmem:[%s1023] sm:$0xff]
        %v1025 = vld [vmem:[%s1023 + $0x8] sm:$0xff]
        %v1026 = vld [vmem:[%s1023 + $0x10] sm:$0xff]
        %v1027 = vld [vmem:[%s1023 + $0x18] sm:$0xff]
        %v1028 = vld [vmem:[%s1023 + $0x20] sm:$0xff]
        %v1029 = vld [vmem:[%s1023 + $0x28] sm:$0xff]
        %v1030 = vld [vmem:[%s1023 + $0x30] sm:$0xff]
        %v1031 = vld [vmem:[%s1023 + $0x38] sm:$0xff]
        %v1032 = vld [vmem:[%s1023 + $0x40] sm:$0xff]
        %v1033 = vld [vmem:[%s1023 + $0x48] sm:$0xff]
        %v1034 = vld [vmem:[%s1023 + $0x50] sm:$0xff]
        %v1035 = vld [vmem:[%s1023 + $0x58] sm:$0xff]
        %v1036 = vld [vmem:[%s1023 + $0x60] sm:$0xff]
        %v1037 = vld [vmem:[%s1023 + $0x68] sm:$0xff]
        %v1038 = vld [vmem:[%s1023 + $0x70] sm:$0xff]
        %v1039 = vld [vmem:[%s1023 + $0x78] sm:$0xff]
        %1056 = vrot.lane.b32.xlu0 %v990, 32
        %v1057 = vpop.permute.xlu0 %1056
        %1058 = vrot.lane.b32.xlu0 %v991, 32
        %v1059 = vpop.permute.xlu0 %1058
        %1060 = vrot.lane.b32.xlu0 %v992, 32
        %v1061 = vpop.permute.xlu0 %1060
        %1062 = vrot.lane.b32.xlu0 %v993, 32
        %v1063 = vpop.permute.xlu0 %1062
        %1064 = vrot.lane.b32.xlu0 %v994, 32
        %v1065 = vpop.permute.xlu0 %1064
        %1066 = vrot.lane.b32.xlu0 %v995, 32
        %v1067 = vpop.permute.xlu0 %1066
        %1068 = vrot.lane.b32.xlu0 %v996, 32
        %v1069 = vpop.permute.xlu0 %1068
        %1070 = vrot.lane.b32.xlu0 %v997, 32
        %v1071 = vpop.permute.xlu0 %1070
        %1072 = vrot.lane.b32.xlu0 %v998, 32
        %v1073 = vpop.permute.xlu0 %1072
        %1074 = vrot.lane.b32.xlu0 %v999, 32
        %v1075 = vpop.permute.xlu0 %1074
        %1076 = vrot.lane.b32.xlu0 %v1000, 32
        %v1077 = vpop.permute.xlu0 %1076
        %1078 = vrot.lane.b32.xlu0 %v1001, 32
        %v1079 = vpop.permute.xlu0 %1078
        %1080 = vrot.lane.b32.xlu0 %v1002, 32
        %v1081 = vpop.permute.xlu0 %1080
        %1082 = vrot.lane.b32.xlu0 %v1003, 32
        %v1083 = vpop.permute.xlu0 %1082
        %1084 = vrot.lane.b32.xlu0 %v1004, 32
        %v1085 = vpop.permute.xlu0 %1084
        %1086 = vrot.lane.b32.xlu0 %v1005, 32
        %v1087 = vpop.permute.xlu0 %1086
        %1120 = vrot.lane.b32.xlu0 %v1007, 64
        %v1121 = vpop.permute.xlu0 %1120
        %1122 = vrot.lane.b32.xlu0 %v1008, 64
        %v1123 = vpop.permute.xlu0 %1122
        %1124 = vrot.lane.b32.xlu0 %v1009, 64
        %v1125 = vpop.permute.xlu0 %1124
        %1126 = vrot.lane.b32.xlu0 %v1010, 64
        %v1127 = vpop.permute.xlu0 %1126
        %1128 = vrot.lane.b32.xlu0 %v1011, 64
        %v1129 = vpop.permute.xlu0 %1128
        %1130 = vrot.lane.b32.xlu0 %v1012, 64
        %v1131 = vpop.permute.xlu0 %1130
        %1132 = vrot.lane.b32.xlu0 %v1013, 64
        %v1133 = vpop.permute.xlu0 %1132
        %1134 = vrot.lane.b32.xlu0 %v1014, 64
        %v1135 = vpop.permute.xlu0 %1134
        %1136 = vrot.lane.b32.xlu0 %v1015, 64
        %v1137 = vpop.permute.xlu0 %1136
        %1138 = vrot.lane.b32.xlu0 %v1016, 64
        %v1139 = vpop.permute.xlu0 %1138
        %1140 = vrot.lane.b32.xlu0 %v1017, 64
        %v1141 = vpop.permute.xlu0 %1140
        %1142 = vrot.lane.b32.xlu0 %v1018, 64
        %v1143 = vpop.permute.xlu0 %1142
        %1144 = vrot.lane.b32.xlu0 %v1019, 64
        %v1145 = vpop.permute.xlu0 %1144
        %1146 = vrot.lane.b32.xlu0 %v1020, 64
        %v1147 = vpop.permute.xlu0 %1146
        %1148 = vrot.lane.b32.xlu0 %v1021, 64
        %v1149 = vpop.permute.xlu0 %1148
        %1150 = vrot.lane.b32.xlu0 %v1022, 64
        %v1151 = vpop.permute.xlu0 %1150
        %1184 = vrot.lane.b32.xlu0 %v1024, 96
        %v1185 = vpop.permute.xlu0 %1184
        %1186 = vrot.lane.b32.xlu0 %v1025, 96
        %v1187 = vpop.permute.xlu0 %1186
        %1188 = vrot.lane.b32.xlu0 %v1026, 96
        %v1189 = vpop.permute.xlu0 %1188
        %1190 = vrot.lane.b32.xlu0 %v1027, 96
        %v1191 = vpop.permute.xlu0 %1190
        %1192 = vrot.lane.b32.xlu0 %v1028, 96
        %v1193 = vpop.permute.xlu0 %1192
        %1194 = vrot.lane.b32.xlu0 %v1029, 96
        %v1195 = vpop.permute.xlu0 %1194
        %1196 = vrot.lane.b32.xlu0 %v1030, 96
        %v1197 = vpop.permute.xlu0 %1196
        %1198 = vrot.lane.b32.xlu0 %v1031, 96
        %v1199 = vpop.permute.xlu0 %1198
        %1200 = vrot.lane.b32.xlu0 %v1032, 96
        %v1201 = vpop.permute.xlu0 %1200
        %1202 = vrot.lane.b32.xlu0 %v1033, 96
        %v1203 = vpop.permute.xlu0 %1202
        %1204 = vrot.lane.b32.xlu0 %v1034, 96
        %v1205 = vpop.permute.xlu0 %1204
        %1206 = vrot.lane.b32.xlu0 %v1035, 96
        %v1207 = vpop.permute.xlu0 %1206
        %1208 = vrot.lane.b32.xlu0 %v1036, 96
        %v1209 = vpop.permute.xlu0 %1208
        %1210 = vrot.lane.b32.xlu0 %v1037, 96
        %v1211 = vpop.permute.xlu0 %1210
        %1212 = vrot.lane.b32.xlu0 %v1038, 96
        %v1213 = vpop.permute.xlu0 %1212
        %1214 = vrot.lane.b32.xlu0 %v1039, 96
        %v1215 = vpop.permute.xlu0 %1214
        %v1232 = vsel %vm478, %v973, %v1057
        %v1233 = vsel %vm478, %v974, %v1059
        %v1234 = vsel %vm478, %v975, %v1061
        %v1235 = vsel %vm478, %v976, %v1063
        %v1236 = vsel %vm478, %v977, %v1065
        %v1237 = vsel %vm478, %v978, %v1067
        %v1238 = vsel %vm478, %v979, %v1069
        %v1239 = vsel %vm478, %v980, %v1071
        %v1240 = vsel %vm478, %v981, %v1073
        %v1241 = vsel %vm478, %v982, %v1075
        %v1242 = vsel %vm478, %v983, %v1077
        %v1243 = vsel %vm478, %v984, %v1079
        %v1244 = vsel %vm478, %v985, %v1081
        %v1245 = vsel %vm478, %v986, %v1083
        %v1246 = vsel %vm478, %v987, %v1085
        %v1247 = vsel %vm478, %v988, %v1087
        %v1248 = vsel %vm495, %v1232, %v1121
        %v1249 = vsel %vm495, %v1233, %v1123
        %v1250 = vsel %vm495, %v1234, %v1125
        %v1251 = vsel %vm495, %v1235, %v1127
        %v1252 = vsel %vm495, %v1236, %v1129
        %v1253 = vsel %vm495, %v1237, %v1131
        %v1254 = vsel %vm495, %v1238, %v1133
        %v1255 = vsel %vm495, %v1239, %v1135
        %v1256 = vsel %vm495, %v1240, %v1137
        %v1257 = vsel %vm495, %v1241, %v1139
        %v1258 = vsel %vm495, %v1242, %v1141
        %v1259 = vsel %vm495, %v1243, %v1143
        %v1260 = vsel %vm495, %v1244, %v1145
        %v1261 = vsel %vm495, %v1245, %v1147
        %v1262 = vsel %vm495, %v1246, %v1149
        %v1263 = vsel %vm495, %v1247, %v1151
        %v1264 = vsel %vm512, %v1248, %v1185
        %v1265 = vsel %vm512, %v1249, %v1187
        %v1266 = vsel %vm512, %v1250, %v1189
        %v1267 = vsel %vm512, %v1251, %v1191
        %v1268 = vsel %vm512, %v1252, %v1193
        %v1269 = vsel %vm512, %v1253, %v1195
        %v1270 = vsel %vm512, %v1254, %v1197
        %v1271 = vsel %vm512, %v1255, %v1199
        %v1272 = vsel %vm512, %v1256, %v1201
        %v1273 = vsel %vm512, %v1257, %v1203
        %v1274 = vsel %vm512, %v1258, %v1205
        %v1275 = vsel %vm512, %v1259, %v1207
        %v1276 = vsel %vm512, %v1260, %v1209
        %v1277 = vsel %vm512, %v1261, %v1211
        %v1278 = vsel %vm512, %v1262, %v1213
        %v1279 = vsel %vm512, %v1263, %v1215
        %v1280 = vpack.c.bf16 %v1265, %v1264
        %v1281 = vpack.c.bf16 %v1267, %v1266
        %v1282 = vpack.c.bf16 %v1269, %v1268
        %v1283 = vpack.c.bf16 %v1271, %v1270
        %v1284 = vpack.c.bf16 %v1273, %v1272
        %v1285 = vpack.c.bf16 %v1275, %v1274
        %v1286 = vpack.c.bf16 %v1277, %v1276
        %v1287 = vpack.c.bf16 %v1279, %v1278
        %v1288 = vunpack.c.l.bf16 %v1280
        %v1289 = vunpack.c.h.bf16 %v1280
        %v1290 = vunpack.c.l.bf16 %v1281
        %v1291 = vunpack.c.h.bf16 %v1281
        %v1292 = vunpack.c.l.bf16 %v1282
        %v1293 = vunpack.c.h.bf16 %v1282
        %v1294 = vunpack.c.l.bf16 %v1283
        %v1295 = vunpack.c.h.bf16 %v1283
        %v1296 = vunpack.c.l.bf16 %v1284
        %v1297 = vunpack.c.h.bf16 %v1284
        %v1298 = vunpack.c.l.bf16 %v1285
        %v1299 = vunpack.c.h.bf16 %v1285
        %v1300 = vunpack.c.l.bf16 %v1286
        %v1301 = vunpack.c.h.bf16 %v1286
        %v1302 = vunpack.c.l.bf16 %v1287
        %v1303 = vunpack.c.h.bf16 %v1287
        %v1304 = vsub.f32 %v1264, %v1288
        %v1305 = vsub.f32 %v1265, %v1289
        %v1306 = vsub.f32 %v1266, %v1290
        %v1307 = vsub.f32 %v1267, %v1291
        %v1308 = vsub.f32 %v1268, %v1292
        %v1309 = vsub.f32 %v1269, %v1293
        %v1310 = vsub.f32 %v1270, %v1294
        %v1311 = vsub.f32 %v1271, %v1295
        %v1312 = vsub.f32 %v1272, %v1296
        %v1313 = vsub.f32 %v1273, %v1297
        %v1314 = vsub.f32 %v1274, %v1298
        %v1315 = vsub.f32 %v1275, %v1299
        %v1316 = vsub.f32 %v1276, %v1300
        %v1317 = vsub.f32 %v1277, %v1301
        %v1318 = vsub.f32 %v1278, %v1302
        %v1319 = vsub.f32 %v1279, %v1303
        %v1320 = vpack.c.bf16 %v1305, %v1304
        %v1321 = vpack.c.bf16 %v1307, %v1306
        %v1322 = vpack.c.bf16 %v1309, %v1308
        %v1323 = vpack.c.bf16 %v1311, %v1310
        %v1324 = vpack.c.bf16 %v1313, %v1312
        %v1325 = vpack.c.bf16 %v1315, %v1314
        %v1326 = vpack.c.bf16 %v1317, %v1316
        %v1327 = vpack.c.bf16 %v1319, %v1318
        %v1328 = vunpack.c.l.bf16 %v1320
        %v1329 = vunpack.c.h.bf16 %v1320
        %v1330 = vunpack.c.l.bf16 %v1321
        %v1331 = vunpack.c.h.bf16 %v1321
        %v1332 = vunpack.c.l.bf16 %v1322
        %v1333 = vunpack.c.h.bf16 %v1322
        %v1334 = vunpack.c.l.bf16 %v1323
        %v1335 = vunpack.c.h.bf16 %v1323
        %v1336 = vunpack.c.l.bf16 %v1324
        %v1337 = vunpack.c.h.bf16 %v1324
        %v1338 = vunpack.c.l.bf16 %v1325
        %v1339 = vunpack.c.h.bf16 %v1325
        %v1340 = vunpack.c.l.bf16 %v1326
        %v1341 = vunpack.c.h.bf16 %v1326
        %v1342 = vunpack.c.l.bf16 %v1327
        %v1343 = vunpack.c.h.bf16 %v1327
        %v1344 = vsub.f32 %v1304, %v1328
        %v1345 = vsub.f32 %v1305, %v1329
        %v1346 = vsub.f32 %v1306, %v1330
        %v1347 = vsub.f32 %v1307, %v1331
        %v1348 = vsub.f32 %v1308, %v1332
        %v1349 = vsub.f32 %v1309, %v1333
        %v1350 = vsub.f32 %v1310, %v1334
        %v1351 = vsub.f32 %v1311, %v1335
        %v1352 = vsub.f32 %v1312, %v1336
        %v1353 = vsub.f32 %v1313, %v1337
        %v1354 = vsub.f32 %v1314, %v1338
        %v1355 = vsub.f32 %v1315, %v1339
        %v1356 = vsub.f32 %v1316, %v1340
        %v1357 = vsub.f32 %v1317, %v1341
        %v1358 = vsub.f32 %v1318, %v1342
        %v1359 = vsub.f32 %v1319, %v1343
        %v1360 = vpack.c.bf16 %v1345, %v1344
        %v1361 = vpack.c.bf16 %v1347, %v1346
        %v1362 = vpack.c.bf16 %v1349, %v1348
        %v1363 = vpack.c.bf16 %v1351, %v1350
        %v1364 = vpack.c.bf16 %v1353, %v1352
        %v1365 = vpack.c.bf16 %v1355, %v1354
        %v1366 = vpack.c.bf16 %v1357, %v1356
        %v1367 = vpack.c.bf16 %v1359, %v1358
        %1368 = vmatprep.subr.bf16.mxu0 0
        %1369 = vmatpush1.bf16.msra.mxu0 %v649
        %1370 = vmatprep.subr.bf16.mxu0 0
        %1371 = vmatpush1.bf16.msra.mxu0 %v650
        %1372 = vmatprep.subr.bf16.mxu0 0
        %1373 = vmatpush1.bf16.msra.mxu0 %v651
        %1374 = vmatprep.subr.bf16.mxu0 0
        %1375 = vmatpush1.bf16.msra.mxu0 %v652
        %1376 = vmatprep.subr.bf16.mxu0 0
        %1377 = vmatpush1.bf16.msra.mxu0 %v653
        %1378 = vmatprep.subr.bf16.mxu0 0
        %1379 = vmatpush1.bf16.msra.mxu0 %v654
        %1380 = vmatprep.subr.bf16.mxu0 0
        %1381 = vmatpush1.bf16.msra.mxu0 %v655
        %1382 = vmatprep.subr.bf16.mxu0 0
        %1383 = vmatpush1.bf16.msra.mxu0 %v656
        %1384 = vmatprep.subr.bf16.mxu0 0
        %1385 = vmatpush1.bf16.msra.mxu0 0
        %1386 = vmatprep.subr.bf16.mxu0 0
        %1387 = vmatpush1.bf16.msra.mxu0 0
        %1388 = vmatprep.subr.bf16.mxu0 0
        %1389 = vmatpush1.bf16.msra.mxu0 0
        %1390 = vmatprep.subr.bf16.mxu0 0
        %1391 = vmatpush1.bf16.msra.mxu0 0
        %1392 = vmatprep.subr.bf16.mxu0 0
        %1393 = vmatpush1.bf16.msra.mxu0 0
        %1394 = vmatprep.subr.bf16.mxu0 0
        %1395 = vmatpush1.bf16.msra.mxu0 0
        %1396 = vmatprep.subr.bf16.mxu0 0
        %1397 = vmatpush1.bf16.msra.mxu0 0
        %1398 = vmatprep.subr.bf16.mxu0 0
        %1399 = vmatpush1.bf16.msra.mxu0 0
        %1400 = vmatprep.mubr.bf16.mxu0 0
        %1401 = vmatmul.mubr.bf16.gmra.mrb[0].mxu0 %v1320
        %v1402 = vpop.f32.mrb[0].mxu0
        %v1403 = vadd.f32 0.0, %v1402
        %v1404 = vpop.f32.mrb[0].mxu0
        %v1405 = vpop.f32.mrb[0].mxu0
        %v1406 = vadd.f32 0.0, %v1405
        %v1407 = vpop.f32.mrb[0].mxu0
        %1408 = vmatprep.mubr.bf16.mxu0 0
        %1409 = vmatmul.mubr.bf16.gmra.mrb[0].mxu0 %v1321
        %v1410 = vpop.f32.mrb[0].mxu0
        %v1411 = vadd.f32 0.0, %v1410
        %v1412 = vpop.f32.mrb[0].mxu0
        %v1413 = vpop.f32.mrb[0].mxu0
        %v1414 = vadd.f32 0.0, %v1413
        %v1415 = vpop.f32.mrb[0].mxu0
        %1416 = vmatprep.mubr.bf16.mxu0 0
        %1417 = vmatmul.mubr.bf16.gmra.mrb[0].mxu0 %v1322
        %v1418 = vpop.f32.mrb[0].mxu0
        %v1419 = vadd.f32 0.0, %v1418
        %v1420 = vpop.f32.mrb[0].mxu0
        %v1421 = vpop.f32.mrb[0].mxu0
        %v1422 = vadd.f32 0.0, %v1421
        %v1423 = vpop.f32.mrb[0].mxu0
        %1424 = vmatprep.mubr.bf16.mxu0 0
        %1425 = vmatmul.mubr.bf16.gmra.mrb[0].mxu0 %v1323
        %v1426 = vpop.f32.mrb[0].mxu0
        %v1427 = vadd.f32 0.0, %v1426
        %v1428 = vpop.f32.mrb[0].mxu0
        %v1429 = vpop.f32.mrb[0].mxu0
        %v1430 = vadd.f32 0.0, %v1429
        %v1431 = vpop.f32.mrb[0].mxu0
        %1432 = vmatprep.mubr.bf16.mxu0 0
        %1433 = vmatmul.mubr.bf16.gmra.mrb[0].mxu0 %v1324
        %v1434 = vpop.f32.mrb[0].mxu0
        %v1435 = vadd.f32 0.0, %v1434
        %v1436 = vpop.f32.mrb[0].mxu0
        %v1437 = vpop.f32.mrb[0].mxu0
        %v1438 = vadd.f32 0.0, %v1437
        %v1439 = vpop.f32.mrb[0].mxu0
        %1440 = vmatprep.mubr.bf16.mxu0 0
        %1441 = vmatmul.mubr.bf16.gmra.mrb[0].mxu0 %v1325
        %v1442 = vpop.f32.mrb[0].mxu0
        %v1443 = vadd.f32 0.0, %v1442
        %v1444 = vpop.f32.mrb[0].mxu0
        %v1445 = vpop.f32.mrb[0].mxu0
        %v1446 = vadd.f32 0.0, %v1445
        %v1447 = vpop.f32.mrb[0].mxu0
        %1448 = vmatprep.mubr.bf16.mxu0 0
        %1449 = vmatmul.mubr.bf16.gmra.mrb[0].mxu0 %v1326
        %v1450 = vpop.f32.mrb[0].mxu0
        %v1451 = vadd.f32 0.0, %v1450
        %v1452 = vpop.f32.mrb[0].mxu0
        %v1453 = vpop.f32.mrb[0].mxu0
        %v1454 = vadd.f32 0.0, %v1453
        %v1455 = vpop.f32.mrb[0].mxu0
        %1456 = vmatprep.mubr.bf16.mxu0 0
        %1457 = vmatmul.mubr.bf16.gmra.mrb[0].mxu0 %v1327
        %v1458 = vpop.f32.mrb[0].mxu0
        %v1459 = vadd.f32 0.0, %v1458
        %v1460 = vpop.f32.mrb[0].mxu0
        %v1461 = vpop.f32.mrb[0].mxu0
        %v1462 = vadd.f32 0.0, %v1461
        %v1463 = vpop.f32.mrb[0].mxu0
        %1464 = vdwg.mxu0
        %1465 = vmatprep.subr.bf16.mxu0 0
        %1466 = vmatpush1.bf16.msra.mxu0 %v649
        %1467 = vmatprep.subr.bf16.mxu0 0
        %1468 = vmatpush1.bf16.msra.mxu0 %v650
        %1469 = vmatprep.subr.bf16.mxu0 0
        %1470 = vmatpush1.bf16.msra.mxu0 %v651
        %1471 = vmatprep.subr.bf16.mxu0 0
        %1472 = vmatpush1.bf16.msra.mxu0 %v652
        %1473 = vmatprep.subr.bf16.mxu0 0
        %1474 = vmatpush1.bf16.msra.mxu0 %v653
        %1475 = vmatprep.subr.bf16.mxu0 0
        %1476 = vmatpush1.bf16.msra.mxu0 %v654
        %1477 = vmatprep.subr.bf16.mxu0 0
        %1478 = vmatpush1.bf16.msra.mxu0 %v655
        %1479 = vmatprep.subr.bf16.mxu0 0
        %1480 = vmatpush1.bf16.msra.mxu0 %v656
        %1481 = vmatprep.subr.bf16.mxu0 0
        %1482 = vmatpush1.bf16.msra.mxu0 0
        %1483 = vmatprep.subr.bf16.mxu0 0
        %1484 = vmatpush1.bf16.msra.mxu0 0
        %1485 = vmatprep.subr.bf16.mxu0 0
        %1486 = vmatpush1.bf16.msra.mxu0 0
        %1487 = vmatprep.subr.bf16.mxu0 0
        %1488 = vmatpush1.bf16.msra.mxu0 0
        %1489 = vmatprep.subr.bf16.mxu0 0
        %1490 = vmatpush1.bf16.msra.mxu0 0
        %1491 = vmatprep.subr.bf16.mxu0 0
        %1492 = vmatpush1.bf16.msra.mxu0 0
        %1493 = vmatprep.subr.bf16.mxu0 0
        %1494 = vmatpush1.bf16.msra.mxu0 0
        %1495 = vmatprep.subr.bf16.mxu0 0
        %1496 = vmatpush1.bf16.msra.mxu0 0
        %1497 = vmatprep.mubr.bf16.mxu0 0
        %1498 = vmatmul.mubr.bf16.gmra.mrb[0].mxu0 %v1280
        %v1499 = vpop.f32.mrb[0].mxu0
        %v1500 = vadd.f32 %v1403, %v1499
        %v1501 = vpop.f32.mrb[0].mxu0
        %v1502 = vpop.f32.mrb[0].mxu0
        %v1503 = vadd.f32 %v1406, %v1502
        %v1504 = vpop.f32.mrb[0].mxu0
        %1505 = vmatprep.mubr.bf16.mxu0 0
        %1506 = vmatmul.mubr.bf16.gmra.mrb[0].mxu0 %v1281
        %v1507 = vpop.f32.mrb[0].mxu0
        %v1508 = vadd.f32 %v1411, %v1507
        %v1509 = vpop.f32.mrb[0].mxu0
        %v1510 = vpop.f32.mrb[0].mxu0
        %v1511 = vadd.f32 %v1414, %v1510
        %v1512 = vpop.f32.mrb[0].mxu0
        %1513 = vmatprep.mubr.bf16.mxu0 0
        %1514 = vmatmul.mubr.bf16.gmra.mrb[0].mxu0 %v1282
        %v1515 = vpop.f32.mrb[0].mxu0
        %v1516 = vadd.f32 %v1419, %v1515
        %v1517 = vpop.f32.mrb[0].mxu0
        %v1518 = vpop.f32.mrb[0].mxu0
        %v1519 = vadd.f32 %v1422, %v1518
        %v1520 = vpop.f32.mrb[0].mxu0
        %1521 = vmatprep.mubr.bf16.mxu0 0
        %1522 = vmatmul.mubr.bf16.gmra.mrb[0].mxu0 %v1283
        %v1523 = vpop.f32.mrb[0].mxu0
        %v1524 = vadd.f32 %v1427, %v1523
        %v1525 = vpop.f32.mrb[0].mxu0
        %v1526 = vpop.f32.mrb[0].mxu0
        %v1527 = vadd.f32 %v1430, %v1526
        %v1528 = vpop.f32.mrb[0].mxu0
        %1529 = vmatprep.mubr.bf16.mxu0 0
        %1530 = vmatmul.mubr.bf16.gmra.mrb[0].mxu0 %v1284
        %v1531 = vpop.f32.mrb[0].mxu0
        %v1532 = vadd.f32 %v1435, %v1531
        %v1533 = vpop.f32.mrb[0].mxu0
        %v1534 = vpop.f32.mrb[0].mxu0
        %v1535 = vadd.f32 %v1438, %v1534
        %v1536 = vpop.f32.mrb[0].mxu0
        %1537 = vmatprep.mubr.bf16.mxu0 0
        %1538 = vmatmul.mubr.bf16.gmra.mrb[0].mxu0 %v1285
        %v1539 = vpop.f32.mrb[0].mxu0
        %v1540 = vadd.f32 %v1443, %v1539
        %v1541 = vpop.f32.mrb[0].mxu0
        %v1542 = vpop.f32.mrb[0].mxu0
        %v1543 = vadd.f32 %v1446, %v1542
        %v1544 = vpop.f32.mrb[0].mxu0
        %1545 = vmatprep.mubr.bf16.mxu0 0
        %1546 = vmatmul.mubr.bf16.gmra.mrb[0].mxu0 %v1286
        %v1547 = vpop.f32.mrb[0].mxu0
        %v1548 = vadd.f32 %v1451, %v1547
        %v1549 = vpop.f32.mrb[0].mxu0
        %v1550 = vpop.f32.mrb[0].mxu0
        %v1551 = vadd.f32 %v1454, %v1550
        %v1552 = vpop.f32.mrb[0].mxu0
        %1553 = vmatprep.mubr.bf16.mxu0 0
        %1554 = vmatmul.mubr.bf16.gmra.mrb[0].mxu0 %v1287
        %v1555 = vpop.f32.mrb[0].mxu0
        %v1556 = vadd.f32 %v1459, %v1555
        %v1557 = vpop.f32.mrb[0].mxu0
        %v1558 = vpop.f32.mrb[0].mxu0
        %v1559 = vadd.f32 %v1462, %v1558
        %v1560 = vpop.f32.mrb[0].mxu0
        %1561 = vdwg.mxu0
        %1562 = vmatprep.subr.bf16.mxu0 0
        %1563 = vmatpush1.bf16.msra.mxu0 %v649
        %1564 = vmatprep.subr.bf16.mxu0 0
        %1565 = vmatpush1.bf16.msra.mxu0 %v650
        %1566 = vmatprep.subr.bf16.mxu0 0
        %1567 = vmatpush1.bf16.msra.mxu0 %v651
        %1568 = vmatprep.subr.bf16.mxu0 0
        %1569 = vmatpush1.bf16.msra.mxu0 %v652
        %1570 = vmatprep.subr.bf16.mxu0 0
        %1571 = vmatpush1.bf16.msra.mxu0 %v653
        %1572 = vmatprep.subr.bf16.mxu0 0
        %1573 = vmatpush1.bf16.msra.mxu0 %v654
        %1574 = vmatprep.subr.bf16.mxu0 0
        %1575 = vmatpush1.bf16.msra.mxu0 %v655
        %1576 = vmatprep.subr.bf16.mxu0 0
        %1577 = vmatpush1.bf16.msra.mxu0 %v656
        %1578 = vmatprep.subr.bf16.mxu0 0
        %1579 = vmatpush1.bf16.msra.mxu0 0
        %1580 = vmatprep.subr.bf16.mxu0 0
        %1581 = vmatpush1.bf16.msra.mxu0 0
        %1582 = vmatprep.subr.bf16.mxu0 0
        %1583 = vmatpush1.bf16.msra.mxu0 0
        %1584 = vmatprep.subr.bf16.mxu0 0
        %1585 = vmatpush1.bf16.msra.mxu0 0
        %1586 = vmatprep.subr.bf16.mxu0 0
        %1587 = vmatpush1.bf16.msra.mxu0 0
        %1588 = vmatprep.subr.bf16.mxu0 0
        %1589 = vmatpush1.bf16.msra.mxu0 0
        %1590 = vmatprep.subr.bf16.mxu0 0
        %1591 = vmatpush1.bf16.msra.mxu0 0
        %1592 = vmatprep.subr.bf16.mxu0 0
        %1593 = vmatpush1.bf16.msra.mxu0 0
        %1594 = vmatprep.mubr.bf16.mxu0 0
        %1595 = vmatmul.mubr.bf16.gmra.mrb[0].mxu0 %v1360
        %v1596 = vpop.f32.mrb[0].mxu0
        %v1597 = vadd.f32 0.0, %v1596
        %v1598 = vpop.f32.mrb[0].mxu0
        %v1599 = vpop.f32.mrb[0].mxu0
        %v1600 = vadd.f32 0.0, %v1599
        %v1601 = vpop.f32.mrb[0].mxu0
        %1602 = vmatprep.mubr.bf16.mxu0 0
        %1603 = vmatmul.mubr.bf16.gmra.mrb[0].mxu0 %v1361
        %v1604 = vpop.f32.mrb[0].mxu0
        %v1605 = vadd.f32 0.0, %v1604
        %v1606 = vpop.f32.mrb[0].mxu0
        %v1607 = vpop.f32.mrb[0].mxu0
        %v1608 = vadd.f32 0.0, %v1607
        %v1609 = vpop.f32.mrb[0].mxu0
        %1610 = vmatprep.mubr.bf16.mxu0 0
        %1611 = vmatmul.mubr.bf16.gmra.mrb[0].mxu0 %v1362
        %v1612 = vpop.f32.mrb[0].mxu0
        %v1613 = vadd.f32 0.0, %v1612
        %v1614 = vpop.f32.mrb[0].mxu0
        %v1615 = vpop.f32.mrb[0].mxu0
        %v1616 = vadd.f32 0.0, %v1615
        %v1617 = vpop.f32.mrb[0].mxu0
        %1618 = vmatprep.mubr.bf16.mxu0 0
        %1619 = vmatmul.mubr.bf16.gmra.mrb[0].mxu0 %v1363
        %v1620 = vpop.f32.mrb[0].mxu0
        %v1621 = vadd.f32 0.0, %v1620
        %v1622 = vpop.f32.mrb[0].mxu0
        %v1623 = vpop.f32.mrb[0].mxu0
        %v1624 = vadd.f32 0.0, %v1623
        %v1625 = vpop.f32.mrb[0].mxu0
        %1626 = vmatprep.mubr.bf16.mxu0 0
        %1627 = vmatmul.mubr.bf16.gmra.mrb[0].mxu0 %v1364
        %v1628 = vpop.f32.mrb[0].mxu0
        %v1629 = vadd.f32 0.0, %v1628
        %v1630 = vpop.f32.mrb[0].mxu0
        %v1631 = vpop.f32.mrb[0].mxu0
        %v1632 = vadd.f32 0.0, %v1631
        %v1633 = vpop.f32.mrb[0].mxu0
        %1634 = vmatprep.mubr.bf16.mxu0 0
        %1635 = vmatmul.mubr.bf16.gmra.mrb[0].mxu0 %v1365
        %v1636 = vpop.f32.mrb[0].mxu0
        %v1637 = vadd.f32 0.0, %v1636
        %v1638 = vpop.f32.mrb[0].mxu0
        %v1639 = vpop.f32.mrb[0].mxu0
        %v1640 = vadd.f32 0.0, %v1639
        %v1641 = vpop.f32.mrb[0].mxu0
        %1642 = vmatprep.mubr.bf16.mxu0 0
        %1643 = vmatmul.mubr.bf16.gmra.mrb[0].mxu0 %v1366
        %v1644 = vpop.f32.mrb[0].mxu0
        %v1645 = vadd.f32 0.0, %v1644
        %v1646 = vpop.f32.mrb[0].mxu0
        %v1647 = vpop.f32.mrb[0].mxu0
        %v1648 = vadd.f32 0.0, %v1647
        %v1649 = vpop.f32.mrb[0].mxu0
        %1650 = vmatprep.mubr.bf16.mxu0 0
        %1651 = vmatmul.mubr.bf16.gmra.mrb[0].mxu0 %v1367
        %v1652 = vpop.f32.mrb[0].mxu0
        %v1653 = vadd.f32 0.0, %v1652
        %v1654 = vpop.f32.mrb[0].mxu0
        %v1655 = vpop.f32.mrb[0].mxu0
        %v1656 = vadd.f32 0.0, %v1655
        %v1657 = vpop.f32.mrb[0].mxu0
        %1658 = vdwg.mxu0
        %v1659 = vadd.f32 %v1500, %v1597
        %v1660 = vadd.f32 %v1503, %v1600
        %v1661 = vadd.f32 %v1508, %v1605
        %v1662 = vadd.f32 %v1511, %v1608
        %v1663 = vadd.f32 %v1516, %v1613
        %v1664 = vadd.f32 %v1519, %v1616
        %v1665 = vadd.f32 %v1524, %v1621
        %v1666 = vadd.f32 %v1527, %v1624
        %v1667 = vadd.f32 %v1532, %v1629
        %v1668 = vadd.f32 %v1535, %v1632
        %v1669 = vadd.f32 %v1540, %v1637
        %v1670 = vadd.f32 %v1543, %v1640
        %v1671 = vadd.f32 %v1548, %v1645
        %v1672 = vadd.f32 %v1551, %v1648
        %v1673 = vadd.f32 %v1556, %v1653
        %v1674 = vadd.f32 %v1559, %v1656
        %1675 = vst [vmem:[%s183] sm:$0xff] %v956
        %1676 = vst [vmem:[%s183 + $0x8] sm:$0xff] %v1659
        %1677 = vst [vmem:[%s183 + $0x10] sm:$0xff] %v957
        %1678 = vst [vmem:[%s183 + $0x18] sm:$0xff] %v1660
        %1679 = vst [vmem:[%s183 + $0x20] sm:$0xff] %v958
        %1680 = vst [vmem:[%s183 + $0x28] sm:$0xff] %v1661
        %1681 = vst [vmem:[%s183 + $0x30] sm:$0xff] %v959
        %1682 = vst [vmem:[%s183 + $0x38] sm:$0xff] %v1662
        %1683 = vst [vmem:[%s183 + $0x40] sm:$0xff] %v960
        %1684 = vst [vmem:[%s183 + $0x48] sm:$0xff] %v1663
        %1685 = vst [vmem:[%s183 + $0x50] sm:$0xff] %v961
        %1686 = vst [vmem:[%s183 + $0x58] sm:$0xff] %v1664
        %1687 = vst [vmem:[%s183 + $0x60] sm:$0xff] %v962
        %1688 = vst [vmem:[%s183 + $0x68] sm:$0xff] %v1665
        %1689 = vst [vmem:[%s183 + $0x70] sm:$0xff] %v963
        %1690 = vst [vmem:[%s183 + $0x78] sm:$0xff] %v1666
        %1691 = vst [vmem:[%s183 + $0x80] sm:$0xff] %v964
        %1692 = vst [vmem:[%s183 + $0x88] sm:$0xff] %v1667
        %1693 = vst [vmem:[%s183 + $0x90] sm:$0xff] %v965
        %1694 = vst [vmem:[%s183 + $0x98] sm:$0xff] %v1668
        %1695 = vst [vmem:[%s183 + $0xa0] sm:$0xff] %v966
        %1696 = vst [vmem:[%s183 + $0xa8] sm:$0xff] %v1669
        %1697 = vst [vmem:[%s183 + $0xb0] sm:$0xff] %v967
        %1698 = vst [vmem:[%s183 + $0xb8] sm:$0xff] %v1670
        %1699 = vst [vmem:[%s183 + $0xc0] sm:$0xff] %v968
        %1700 = vst [vmem:[%s183 + $0xc8] sm:$0xff] %v1671
        %1701 = vst [vmem:[%s183 + $0xd0] sm:$0xff] %v969
        %1702 = vst [vmem:[%s183 + $0xd8] sm:$0xff] %v1672
        %1703 = vst [vmem:[%s183 + $0xe0] sm:$0xff] %v970
        %1704 = vst [vmem:[%s183 + $0xe8] sm:$0xff] %v1673
        %1705 = vst [vmem:[%s183 + $0xf0] sm:$0xff] %v971
        %1706 = vst [vmem:[%s183 + $0xf8] sm:$0xff] %v1674
        %s1707 = scalar_lea.vmem %s197, 1024
        %v1708 = vld [vmem:[%s1707] sm:$0xff]
        %v1709 = vld [vmem:[%s1707 + $0x8] sm:$0xff]
        %v1710 = vld [vmem:[%s1707 + $0x10] sm:$0xff]
        %v1711 = vld [vmem:[%s1707 + $0x18] sm:$0xff]
        %v1712 = vld [vmem:[%s1707 + $0x20] sm:$0xff]
        %v1713 = vld [vmem:[%s1707 + $0x28] sm:$0xff]
        %v1714 = vld [vmem:[%s1707 + $0x30] sm:$0xff]
        %v1715 = vld [vmem:[%s1707 + $0x38] sm:$0xff]
        %v1716 = vld [vmem:[%s1707 + $0x40] sm:$0xff]
        %v1717 = vld [vmem:[%s1707 + $0x48] sm:$0xff]
        %v1718 = vld [vmem:[%s1707 + $0x50] sm:$0xff]
        %v1719 = vld [vmem:[%s1707 + $0x58] sm:$0xff]
        %v1720 = vld [vmem:[%s1707 + $0x60] sm:$0xff]
        %v1721 = vld [vmem:[%s1707 + $0x68] sm:$0xff]
        %v1722 = vld [vmem:[%s1707 + $0x70] sm:$0xff]
        %v1723 = vld [vmem:[%s1707 + $0x78] sm:$0xff]
        %s1724 = scalar_lea.vmem %s197, 1152
        %v1725 = vld [vmem:[%s1724] sm:$0xff]
        %v1726 = vld [vmem:[%s1724 + $0x8] sm:$0xff]
        %v1727 = vld [vmem:[%s1724 + $0x10] sm:$0xff]
        %v1728 = vld [vmem:[%s1724 + $0x18] sm:$0xff]
        %v1729 = vld [vmem:[%s1724 + $0x20] sm:$0xff]
        %v1730 = vld [vmem:[%s1724 + $0x28] sm:$0xff]
        %v1731 = vld [vmem:[%s1724 + $0x30] sm:$0xff]
        %v1732 = vld [vmem:[%s1724 + $0x38] sm:$0xff]
        %v1733 = vld [vmem:[%s1724 + $0x40] sm:$0xff]
        %v1734 = vld [vmem:[%s1724 + $0x48] sm:$0xff]
        %v1735 = vld [vmem:[%s1724 + $0x50] sm:$0xff]
        %v1736 = vld [vmem:[%s1724 + $0x58] sm:$0xff]
        %v1737 = vld [vmem:[%s1724 + $0x60] sm:$0xff]
        %v1738 = vld [vmem:[%s1724 + $0x68] sm:$0xff]
        %v1739 = vld [vmem:[%s1724 + $0x70] sm:$0xff]
        %v1740 = vld [vmem:[%s1724 + $0x78] sm:$0xff]
        %s1741 = scalar_lea.vmem %s197, 1280
        %v1742 = vld [vmem:[%s1741] sm:$0xff]
        %v1743 = vld [vmem:[%s1741 + $0x8] sm:$0xff]
        %v1744 = vld [vmem:[%s1741 + $0x10] sm:$0xff]
        %v1745 = vld [vmem:[%s1741 + $0x18] sm:$0xff]
        %v1746 = vld [vmem:[%s1741 + $0x20] sm:$0xff]
        %v1747 = vld [vmem:[%s1741 + $0x28] sm:$0xff]
        %v1748 = vld [vmem:[%s1741 + $0x30] sm:$0xff]
        %v1749 = vld [vmem:[%s1741 + $0x38] sm:$0xff]
        %v1750 = vld [vmem:[%s1741 + $0x40] sm:$0xff]
        %v1751 = vld [vmem:[%s1741 + $0x48] sm:$0xff]
        %v1752 = vld [vmem:[%s1741 + $0x50] sm:$0xff]
        %v1753 = vld [vmem:[%s1741 + $0x58] sm:$0xff]
        %v1754 = vld [vmem:[%s1741 + $0x60] sm:$0xff]
        %v1755 = vld [vmem:[%s1741 + $0x68] sm:$0xff]
        %v1756 = vld [vmem:[%s1741 + $0x70] sm:$0xff]
        %v1757 = vld [vmem:[%s1741 + $0x78] sm:$0xff]
        %s1758 = scalar_lea.vmem %s197, 1408
        %v1759 = vld [vmem:[%s1758] sm:$0xff]
        %v1760 = vld [vmem:[%s1758 + $0x8] sm:$0xff]
        %v1761 = vld [vmem:[%s1758 + $0x10] sm:$0xff]
        %v1762 = vld [vmem:[%s1758 + $0x18] sm:$0xff]
        %v1763 = vld [vmem:[%s1758 + $0x20] sm:$0xff]
        %v1764 = vld [vmem:[%s1758 + $0x28] sm:$0xff]
        %v1765 = vld [vmem:[%s1758 + $0x30] sm:$0xff]
        %v1766 = vld [vmem:[%s1758 + $0x38] sm:$0xff]
        %v1767 = vld [vmem:[%s1758 + $0x40] sm:$0xff]
        %v1768 = vld [vmem:[%s1758 + $0x48] sm:$0xff]
        %v1769 = vld [vmem:[%s1758 + $0x50] sm:$0xff]
        %v1770 = vld [vmem:[%s1758 + $0x58] sm:$0xff]
        %v1771 = vld [vmem:[%s1758 + $0x60] sm:$0xff]
        %v1772 = vld [vmem:[%s1758 + $0x68] sm:$0xff]
        %v1773 = vld [vmem:[%s1758 + $0x70] sm:$0xff]
        %v1774 = vld [vmem:[%s1758 + $0x78] sm:$0xff]
        %1791 = vrot.lane.b32.xlu0 %v1725, 32
        %v1792 = vpop.permute.xlu0 %1791
        %1793 = vrot.lane.b32.xlu0 %v1726, 32
        %v1794 = vpop.permute.xlu0 %1793
        %1795 = vrot.lane.b32.xlu0 %v1727, 32
        %v1796 = vpop.permute.xlu0 %1795
        %1797 = vrot.lane.b32.xlu0 %v1728, 32
        %v1798 = vpop.permute.xlu0 %1797
        %1799 = vrot.lane.b32.xlu0 %v1729, 32
        %v1800 = vpop.permute.xlu0 %1799
        %1801 = vrot.lane.b32.xlu0 %v1730, 32
        %v1802 = vpop.permute.xlu0 %1801
        %1803 = vrot.lane.b32.xlu0 %v1731, 32
        %v1804 = vpop.permute.xlu0 %1803
        %1805 = vrot.lane.b32.xlu0 %v1732, 32
        %v1806 = vpop.permute.xlu0 %1805
        %1807 = vrot.lane.b32.xlu0 %v1733, 32
        %v1808 = vpop.permute.xlu0 %1807
        %1809 = vrot.lane.b32.xlu0 %v1734, 32
        %v1810 = vpop.permute.xlu0 %1809
        %1811 = vrot.lane.b32.xlu0 %v1735, 32
        %v1812 = vpop.permute.xlu0 %1811
        %1813 = vrot.lane.b32.xlu0 %v1736, 32
        %v1814 = vpop.permute.xlu0 %1813
        %1815 = vrot.lane.b32.xlu0 %v1737, 32
        %v1816 = vpop.permute.xlu0 %1815
        %1817 = vrot.lane.b32.xlu0 %v1738, 32
        %v1818 = vpop.permute.xlu0 %1817
        %1819 = vrot.lane.b32.xlu0 %v1739, 32
        %v1820 = vpop.permute.xlu0 %1819
        %1821 = vrot.lane.b32.xlu0 %v1740, 32
        %v1822 = vpop.permute.xlu0 %1821
        %1855 = vrot.lane.b32.xlu0 %v1742, 64
        %v1856 = vpop.permute.xlu0 %1855
        %1857 = vrot.lane.b32.xlu0 %v1743, 64
        %v1858 = vpop.permute.xlu0 %1857
        %1859 = vrot.lane.b32.xlu0 %v1744, 64
        %v1860 = vpop.permute.xlu0 %1859
        %1861 = vrot.lane.b32.xlu0 %v1745, 64
        %v1862 = vpop.permute.xlu0 %1861
        %1863 = vrot.lane.b32.xlu0 %v1746, 64
        %v1864 = vpop.permute.xlu0 %1863
        %1865 = vrot.lane.b32.xlu0 %v1747, 64
        %v1866 = vpop.permute.xlu0 %1865
        %1867 = vrot.lane.b32.xlu0 %v1748, 64
        %v1868 = vpop.permute.xlu0 %1867
        %1869 = vrot.lane.b32.xlu0 %v1749, 64
        %v1870 = vpop.permute.xlu0 %1869
        %1871 = vrot.lane.b32.xlu0 %v1750, 64
        %v1872 = vpop.permute.xlu0 %1871
        %1873 = vrot.lane.b32.xlu0 %v1751, 64
        %v1874 = vpop.permute.xlu0 %1873
        %1875 = vrot.lane.b32.xlu0 %v1752, 64
        %v1876 = vpop.permute.xlu0 %1875
        %1877 = vrot.lane.b32.xlu0 %v1753, 64
        %v1878 = vpop.permute.xlu0 %1877
        %1879 = vrot.lane.b32.xlu0 %v1754, 64
        %v1880 = vpop.permute.xlu0 %1879
        %1881 = vrot.lane.b32.xlu0 %v1755, 64
        %v1882 = vpop.permute.xlu0 %1881
        %1883 = vrot.lane.b32.xlu0 %v1756, 64
        %v1884 = vpop.permute.xlu0 %1883
        %1885 = vrot.lane.b32.xlu0 %v1757, 64
        %v1886 = vpop.permute.xlu0 %1885
        %1919 = vrot.lane.b32.xlu0 %v1759, 96
        %v1920 = vpop.permute.xlu0 %1919
        %1921 = vrot.lane.b32.xlu0 %v1760, 96
        %v1922 = vpop.permute.xlu0 %1921
        %1923 = vrot.lane.b32.xlu0 %v1761, 96
        %v1924 = vpop.permute.xlu0 %1923
        %1925 = vrot.lane.b32.xlu0 %v1762, 96
        %v1926 = vpop.permute.xlu0 %1925
        %1927 = vrot.lane.b32.xlu0 %v1763, 96
        %v1928 = vpop.permute.xlu0 %1927
        %1929 = vrot.lane.b32.xlu0 %v1764, 96
        %v1930 = vpop.permute.xlu0 %1929
        %1931 = vrot.lane.b32.xlu0 %v1765, 96
        %v1932 = vpop.permute.xlu0 %1931
        %1933 = vrot.lane.b32.xlu0 %v1766, 96
        %v1934 = vpop.permute.xlu0 %1933
        %1935 = vrot.lane.b32.xlu0 %v1767, 96
        %v1936 = vpop.permute.xlu0 %1935
        %1937 = vrot.lane.b32.xlu0 %v1768, 96
        %v1938 = vpop.permute.xlu0 %1937
        %1939 = vrot.lane.b32.xlu0 %v1769, 96
        %v1940 = vpop.permute.xlu0 %1939
        %1941 = vrot.lane.b32.xlu0 %v1770, 96
        %v1942 = vpop.permute.xlu0 %1941
        %1943 = vrot.lane.b32.xlu0 %v1771, 96
        %v1944 = vpop.permute.xlu0 %1943
        %1945 = vrot.lane.b32.xlu0 %v1772, 96
        %v1946 = vpop.permute.xlu0 %1945
        %1947 = vrot.lane.b32.xlu0 %v1773, 96
        %v1948 = vpop.permute.xlu0 %1947
        %1949 = vrot.lane.b32.xlu0 %v1774, 96
        %v1950 = vpop.permute.xlu0 %1949
        %v1967 = vsel %vm478, %v1708, %v1792
        %v1968 = vsel %vm478, %v1709, %v1794
        %v1969 = vsel %vm478, %v1710, %v1796
        %v1970 = vsel %vm478, %v1711, %v1798
        %v1971 = vsel %vm478, %v1712, %v1800
        %v1972 = vsel %vm478, %v1713, %v1802
        %v1973 = vsel %vm478, %v1714, %v1804
        %v1974 = vsel %vm478, %v1715, %v1806
        %v1975 = vsel %vm478, %v1716, %v1808
        %v1976 = vsel %vm478, %v1717, %v1810
        %v1977 = vsel %vm478, %v1718, %v1812
        %v1978 = vsel %vm478, %v1719, %v1814
        %v1979 = vsel %vm478, %v1720, %v1816
        %v1980 = vsel %vm478, %v1721, %v1818
        %v1981 = vsel %vm478, %v1722, %v1820
        %v1982 = vsel %vm478, %v1723, %v1822
        %v1983 = vsel %vm495, %v1967, %v1856
        %v1984 = vsel %vm495, %v1968, %v1858
        %v1985 = vsel %vm495, %v1969, %v1860
        %v1986 = vsel %vm495, %v1970, %v1862
        %v1987 = vsel %vm495, %v1971, %v1864
        %v1988 = vsel %vm495, %v1972, %v1866
        %v1989 = vsel %vm495, %v1973, %v1868
        %v1990 = vsel %vm495, %v1974, %v1870
        %v1991 = vsel %vm495, %v1975, %v1872
        %v1992 = vsel %vm495, %v1976, %v1874
        %v1993 = vsel %vm495, %v1977, %v1876
        %v1994 = vsel %vm495, %v1978, %v1878
        %v1995 = vsel %vm495, %v1979, %v1880
        %v1996 = vsel %vm495, %v1980, %v1882
        %v1997 = vsel %vm495, %v1981, %v1884
        %v1998 = vsel %vm495, %v1982, %v1886
        %v1999 = vsel %vm512, %v1983, %v1920
        %v2000 = vsel %vm512, %v1984, %v1922
        %v2001 = vsel %vm512, %v1985, %v1924
        %v2002 = vsel %vm512, %v1986, %v1926
        %v2003 = vsel %vm512, %v1987, %v1928
        %v2004 = vsel %vm512, %v1988, %v1930
        %v2005 = vsel %vm512, %v1989, %v1932
        %v2006 = vsel %vm512, %v1990, %v1934
        %v2007 = vsel %vm512, %v1991, %v1936
        %v2008 = vsel %vm512, %v1992, %v1938
        %v2009 = vsel %vm512, %v1993, %v1940
        %v2010 = vsel %vm512, %v1994, %v1942
        %v2011 = vsel %vm512, %v1995, %v1944
        %v2012 = vsel %vm512, %v1996, %v1946
        %v2013 = vsel %vm512, %v1997, %v1948
        %v2014 = vsel %vm512, %v1998, %v1950
        %v2015 = vpack.c.bf16 %v2000, %v1999
        %v2016 = vpack.c.bf16 %v2002, %v2001
        %v2017 = vpack.c.bf16 %v2004, %v2003
        %v2018 = vpack.c.bf16 %v2006, %v2005
        %v2019 = vpack.c.bf16 %v2008, %v2007
        %v2020 = vpack.c.bf16 %v2010, %v2009
        %v2021 = vpack.c.bf16 %v2012, %v2011
        %v2022 = vpack.c.bf16 %v2014, %v2013
        %v2023 = vunpack.c.l.bf16 %v2015
        %v2024 = vunpack.c.h.bf16 %v2015
        %v2025 = vunpack.c.l.bf16 %v2016
        %v2026 = vunpack.c.h.bf16 %v2016
        %v2027 = vunpack.c.l.bf16 %v2017
        %v2028 = vunpack.c.h.bf16 %v2017
        %v2029 = vunpack.c.l.bf16 %v2018
        %v2030 = vunpack.c.h.bf16 %v2018
        %v2031 = vunpack.c.l.bf16 %v2019
        %v2032 = vunpack.c.h.bf16 %v2019
        %v2033 = vunpack.c.l.bf16 %v2020
        %v2034 = vunpack.c.h.bf16 %v2020
        %v2035 = vunpack.c.l.bf16 %v2021
        %v2036 = vunpack.c.h.bf16 %v2021
        %v2037 = vunpack.c.l.bf16 %v2022
        %v2038 = vunpack.c.h.bf16 %v2022
        %v2039 = vsub.f32 %v1999, %v2023
        %v2040 = vsub.f32 %v2000, %v2024
        %v2041 = vsub.f32 %v2001, %v2025
        %v2042 = vsub.f32 %v2002, %v2026
        %v2043 = vsub.f32 %v2003, %v2027
        %v2044 = vsub.f32 %v2004, %v2028
        %v2045 = vsub.f32 %v2005, %v2029
        %v2046 = vsub.f32 %v2006, %v2030
        %v2047 = vsub.f32 %v2007, %v2031
        %v2048 = vsub.f32 %v2008, %v2032
        %v2049 = vsub.f32 %v2009, %v2033
        %v2050 = vsub.f32 %v2010, %v2034
        %v2051 = vsub.f32 %v2011, %v2035
        %v2052 = vsub.f32 %v2012, %v2036
        %v2053 = vsub.f32 %v2013, %v2037
        %v2054 = vsub.f32 %v2014, %v2038
        %v2055 = vpack.c.bf16 %v2040, %v2039
        %v2056 = vpack.c.bf16 %v2042, %v2041
        %v2057 = vpack.c.bf16 %v2044, %v2043
        %v2058 = vpack.c.bf16 %v2046, %v2045
        %v2059 = vpack.c.bf16 %v2048, %v2047
        %v2060 = vpack.c.bf16 %v2050, %v2049
        %v2061 = vpack.c.bf16 %v2052, %v2051
        %v2062 = vpack.c.bf16 %v2054, %v2053
        %v2063 = vunpack.c.l.bf16 %v2055
        %v2064 = vunpack.c.h.bf16 %v2055
        %v2065 = vunpack.c.l.bf16 %v2056
        %v2066 = vunpack.c.h.bf16 %v2056
        %v2067 = vunpack.c.l.bf16 %v2057
        %v2068 = vunpack.c.h.bf16 %v2057
        %v2069 = vunpack.c.l.bf16 %v2058
        %v2070 = vunpack.c.h.bf16 %v2058
        %v2071 = vunpack.c.l.bf16 %v2059
        %v2072 = vunpack.c.h.bf16 %v2059
        %v2073 = vunpack.c.l.bf16 %v2060
        %v2074 = vunpack.c.h.bf16 %v2060
        %v2075 = vunpack.c.l.bf16 %v2061
        %v2076 = vunpack.c.h.bf16 %v2061
        %v2077 = vunpack.c.l.bf16 %v2062
        %v2078 = vunpack.c.h.bf16 %v2062
        %v2079 = vsub.f32 %v2039, %v2063
        %v2080 = vsub.f32 %v2040, %v2064
        %v2081 = vsub.f32 %v2041, %v2065
        %v2082 = vsub.f32 %v2042, %v2066
        %v2083 = vsub.f32 %v2043, %v2067
        %v2084 = vsub.f32 %v2044, %v2068
        %v2085 = vsub.f32 %v2045, %v2069
        %v2086 = vsub.f32 %v2046, %v2070
        %v2087 = vsub.f32 %v2047, %v2071
        %v2088 = vsub.f32 %v2048, %v2072
        %v2089 = vsub.f32 %v2049, %v2073
        %v2090 = vsub.f32 %v2050, %v2074
        %v2091 = vsub.f32 %v2051, %v2075
        %v2092 = vsub.f32 %v2052, %v2076
        %v2093 = vsub.f32 %v2053, %v2077
        %v2094 = vsub.f32 %v2054, %v2078
        %v2095 = vpack.c.bf16 %v2080, %v2079
        %v2096 = vpack.c.bf16 %v2082, %v2081
        %v2097 = vpack.c.bf16 %v2084, %v2083
        %v2098 = vpack.c.bf16 %v2086, %v2085
        %v2099 = vpack.c.bf16 %v2088, %v2087
        %v2100 = vpack.c.bf16 %v2090, %v2089
        %v2101 = vpack.c.bf16 %v2092, %v2091
        %v2102 = vpack.c.bf16 %v2094, %v2093
        %2103 = vmatprep.subr.bf16.mxu0 0
        %2104 = vmatpush1.bf16.msra.mxu0 %v649
        %2105 = vmatprep.subr.bf16.mxu0 0
        %2106 = vmatpush1.bf16.msra.mxu0 %v650
        %2107 = vmatprep.subr.bf16.mxu0 0
        %2108 = vmatpush1.bf16.msra.mxu0 %v651
        %2109 = vmatprep.subr.bf16.mxu0 0
        %2110 = vmatpush1.bf16.msra.mxu0 %v652
        %2111 = vmatprep.subr.bf16.mxu0 0
        %2112 = vmatpush1.bf16.msra.mxu0 %v653
        %2113 = vmatprep.subr.bf16.mxu0 0
        %2114 = vmatpush1.bf16.msra.mxu0 %v654
        %2115 = vmatprep.subr.bf16.mxu0 0
        %2116 = vmatpush1.bf16.msra.mxu0 %v655
        %2117 = vmatprep.subr.bf16.mxu0 0
        %2118 = vmatpush1.bf16.msra.mxu0 %v656
        %2119 = vmatprep.subr.bf16.mxu0 0
        %2120 = vmatpush1.bf16.msra.mxu0 0
        %2121 = vmatprep.subr.bf16.mxu0 0
        %2122 = vmatpush1.bf16.msra.mxu0 0
        %2123 = vmatprep.subr.bf16.mxu0 0
        %2124 = vmatpush1.bf16.msra.mxu0 0
        %2125 = vmatprep.subr.bf16.mxu0 0
        %2126 = vmatpush1.bf16.msra.mxu0 0
        %2127 = vmatprep.subr.bf16.mxu0 0
        %2128 = vmatpush1.bf16.msra.mxu0 0
        %2129 = vmatprep.subr.bf16.mxu0 0
        %2130 = vmatpush1.bf16.msra.mxu0 0
        %2131 = vmatprep.subr.bf16.mxu0 0
        %2132 = vmatpush1.bf16.msra.mxu0 0
        %2133 = vmatprep.subr.bf16.mxu0 0
        %2134 = vmatpush1.bf16.msra.mxu0 0
        %2135 = vmatprep.mubr.bf16.mxu0 0
        %2136 = vmatmul.mubr.bf16.gmra.mrb[0].mxu0 %v2055
        %v2137 = vpop.f32.mrb[0].mxu0
        %v2138 = vadd.f32 0.0, %v2137
        %v2139 = vpop.f32.mrb[0].mxu0
        %v2140 = vpop.f32.mrb[0].mxu0
        %v2141 = vadd.f32 0.0, %v2140
        %v2142 = vpop.f32.mrb[0].mxu0
        %2143 = vmatprep.mubr.bf16.mxu0 0
        %2144 = vmatmul.mubr.bf16.gmra.mrb[0].mxu0 %v2056
        %v2145 = vpop.f32.mrb[0].mxu0
        %v2146 = vadd.f32 0.0, %v2145
        %v2147 = vpop.f32.mrb[0].mxu0
        %v2148 = vpop.f32.mrb[0].mxu0
        %v2149 = vadd.f32 0.0, %v2148
        %v2150 = vpop.f32.mrb[0].mxu0
        %2151 = vmatprep.mubr.bf16.mxu0 0
        %2152 = vmatmul.mubr.bf16.gmra.mrb[0].mxu0 %v2057
        %v2153 = vpop.f32.mrb[0].mxu0
        %v2154 = vadd.f32 0.0, %v2153
        %v2155 = vpop.f32.mrb[0].mxu0
        %v2156 = vpop.f32.mrb[0].mxu0
        %v2157 = vadd.f32 0.0, %v2156
        %v2158 = vpop.f32.mrb[0].mxu0
        %2159 = vmatprep.mubr.bf16.mxu0 0
        %2160 = vmatmul.mubr.bf16.gmra.mrb[0].mxu0 %v2058
        %v2161 = vpop.f32.mrb[0].mxu0
        %v2162 = vadd.f32 0.0, %v2161
        %v2163 = vpop.f32.mrb[0].mxu0
        %v2164 = vpop.f32.mrb[0].mxu0
        %v2165 = vadd.f32 0.0, %v2164
        %v2166 = vpop.f32.mrb[0].mxu0
        %2167 = vmatprep.mubr.bf16.mxu0 0
        %2168 = vmatmul.mubr.bf16.gmra.mrb[0].mxu0 %v2059
        %v2169 = vpop.f32.mrb[0].mxu0
        %v2170 = vadd.f32 0.0, %v2169
        %v2171 = vpop.f32.mrb[0].mxu0
        %v2172 = vpop.f32.mrb[0].mxu0
        %v2173 = vadd.f32 0.0, %v2172
        %v2174 = vpop.f32.mrb[0].mxu0
        %2175 = vmatprep.mubr.bf16.mxu0 0
        %2176 = vmatmul.mubr.bf16.gmra.mrb[0].mxu0 %v2060
        %v2177 = vpop.f32.mrb[0].mxu0
        %v2178 = vadd.f32 0.0, %v2177
        %v2179 = vpop.f32.mrb[0].mxu0
        %v2180 = vpop.f32.mrb[0].mxu0
        %v2181 = vadd.f32 0.0, %v2180
        %v2182 = vpop.f32.mrb[0].mxu0
        %2183 = vmatprep.mubr.bf16.mxu0 0
        %2184 = vmatmul.mubr.bf16.gmra.mrb[0].mxu0 %v2061
        %v2185 = vpop.f32.mrb[0].mxu0
        %v2186 = vadd.f32 0.0, %v2185
        %v2187 = vpop.f32.mrb[0].mxu0
        %v2188 = vpop.f32.mrb[0].mxu0
        %v2189 = vadd.f32 0.0, %v2188
        %v2190 = vpop.f32.mrb[0].mxu0
        %2191 = vmatprep.mubr.bf16.mxu0 0
        %2192 = vmatmul.mubr.bf16.gmra.mrb[0].mxu0 %v2062
        %v2193 = vpop.f32.mrb[0].mxu0
        %v2194 = vadd.f32 0.0, %v2193
        %v2195 = vpop.f32.mrb[0].mxu0
        %v2196 = vpop.f32.mrb[0].mxu0
        %v2197 = vadd.f32 0.0, %v2196
        %v2198 = vpop.f32.mrb[0].mxu0
        %2199 = vdwg.mxu0
        %2200 = vmatprep.subr.bf16.mxu0 0
        %2201 = vmatpush1.bf16.msra.mxu0 %v649
        %2202 = vmatprep.subr.bf16.mxu0 0
        %2203 = vmatpush1.bf16.msra.mxu0 %v650
        %2204 = vmatprep.subr.bf16.mxu0 0
        %2205 = vmatpush1.bf16.msra.mxu0 %v651
        %2206 = vmatprep.subr.bf16.mxu0 0
        %2207 = vmatpush1.bf16.msra.mxu0 %v652
        %2208 = vmatprep.subr.bf16.mxu0 0
        %2209 = vmatpush1.bf16.msra.mxu0 %v653
        %2210 = vmatprep.subr.bf16.mxu0 0
        %2211 = vmatpush1.bf16.msra.mxu0 %v654
        %2212 = vmatprep.subr.bf16.mxu0 0
        %2213 = vmatpush1.bf16.msra.mxu0 %v655
        %2214 = vmatprep.subr.bf16.mxu0 0
        %2215 = vmatpush1.bf16.msra.mxu0 %v656
        %2216 = vmatprep.subr.bf16.mxu0 0
        %2217 = vmatpush1.bf16.msra.mxu0 0
        %2218 = vmatprep.subr.bf16.mxu0 0
        %2219 = vmatpush1.bf16.msra.mxu0 0
        %2220 = vmatprep.subr.bf16.mxu0 0
        %2221 = vmatpush1.bf16.msra.mxu0 0
        %2222 = vmatprep.subr.bf16.mxu0 0
        %2223 = vmatpush1.bf16.msra.mxu0 0
        %2224 = vmatprep.subr.bf16.mxu0 0
        %2225 = vmatpush1.bf16.msra.mxu0 0
        %2226 = vmatprep.subr.bf16.mxu0 0
        %2227 = vmatpush1.bf16.msra.mxu0 0
        %2228 = vmatprep.subr.bf16.mxu0 0
        %2229 = vmatpush1.bf16.msra.mxu0 0
        %2230 = vmatprep.subr.bf16.mxu0 0
        %2231 = vmatpush1.bf16.msra.mxu0 0
        %2232 = vmatprep.mubr.bf16.mxu0 0
        %2233 = vmatmul.mubr.bf16.gmra.mrb[0].mxu0 %v2015
        %v2234 = vpop.f32.mrb[0].mxu0
        %v2235 = vadd.f32 %v2138, %v2234
        %v2236 = vpop.f32.mrb[0].mxu0
        %v2237 = vpop.f32.mrb[0].mxu0
        %v2238 = vadd.f32 %v2141, %v2237
        %v2239 = vpop.f32.mrb[0].mxu0
        %2240 = vmatprep.mubr.bf16.mxu0 0
        %2241 = vmatmul.mubr.bf16.gmra.mrb[0].mxu0 %v2016
        %v2242 = vpop.f32.mrb[0].mxu0
        %v2243 = vadd.f32 %v2146, %v2242
        %v2244 = vpop.f32.mrb[0].mxu0
        %v2245 = vpop.f32.mrb[0].mxu0
        %v2246 = vadd.f32 %v2149, %v2245
        %v2247 = vpop.f32.mrb[0].mxu0
        %2248 = vmatprep.mubr.bf16.mxu0 0
        %2249 = vmatmul.mubr.bf16.gmra.mrb[0].mxu0 %v2017
        %v2250 = vpop.f32.mrb[0].mxu0
        %v2251 = vadd.f32 %v2154, %v2250
        %v2252 = vpop.f32.mrb[0].mxu0
        %v2253 = vpop.f32.mrb[0].mxu0
        %v2254 = vadd.f32 %v2157, %v2253
        %v2255 = vpop.f32.mrb[0].mxu0
        %2256 = vmatprep.mubr.bf16.mxu0 0
        %2257 = vmatmul.mubr.bf16.gmra.mrb[0].mxu0 %v2018
        %v2258 = vpop.f32.mrb[0].mxu0
        %v2259 = vadd.f32 %v2162, %v2258
        %v2260 = vpop.f32.mrb[0].mxu0
        %v2261 = vpop.f32.mrb[0].mxu0
        %v2262 = vadd.f32 %v2165, %v2261
        %v2263 = vpop.f32.mrb[0].mxu0
        %2264 = vmatprep.mubr.bf16.mxu0 0
        %2265 = vmatmul.mubr.bf16.gmra.mrb[0].mxu0 %v2019
        %v2266 = vpop.f32.mrb[0].mxu0
        %v2267 = vadd.f32 %v2170, %v2266
        %v2268 = vpop.f32.mrb[0].mxu0
        %v2269 = vpop.f32.mrb[0].mxu0
        %v2270 = vadd.f32 %v2173, %v2269
        %v2271 = vpop.f32.mrb[0].mxu0
        %2272 = vmatprep.mubr.bf16.mxu0 0
        %2273 = vmatmul.mubr.bf16.gmra.mrb[0].mxu0 %v2020
        %v2274 = vpop.f32.mrb[0].mxu0
        %v2275 = vadd.f32 %v2178, %v2274
        %v2276 = vpop.f32.mrb[0].mxu0
        %v2277 = vpop.f32.mrb[0].mxu0
        %v2278 = vadd.f32 %v2181, %v2277
        %v2279 = vpop.f32.mrb[0].mxu0
        %2280 = vmatprep.mubr.bf16.mxu0 0
        %2281 = vmatmul.mubr.bf16.gmra.mrb[0].mxu0 %v2021
        %v2282 = vpop.f32.mrb[0].mxu0
        %v2283 = vadd.f32 %v2186, %v2282
        %v2284 = vpop.f32.mrb[0].mxu0
        %v2285 = vpop.f32.mrb[0].mxu0
        %v2286 = vadd.f32 %v2189, %v2285
        %v2287 = vpop.f32.mrb[0].mxu0
        %2288 = vmatprep.mubr.bf16.mxu0 0
        %2289 = vmatmul.mubr.bf16.gmra.mrb[0].mxu0 %v2022
        %v2290 = vpop.f32.mrb[0].mxu0
        %v2291 = vadd.f32 %v2194, %v2290
        %v2292 = vpop.f32.mrb[0].mxu0
        %v2293 = vpop.f32.mrb[0].mxu0
        %v2294 = vadd.f32 %v2197, %v2293
        %v2295 = vpop.f32.mrb[0].mxu0
        %2296 = vdwg.mxu0
        %2297 = vmatprep.subr.bf16.mxu0 0
        %2298 = vmatpush1.bf16.msra.mxu0 %v649
        %2299 = vmatprep.subr.bf16.mxu0 0
        %2300 = vmatpush1.bf16.msra.mxu0 %v650
        %2301 = vmatprep.subr.bf16.mxu0 0
        %2302 = vmatpush1.bf16.msra.mxu0 %v651
        %2303 = vmatprep.subr.bf16.mxu0 0
        %2304 = vmatpush1.bf16.msra.mxu0 %v652
        %2305 = vmatprep.subr.bf16.mxu0 0
        %2306 = vmatpush1.bf16.msra.mxu0 %v653
        %2307 = vmatprep.subr.bf16.mxu0 0
        %2308 = vmatpush1.bf16.msra.mxu0 %v654
        %2309 = vmatprep.subr.bf16.mxu0 0
        %2310 = vmatpush1.bf16.msra.mxu0 %v655
        %2311 = vmatprep.subr.bf16.mxu0 0
        %2312 = vmatpush1.bf16.msra.mxu0 %v656
        %2313 = vmatprep.subr.bf16.mxu0 0
        %2314 = vmatpush1.bf16.msra.mxu0 0
        %2315 = vmatprep.subr.bf16.mxu0 0
        %2316 = vmatpush1.bf16.msra.mxu0 0
        %2317 = vmatprep.subr.bf16.mxu0 0
        %2318 = vmatpush1.bf16.msra.mxu0 0
        %2319 = vmatprep.subr.bf16.mxu0 0
        %2320 = vmatpush1.bf16.msra.mxu0 0
        %2321 = vmatprep.subr.bf16.mxu0 0
        %2322 = vmatpush1.bf16.msra.mxu0 0
        %2323 = vmatprep.subr.bf16.mxu0 0
        %2324 = vmatpush1.bf16.msra.mxu0 0
        %2325 = vmatprep.subr.bf16.mxu0 0
        %2326 = vmatpush1.bf16.msra.mxu0 0
        %2327 = vmatprep.subr.bf16.mxu0 0
        %2328 = vmatpush1.bf16.msra.mxu0 0
        %2329 = vmatprep.mubr.bf16.mxu0 0
        %2330 = vmatmul.mubr.bf16.gmra.mrb[0].mxu0 %v2095
        %v2331 = vpop.f32.mrb[0].mxu0
        %v2332 = vadd.f32 0.0, %v2331
        %v2333 = vpop.f32.mrb[0].mxu0
        %v2334 = vpop.f32.mrb[0].mxu0
        %v2335 = vadd.f32 0.0, %v2334
        %v2336 = vpop.f32.mrb[0].mxu0
        %2337 = vmatprep.mubr.bf16.mxu0 0
        %2338 = vmatmul.mubr.bf16.gmra.mrb[0].mxu0 %v2096
        %v2339 = vpop.f32.mrb[0].mxu0
        %v2340 = vadd.f32 0.0, %v2339
        %v2341 = vpop.f32.mrb[0].mxu0
        %v2342 = vpop.f32.mrb[0].mxu0
        %v2343 = vadd.f32 0.0, %v2342
        %v2344 = vpop.f32.mrb[0].mxu0
        %2345 = vmatprep.mubr.bf16.mxu0 0
        %2346 = vmatmul.mubr.bf16.gmra.mrb[0].mxu0 %v2097
        %v2347 = vpop.f32.mrb[0].mxu0
        %v2348 = vadd.f32 0.0, %v2347
        %v2349 = vpop.f32.mrb[0].mxu0
        %v2350 = vpop.f32.mrb[0].mxu0
        %v2351 = vadd.f32 0.0, %v2350
        %v2352 = vpop.f32.mrb[0].mxu0
        %2353 = vmatprep.mubr.bf16.mxu0 0
        %2354 = vmatmul.mubr.bf16.gmra.mrb[0].mxu0 %v2098
        %v2355 = vpop.f32.mrb[0].mxu0
        %v2356 = vadd.f32 0.0, %v2355
        %v2357 = vpop.f32.mrb[0].mxu0
        %v2358 = vpop.f32.mrb[0].mxu0
        %v2359 = vadd.f32 0.0, %v2358
        %v2360 = vpop.f32.mrb[0].mxu0
        %2361 = vmatprep.mubr.bf16.mxu0 0
        %2362 = vmatmul.mubr.bf16.gmra.mrb[0].mxu0 %v2099
        %v2363 = vpop.f32.mrb[0].mxu0
        %v2364 = vadd.f32 0.0, %v2363
        %v2365 = vpop.f32.mrb[0].mxu0
        %v2366 = vpop.f32.mrb[0].mxu0
        %v2367 = vadd.f32 0.0, %v2366
        %v2368 = vpop.f32.mrb[0].mxu0
        %2369 = vmatprep.mubr.bf16.mxu0 0
        %2370 = vmatmul.mubr.bf16.gmra.mrb[0].mxu0 %v2100
        %v2371 = vpop.f32.mrb[0].mxu0
        %v2372 = vadd.f32 0.0, %v2371
        %v2373 = vpop.f32.mrb[0].mxu0
        %v2374 = vpop.f32.mrb[0].mxu0
        %v2375 = vadd.f32 0.0, %v2374
        %v2376 = vpop.f32.mrb[0].mxu0
        %2377 = vmatprep.mubr.bf16.mxu0 0
        %2378 = vmatmul.mubr.bf16.gmra.mrb[0].mxu0 %v2101
        %v2379 = vpop.f32.mrb[0].mxu0
        %v2380 = vadd.f32 0.0, %v2379
        %v2381 = vpop.f32.mrb[0].mxu0
        %v2382 = vpop.f32.mrb[0].mxu0
        %v2383 = vadd.f32 0.0, %v2382
        %v2384 = vpop.f32.mrb[0].mxu0
        %2385 = vmatprep.mubr.bf16.mxu0 0
        %2386 = vmatmul.mubr.bf16.gmra.mrb[0].mxu0 %v2102
        %v2387 = vpop.f32.mrb[0].mxu0
        %v2388 = vadd.f32 0.0, %v2387
        %v2389 = vpop.f32.mrb[0].mxu0
        %v2390 = vpop.f32.mrb[0].mxu0
        %v2391 = vadd.f32 0.0, %v2390
        %v2392 = vpop.f32.mrb[0].mxu0
        %2393 = vdwg.mxu0
        %v2394 = vadd.f32 %v2235, %v2332
        %v2395 = vadd.f32 %v2238, %v2335
        %v2396 = vadd.f32 %v2243, %v2340
        %v2397 = vadd.f32 %v2246, %v2343
        %v2398 = vadd.f32 %v2251, %v2348
        %v2399 = vadd.f32 %v2254, %v2351
        %v2400 = vadd.f32 %v2259, %v2356
        %v2401 = vadd.f32 %v2262, %v2359
        %v2402 = vadd.f32 %v2267, %v2364
        %v2403 = vadd.f32 %v2270, %v2367
        %v2404 = vadd.f32 %v2275, %v2372
        %v2405 = vadd.f32 %v2278, %v2375
        %v2406 = vadd.f32 %v2283, %v2380
        %v2407 = vadd.f32 %v2286, %v2383
        %v2408 = vadd.f32 %v2291, %v2388
        %v2409 = vadd.f32 %v2294, %v2391
        %s2410 = scalar_lea.vmem %s197, 1536
        %v2411 = vld [vmem:[%s2410] sm:$0xff]
        %v2412 = vld [vmem:[%s2410 + $0x8] sm:$0xff]
        %v2413 = vld [vmem:[%s2410 + $0x10] sm:$0xff]
        %v2414 = vld [vmem:[%s2410 + $0x18] sm:$0xff]
        %v2415 = vld [vmem:[%s2410 + $0x20] sm:$0xff]
        %v2416 = vld [vmem:[%s2410 + $0x28] sm:$0xff]
        %v2417 = vld [vmem:[%s2410 + $0x30] sm:$0xff]
        %v2418 = vld [vmem:[%s2410 + $0x38] sm:$0xff]
        %v2419 = vld [vmem:[%s2410 + $0x40] sm:$0xff]
        %v2420 = vld [vmem:[%s2410 + $0x48] sm:$0xff]
        %v2421 = vld [vmem:[%s2410 + $0x50] sm:$0xff]
        %v2422 = vld [vmem:[%s2410 + $0x58] sm:$0xff]
        %v2423 = vld [vmem:[%s2410 + $0x60] sm:$0xff]
        %v2424 = vld [vmem:[%s2410 + $0x68] sm:$0xff]
        %v2425 = vld [vmem:[%s2410 + $0x70] sm:$0xff]
        %v2426 = vld [vmem:[%s2410 + $0x78] sm:$0xff]
        %s2427 = scalar_lea.vmem %s197, 1664
        %v2428 = vld [vmem:[%s2427] sm:$0xff]
        %v2429 = vld [vmem:[%s2427 + $0x8] sm:$0xff]
        %v2430 = vld [vmem:[%s2427 + $0x10] sm:$0xff]
        %v2431 = vld [vmem:[%s2427 + $0x18] sm:$0xff]
        %v2432 = vld [vmem:[%s2427 + $0x20] sm:$0xff]
        %v2433 = vld [vmem:[%s2427 + $0x28] sm:$0xff]
        %v2434 = vld [vmem:[%s2427 + $0x30] sm:$0xff]
        %v2435 = vld [vmem:[%s2427 + $0x38] sm:$0xff]
        %v2436 = vld [vmem:[%s2427 + $0x40] sm:$0xff]
        %v2437 = vld [vmem:[%s2427 + $0x48] sm:$0xff]
        %v2438 = vld [vmem:[%s2427 + $0x50] sm:$0xff]
        %v2439 = vld [vmem:[%s2427 + $0x58] sm:$0xff]
        %v2440 = vld [vmem:[%s2427 + $0x60] sm:$0xff]
        %v2441 = vld [vmem:[%s2427 + $0x68] sm:$0xff]
        %v2442 = vld [vmem:[%s2427 + $0x70] sm:$0xff]
        %v2443 = vld [vmem:[%s2427 + $0x78] sm:$0xff]
        %s2444 = scalar_lea.vmem %s197, 1792
        %v2445 = vld [vmem:[%s2444] sm:$0xff]
        %v2446 = vld [vmem:[%s2444 + $0x8] sm:$0xff]
        %v2447 = vld [vmem:[%s2444 + $0x10] sm:$0xff]
        %v2448 = vld [vmem:[%s2444 + $0x18] sm:$0xff]
        %v2449 = vld [vmem:[%s2444 + $0x20] sm:$0xff]
        %v2450 = vld [vmem:[%s2444 + $0x28] sm:$0xff]
        %v2451 = vld [vmem:[%s2444 + $0x30] sm:$0xff]
        %v2452 = vld [vmem:[%s2444 + $0x38] sm:$0xff]
        %v2453 = vld [vmem:[%s2444 + $0x40] sm:$0xff]
        %v2454 = vld [vmem:[%s2444 + $0x48] sm:$0xff]
        %v2455 = vld [vmem:[%s2444 + $0x50] sm:$0xff]
        %v2456 = vld [vmem:[%s2444 + $0x58] sm:$0xff]
        %v2457 = vld [vmem:[%s2444 + $0x60] sm:$0xff]
        %v2458 = vld [vmem:[%s2444 + $0x68] sm:$0xff]
        %v2459 = vld [vmem:[%s2444 + $0x70] sm:$0xff]
        %v2460 = vld [vmem:[%s2444 + $0x78] sm:$0xff]
        %s2461 = scalar_lea.vmem %s197, 1920
        %v2462 = vld [vmem:[%s2461] sm:$0xff]
        %v2463 = vld [vmem:[%s2461 + $0x8] sm:$0xff]
        %v2464 = vld [vmem:[%s2461 + $0x10] sm:$0xff]
        %v2465 = vld [vmem:[%s2461 + $0x18] sm:$0xff]
        %v2466 = vld [vmem:[%s2461 + $0x20] sm:$0xff]
        %v2467 = vld [vmem:[%s2461 + $0x28] sm:$0xff]
        %v2468 = vld [vmem:[%s2461 + $0x30] sm:$0xff]
        %v2469 = vld [vmem:[%s2461 + $0x38] sm:$0xff]
        %v2470 = vld [vmem:[%s2461 + $0x40] sm:$0xff]
        %v2471 = vld [vmem:[%s2461 + $0x48] sm:$0xff]
        %v2472 = vld [vmem:[%s2461 + $0x50] sm:$0xff]
        %v2473 = vld [vmem:[%s2461 + $0x58] sm:$0xff]
        %v2474 = vld [vmem:[%s2461 + $0x60] sm:$0xff]
        %v2475 = vld [vmem:[%s2461 + $0x68] sm:$0xff]
        %v2476 = vld [vmem:[%s2461 + $0x70] sm:$0xff]
        %v2477 = vld [vmem:[%s2461 + $0x78] sm:$0xff]
        %2494 = vrot.lane.b32.xlu0 %v2428, 32
        %v2495 = vpop.permute.xlu0 %2494
        %2496 = vrot.lane.b32.xlu0 %v2429, 32
        %v2497 = vpop.permute.xlu0 %2496
        %2498 = vrot.lane.b32.xlu0 %v2430, 32
        %v2499 = vpop.permute.xlu0 %2498
        %2500 = vrot.lane.b32.xlu0 %v2431, 32
        %v2501 = vpop.permute.xlu0 %2500
        %2502 = vrot.lane.b32.xlu0 %v2432, 32
        %v2503 = vpop.permute.xlu0 %2502
        %2504 = vrot.lane.b32.xlu0 %v2433, 32
        %v2505 = vpop.permute.xlu0 %2504
        %2506 = vrot.lane.b32.xlu0 %v2434, 32
        %v2507 = vpop.permute.xlu0 %2506
        %2508 = vrot.lane.b32.xlu0 %v2435, 32
        %v2509 = vpop.permute.xlu0 %2508
        %2510 = vrot.lane.b32.xlu0 %v2436, 32
        %v2511 = vpop.permute.xlu0 %2510
        %2512 = vrot.lane.b32.xlu0 %v2437, 32
        %v2513 = vpop.permute.xlu0 %2512
        %2514 = vrot.lane.b32.xlu0 %v2438, 32
        %v2515 = vpop.permute.xlu0 %2514
        %2516 = vrot.lane.b32.xlu0 %v2439, 32
        %v2517 = vpop.permute.xlu0 %2516
        %2518 = vrot.lane.b32.xlu0 %v2440, 32
        %v2519 = vpop.permute.xlu0 %2518
        %2520 = vrot.lane.b32.xlu0 %v2441, 32
        %v2521 = vpop.permute.xlu0 %2520
        %2522 = vrot.lane.b32.xlu0 %v2442, 32
        %v2523 = vpop.permute.xlu0 %2522
        %2524 = vrot.lane.b32.xlu0 %v2443, 32
        %v2525 = vpop.permute.xlu0 %2524
        %2558 = vrot.lane.b32.xlu0 %v2445, 64
        %v2559 = vpop.permute.xlu0 %2558
        %2560 = vrot.lane.b32.xlu0 %v2446, 64
        %v2561 = vpop.permute.xlu0 %2560
        %2562 = vrot.lane.b32.xlu0 %v2447, 64
        %v2563 = vpop.permute.xlu0 %2562
        %2564 = vrot.lane.b32.xlu0 %v2448, 64
        %v2565 = vpop.permute.xlu0 %2564
        %2566 = vrot.lane.b32.xlu0 %v2449, 64
        %v2567 = vpop.permute.xlu0 %2566
        %2568 = vrot.lane.b32.xlu0 %v2450, 64
        %v2569 = vpop.permute.xlu0 %2568
        %2570 = vrot.lane.b32.xlu0 %v2451, 64
        %v2571 = vpop.permute.xlu0 %2570
        %2572 = vrot.lane.b32.xlu0 %v2452, 64
        %v2573 = vpop.permute.xlu0 %2572
        %2574 = vrot.lane.b32.xlu0 %v2453, 64
        %v2575 = vpop.permute.xlu0 %2574
        %2576 = vrot.lane.b32.xlu0 %v2454, 64
        %v2577 = vpop.permute.xlu0 %2576
        %2578 = vrot.lane.b32.xlu0 %v2455, 64
        %v2579 = vpop.permute.xlu0 %2578
        %2580 = vrot.lane.b32.xlu0 %v2456, 64
        %v2581 = vpop.permute.xlu0 %2580
        %2582 = vrot.lane.b32.xlu0 %v2457, 64
        %v2583 = vpop.permute.xlu0 %2582
        %2584 = vrot.lane.b32.xlu0 %v2458, 64
        %v2585 = vpop.permute.xlu0 %2584
        %2586 = vrot.lane.b32.xlu0 %v2459, 64
        %v2587 = vpop.permute.xlu0 %2586
        %2588 = vrot.lane.b32.xlu0 %v2460, 64
        %v2589 = vpop.permute.xlu0 %2588
        %2622 = vrot.lane.b32.xlu0 %v2462, 96
        %v2623 = vpop.permute.xlu0 %2622
        %2624 = vrot.lane.b32.xlu0 %v2463, 96
        %v2625 = vpop.permute.xlu0 %2624
        %2626 = vrot.lane.b32.xlu0 %v2464, 96
        %v2627 = vpop.permute.xlu0 %2626
        %2628 = vrot.lane.b32.xlu0 %v2465, 96
        %v2629 = vpop.permute.xlu0 %2628
        %2630 = vrot.lane.b32.xlu0 %v2466, 96
        %v2631 = vpop.permute.xlu0 %2630
        %2632 = vrot.lane.b32.xlu0 %v2467, 96
        %v2633 = vpop.permute.xlu0 %2632
        %2634 = vrot.lane.b32.xlu0 %v2468, 96
        %v2635 = vpop.permute.xlu0 %2634
        %2636 = vrot.lane.b32.xlu0 %v2469, 96
        %v2637 = vpop.permute.xlu0 %2636
        %2638 = vrot.lane.b32.xlu0 %v2470, 96
        %v2639 = vpop.permute.xlu0 %2638
        %2640 = vrot.lane.b32.xlu0 %v2471, 96
        %v2641 = vpop.permute.xlu0 %2640
        %2642 = vrot.lane.b32.xlu0 %v2472, 96
        %v2643 = vpop.permute.xlu0 %2642
        %2644 = vrot.lane.b32.xlu0 %v2473, 96
        %v2645 = vpop.permute.xlu0 %2644
        %2646 = vrot.lane.b32.xlu0 %v2474, 96
        %v2647 = vpop.permute.xlu0 %2646
        %2648 = vrot.lane.b32.xlu0 %v2475, 96
        %v2649 = vpop.permute.xlu0 %2648
        %2650 = vrot.lane.b32.xlu0 %v2476, 96
        %v2651 = vpop.permute.xlu0 %2650
        %2652 = vrot.lane.b32.xlu0 %v2477, 96
        %v2653 = vpop.permute.xlu0 %2652
        %v2670 = vsel %vm478, %v2411, %v2495
        %v2671 = vsel %vm478, %v2412, %v2497
        %v2672 = vsel %vm478, %v2413, %v2499
        %v2673 = vsel %vm478, %v2414, %v2501
        %v2674 = vsel %vm478, %v2415, %v2503
        %v2675 = vsel %vm478, %v2416, %v2505
        %v2676 = vsel %vm478, %v2417, %v2507
        %v2677 = vsel %vm478, %v2418, %v2509
        %v2678 = vsel %vm478, %v2419, %v2511
        %v2679 = vsel %vm478, %v2420, %v2513
        %v2680 = vsel %vm478, %v2421, %v2515
        %v2681 = vsel %vm478, %v2422, %v2517
        %v2682 = vsel %vm478, %v2423, %v2519
        %v2683 = vsel %vm478, %v2424, %v2521
        %v2684 = vsel %vm478, %v2425, %v2523
        %v2685 = vsel %vm478, %v2426, %v2525
        %v2686 = vsel %vm495, %v2670, %v2559
        %v2687 = vsel %vm495, %v2671, %v2561
        %v2688 = vsel %vm495, %v2672, %v2563
        %v2689 = vsel %vm495, %v2673, %v2565
        %v2690 = vsel %vm495, %v2674, %v2567
        %v2691 = vsel %vm495, %v2675, %v2569
        %v2692 = vsel %vm495, %v2676, %v2571
        %v2693 = vsel %vm495, %v2677, %v2573
        %v2694 = vsel %vm495, %v2678, %v2575
        %v2695 = vsel %vm495, %v2679, %v2577
        %v2696 = vsel %vm495, %v2680, %v2579
        %v2697 = vsel %vm495, %v2681, %v2581
        %v2698 = vsel %vm495, %v2682, %v2583
        %v2699 = vsel %vm495, %v2683, %v2585
        %v2700 = vsel %vm495, %v2684, %v2587
        %v2701 = vsel %vm495, %v2685, %v2589
        %v2702 = vsel %vm512, %v2686, %v2623
        %v2703 = vsel %vm512, %v2687, %v2625
        %v2704 = vsel %vm512, %v2688, %v2627
        %v2705 = vsel %vm512, %v2689, %v2629
        %v2706 = vsel %vm512, %v2690, %v2631
        %v2707 = vsel %vm512, %v2691, %v2633
        %v2708 = vsel %vm512, %v2692, %v2635
        %v2709 = vsel %vm512, %v2693, %v2637
        %v2710 = vsel %vm512, %v2694, %v2639
        %v2711 = vsel %vm512, %v2695, %v2641
        %v2712 = vsel %vm512, %v2696, %v2643
        %v2713 = vsel %vm512, %v2697, %v2645
        %v2714 = vsel %vm512, %v2698, %v2647
        %v2715 = vsel %vm512, %v2699, %v2649
        %v2716 = vsel %vm512, %v2700, %v2651
        %v2717 = vsel %vm512, %v2701, %v2653
        %v2718 = vpack.c.bf16 %v2703, %v2702
        %v2719 = vpack.c.bf16 %v2705, %v2704
        %v2720 = vpack.c.bf16 %v2707, %v2706
        %v2721 = vpack.c.bf16 %v2709, %v2708
        %v2722 = vpack.c.bf16 %v2711, %v2710
        %v2723 = vpack.c.bf16 %v2713, %v2712
        %v2724 = vpack.c.bf16 %v2715, %v2714
        %v2725 = vpack.c.bf16 %v2717, %v2716
        %v2726 = vunpack.c.l.bf16 %v2718
        %v2727 = vunpack.c.h.bf16 %v2718
        %v2728 = vunpack.c.l.bf16 %v2719
        %v2729 = vunpack.c.h.bf16 %v2719
        %v2730 = vunpack.c.l.bf16 %v2720
        %v2731 = vunpack.c.h.bf16 %v2720
        %v2732 = vunpack.c.l.bf16 %v2721
        %v2733 = vunpack.c.h.bf16 %v2721
        %v2734 = vunpack.c.l.bf16 %v2722
        %v2735 = vunpack.c.h.bf16 %v2722
        %v2736 = vunpack.c.l.bf16 %v2723
        %v2737 = vunpack.c.h.bf16 %v2723
        %v2738 = vunpack.c.l.bf16 %v2724
        %v2739 = vunpack.c.h.bf16 %v2724
        %v2740 = vunpack.c.l.bf16 %v2725
        %v2741 = vunpack.c.h.bf16 %v2725
        %v2742 = vsub.f32 %v2702, %v2726
        %v2743 = vsub.f32 %v2703, %v2727
        %v2744 = vsub.f32 %v2704, %v2728
        %v2745 = vsub.f32 %v2705, %v2729
        %v2746 = vsub.f32 %v2706, %v2730
        %v2747 = vsub.f32 %v2707, %v2731
        %v2748 = vsub.f32 %v2708, %v2732
        %v2749 = vsub.f32 %v2709, %v2733
        %v2750 = vsub.f32 %v2710, %v2734
        %v2751 = vsub.f32 %v2711, %v2735
        %v2752 = vsub.f32 %v2712, %v2736
        %v2753 = vsub.f32 %v2713, %v2737
        %v2754 = vsub.f32 %v2714, %v2738
        %v2755 = vsub.f32 %v2715, %v2739
        %v2756 = vsub.f32 %v2716, %v2740
        %v2757 = vsub.f32 %v2717, %v2741
        %v2758 = vpack.c.bf16 %v2743, %v2742
        %v2759 = vpack.c.bf16 %v2745, %v2744
        %v2760 = vpack.c.bf16 %v2747, %v2746
        %v2761 = vpack.c.bf16 %v2749, %v2748
        %v2762 = vpack.c.bf16 %v2751, %v2750
        %v2763 = vpack.c.bf16 %v2753, %v2752
        %v2764 = vpack.c.bf16 %v2755, %v2754
        %v2765 = vpack.c.bf16 %v2757, %v2756
        %v2766 = vunpack.c.l.bf16 %v2758
        %v2767 = vunpack.c.h.bf16 %v2758
        %v2768 = vunpack.c.l.bf16 %v2759
        %v2769 = vunpack.c.h.bf16 %v2759
        %v2770 = vunpack.c.l.bf16 %v2760
        %v2771 = vunpack.c.h.bf16 %v2760
        %v2772 = vunpack.c.l.bf16 %v2761
        %v2773 = vunpack.c.h.bf16 %v2761
        %v2774 = vunpack.c.l.bf16 %v2762
        %v2775 = vunpack.c.h.bf16 %v2762
        %v2776 = vunpack.c.l.bf16 %v2763
        %v2777 = vunpack.c.h.bf16 %v2763
        %v2778 = vunpack.c.l.bf16 %v2764
        %v2779 = vunpack.c.h.bf16 %v2764
        %v2780 = vunpack.c.l.bf16 %v2765
        %v2781 = vunpack.c.h.bf16 %v2765
        %v2782 = vsub.f32 %v2742, %v2766
        %v2783 = vsub.f32 %v2743, %v2767
        %v2784 = vsub.f32 %v2744, %v2768
        %v2785 = vsub.f32 %v2745, %v2769
        %v2786 = vsub.f32 %v2746, %v2770
        %v2787 = vsub.f32 %v2747, %v2771
        %v2788 = vsub.f32 %v2748, %v2772
        %v2789 = vsub.f32 %v2749, %v2773
        %v2790 = vsub.f32 %v2750, %v2774
        %v2791 = vsub.f32 %v2751, %v2775
        %v2792 = vsub.f32 %v2752, %v2776
        %v2793 = vsub.f32 %v2753, %v2777
        %v2794 = vsub.f32 %v2754, %v2778
        %v2795 = vsub.f32 %v2755, %v2779
        %v2796 = vsub.f32 %v2756, %v2780
        %v2797 = vsub.f32 %v2757, %v2781
        %v2798 = vpack.c.bf16 %v2783, %v2782
        %v2799 = vpack.c.bf16 %v2785, %v2784
        %v2800 = vpack.c.bf16 %v2787, %v2786
        %v2801 = vpack.c.bf16 %v2789, %v2788
        %v2802 = vpack.c.bf16 %v2791, %v2790
        %v2803 = vpack.c.bf16 %v2793, %v2792
        %v2804 = vpack.c.bf16 %v2795, %v2794
        %v2805 = vpack.c.bf16 %v2797, %v2796
        %2806 = vmatprep.subr.bf16.mxu0 0
        %2807 = vmatpush1.bf16.msra.mxu0 %v649
        %2808 = vmatprep.subr.bf16.mxu0 0
        %2809 = vmatpush1.bf16.msra.mxu0 %v650
        %2810 = vmatprep.subr.bf16.mxu0 0
        %2811 = vmatpush1.bf16.msra.mxu0 %v651
        %2812 = vmatprep.subr.bf16.mxu0 0
        %2813 = vmatpush1.bf16.msra.mxu0 %v652
        %2814 = vmatprep.subr.bf16.mxu0 0
        %2815 = vmatpush1.bf16.msra.mxu0 %v653
        %2816 = vmatprep.subr.bf16.mxu0 0
        %2817 = vmatpush1.bf16.msra.mxu0 %v654
        %2818 = vmatprep.subr.bf16.mxu0 0
        %2819 = vmatpush1.bf16.msra.mxu0 %v655
        %2820 = vmatprep.subr.bf16.mxu0 0
        %2821 = vmatpush1.bf16.msra.mxu0 %v656
        %2822 = vmatprep.subr.bf16.mxu0 0
        %2823 = vmatpush1.bf16.msra.mxu0 0
        %2824 = vmatprep.subr.bf16.mxu0 0
        %2825 = vmatpush1.bf16.msra.mxu0 0
        %2826 = vmatprep.subr.bf16.mxu0 0
        %2827 = vmatpush1.bf16.msra.mxu0 0
        %2828 = vmatprep.subr.bf16.mxu0 0
        %2829 = vmatpush1.bf16.msra.mxu0 0
        %2830 = vmatprep.subr.bf16.mxu0 0
        %2831 = vmatpush1.bf16.msra.mxu0 0
        %2832 = vmatprep.subr.bf16.mxu0 0
        %2833 = vmatpush1.bf16.msra.mxu0 0
        %2834 = vmatprep.subr.bf16.mxu0 0
        %2835 = vmatpush1.bf16.msra.mxu0 0
        %2836 = vmatprep.subr.bf16.mxu0 0
        %2837 = vmatpush1.bf16.msra.mxu0 0
        %2838 = vmatprep.mubr.bf16.mxu0 0
        %2839 = vmatmul.mubr.bf16.gmra.mrb[0].mxu0 %v2758
        %v2840 = vpop.f32.mrb[0].mxu0
        %v2841 = vadd.f32 0.0, %v2840
        %v2842 = vpop.f32.mrb[0].mxu0
        %v2843 = vpop.f32.mrb[0].mxu0
        %v2844 = vadd.f32 0.0, %v2843
        %v2845 = vpop.f32.mrb[0].mxu0
        %2846 = vmatprep.mubr.bf16.mxu0 0
        %2847 = vmatmul.mubr.bf16.gmra.mrb[0].mxu0 %v2759
        %v2848 = vpop.f32.mrb[0].mxu0
        %v2849 = vadd.f32 0.0, %v2848
        %v2850 = vpop.f32.mrb[0].mxu0
        %v2851 = vpop.f32.mrb[0].mxu0
        %v2852 = vadd.f32 0.0, %v2851
        %v2853 = vpop.f32.mrb[0].mxu0
        %2854 = vmatprep.mubr.bf16.mxu0 0
        %2855 = vmatmul.mubr.bf16.gmra.mrb[0].mxu0 %v2760
        %v2856 = vpop.f32.mrb[0].mxu0
        %v2857 = vadd.f32 0.0, %v2856
        %v2858 = vpop.f32.mrb[0].mxu0
        %v2859 = vpop.f32.mrb[0].mxu0
        %v2860 = vadd.f32 0.0, %v2859
        %v2861 = vpop.f32.mrb[0].mxu0
        %2862 = vmatprep.mubr.bf16.mxu0 0
        %2863 = vmatmul.mubr.bf16.gmra.mrb[0].mxu0 %v2761
        %v2864 = vpop.f32.mrb[0].mxu0
        %v2865 = vadd.f32 0.0, %v2864
        %v2866 = vpop.f32.mrb[0].mxu0
        %v2867 = vpop.f32.mrb[0].mxu0
        %v2868 = vadd.f32 0.0, %v2867
        %v2869 = vpop.f32.mrb[0].mxu0
        %2870 = vmatprep.mubr.bf16.mxu0 0
        %2871 = vmatmul.mubr.bf16.gmra.mrb[0].mxu0 %v2762
        %v2872 = vpop.f32.mrb[0].mxu0
        %v2873 = vadd.f32 0.0, %v2872
        %v2874 = vpop.f32.mrb[0].mxu0
        %v2875 = vpop.f32.mrb[0].mxu0
        %v2876 = vadd.f32 0.0, %v2875
        %v2877 = vpop.f32.mrb[0].mxu0
        %2878 = vmatprep.mubr.bf16.mxu0 0
        %2879 = vmatmul.mubr.bf16.gmra.mrb[0].mxu0 %v2763
        %v2880 = vpop.f32.mrb[0].mxu0
        %v2881 = vadd.f32 0.0, %v2880
        %v2882 = vpop.f32.mrb[0].mxu0
        %v2883 = vpop.f32.mrb[0].mxu0
        %v2884 = vadd.f32 0.0, %v2883
        %v2885 = vpop.f32.mrb[0].mxu0
        %2886 = vmatprep.mubr.bf16.mxu0 0
        %2887 = vmatmul.mubr.bf16.gmra.mrb[0].mxu0 %v2764
        %v2888 = vpop.f32.mrb[0].mxu0
        %v2889 = vadd.f32 0.0, %v2888
        %v2890 = vpop.f32.mrb[0].mxu0
        %v2891 = vpop.f32.mrb[0].mxu0
        %v2892 = vadd.f32 0.0, %v2891
        %v2893 = vpop.f32.mrb[0].mxu0
        %2894 = vmatprep.mubr.bf16.mxu0 0
        %2895 = vmatmul.mubr.bf16.gmra.mrb[0].mxu0 %v2765
        %v2896 = vpop.f32.mrb[0].mxu0
        %v2897 = vadd.f32 0.0, %v2896
        %v2898 = vpop.f32.mrb[0].mxu0
        %v2899 = vpop.f32.mrb[0].mxu0
        %v2900 = vadd.f32 0.0, %v2899
        %v2901 = vpop.f32.mrb[0].mxu0
        %2902 = vdwg.mxu0
        %2903 = vmatprep.subr.bf16.mxu0 0
        %2904 = vmatpush1.bf16.msra.mxu0 %v649
        %2905 = vmatprep.subr.bf16.mxu0 0
        %2906 = vmatpush1.bf16.msra.mxu0 %v650
        %2907 = vmatprep.subr.bf16.mxu0 0
        %2908 = vmatpush1.bf16.msra.mxu0 %v651
        %2909 = vmatprep.subr.bf16.mxu0 0
        %2910 = vmatpush1.bf16.msra.mxu0 %v652
        %2911 = vmatprep.subr.bf16.mxu0 0
        %2912 = vmatpush1.bf16.msra.mxu0 %v653
        %2913 = vmatprep.subr.bf16.mxu0 0
        %2914 = vmatpush1.bf16.msra.mxu0 %v654
        %2915 = vmatprep.subr.bf16.mxu0 0
        %2916 = vmatpush1.bf16.msra.mxu0 %v655
        %2917 = vmatprep.subr.bf16.mxu0 0
        %2918 = vmatpush1.bf16.msra.mxu0 %v656
        %2919 = vmatprep.subr.bf16.mxu0 0
        %2920 = vmatpush1.bf16.msra.mxu0 0
        %2921 = vmatprep.subr.bf16.mxu0 0
        %2922 = vmatpush1.bf16.msra.mxu0 0
        %2923 = vmatprep.subr.bf16.mxu0 0
        %2924 = vmatpush1.bf16.msra.mxu0 0
        %2925 = vmatprep.subr.bf16.mxu0 0
        %2926 = vmatpush1.bf16.msra.mxu0 0
        %2927 = vmatprep.subr.bf16.mxu0 0
        %2928 = vmatpush1.bf16.msra.mxu0 0
        %2929 = vmatprep.subr.bf16.mxu0 0
        %2930 = vmatpush1.bf16.msra.mxu0 0
        %2931 = vmatprep.subr.bf16.mxu0 0
        %2932 = vmatpush1.bf16.msra.mxu0 0
        %2933 = vmatprep.subr.bf16.mxu0 0
        %2934 = vmatpush1.bf16.msra.mxu0 0
        %2935 = vmatprep.mubr.bf16.mxu0 0
        %2936 = vmatmul.mubr.bf16.gmra.mrb[0].mxu0 %v2718
        %v2937 = vpop.f32.mrb[0].mxu0
        %v2938 = vadd.f32 %v2841, %v2937
        %v2939 = vpop.f32.mrb[0].mxu0
        %v2940 = vpop.f32.mrb[0].mxu0
        %v2941 = vadd.f32 %v2844, %v2940
        %v2942 = vpop.f32.mrb[0].mxu0
        %2943 = vmatprep.mubr.bf16.mxu0 0
        %2944 = vmatmul.mubr.bf16.gmra.mrb[0].mxu0 %v2719
        %v2945 = vpop.f32.mrb[0].mxu0
        %v2946 = vadd.f32 %v2849, %v2945
        %v2947 = vpop.f32.mrb[0].mxu0
        %v2948 = vpop.f32.mrb[0].mxu0
        %v2949 = vadd.f32 %v2852, %v2948
        %v2950 = vpop.f32.mrb[0].mxu0
        %2951 = vmatprep.mubr.bf16.mxu0 0
        %2952 = vmatmul.mubr.bf16.gmra.mrb[0].mxu0 %v2720
        %v2953 = vpop.f32.mrb[0].mxu0
        %v2954 = vadd.f32 %v2857, %v2953
        %v2955 = vpop.f32.mrb[0].mxu0
        %v2956 = vpop.f32.mrb[0].mxu0
        %v2957 = vadd.f32 %v2860, %v2956
        %v2958 = vpop.f32.mrb[0].mxu0
        %2959 = vmatprep.mubr.bf16.mxu0 0
        %2960 = vmatmul.mubr.bf16.gmra.mrb[0].mxu0 %v2721
        %v2961 = vpop.f32.mrb[0].mxu0
        %v2962 = vadd.f32 %v2865, %v2961
        %v2963 = vpop.f32.mrb[0].mxu0
        %v2964 = vpop.f32.mrb[0].mxu0
        %v2965 = vadd.f32 %v2868, %v2964
        %v2966 = vpop.f32.mrb[0].mxu0
        %2967 = vmatprep.mubr.bf16.mxu0 0
        %2968 = vmatmul.mubr.bf16.gmra.mrb[0].mxu0 %v2722
        %v2969 = vpop.f32.mrb[0].mxu0
        %v2970 = vadd.f32 %v2873, %v2969
        %v2971 = vpop.f32.mrb[0].mxu0
        %v2972 = vpop.f32.mrb[0].mxu0
        %v2973 = vadd.f32 %v2876, %v2972
        %v2974 = vpop.f32.mrb[0].mxu0
        %2975 = vmatprep.mubr.bf16.mxu0 0
        %2976 = vmatmul.mubr.bf16.gmra.mrb[0].mxu0 %v2723
        %v2977 = vpop.f32.mrb[0].mxu0
        %v2978 = vadd.f32 %v2881, %v2977
        %v2979 = vpop.f32.mrb[0].mxu0
        %v2980 = vpop.f32.mrb[0].mxu0
        %v2981 = vadd.f32 %v2884, %v2980
        %v2982 = vpop.f32.mrb[0].mxu0
        %2983 = vmatprep.mubr.bf16.mxu0 0
        %2984 = vmatmul.mubr.bf16.gmra.mrb[0].mxu0 %v2724
        %v2985 = vpop.f32.mrb[0].mxu0
        %v2986 = vadd.f32 %v2889, %v2985
        %v2987 = vpop.f32.mrb[0].mxu0
        %v2988 = vpop.f32.mrb[0].mxu0
        %v2989 = vadd.f32 %v2892, %v2988
        %v2990 = vpop.f32.mrb[0].mxu0
        %2991 = vmatprep.mubr.bf16.mxu0 0
        %2992 = vmatmul.mubr.bf16.gmra.mrb[0].mxu0 %v2725
        %v2993 = vpop.f32.mrb[0].mxu0
        %v2994 = vadd.f32 %v2897, %v2993
        %v2995 = vpop.f32.mrb[0].mxu0
        %v2996 = vpop.f32.mrb[0].mxu0
        %v2997 = vadd.f32 %v2900, %v2996
        %v2998 = vpop.f32.mrb[0].mxu0
        %2999 = vdwg.mxu0
        %3000 = vmatprep.subr.bf16.mxu0 0
        %3001 = vmatpush1.bf16.msra.mxu0 %v649
        %3002 = vmatprep.subr.bf16.mxu0 0
        %3003 = vmatpush1.bf16.msra.mxu0 %v650
        %3004 = vmatprep.subr.bf16.mxu0 0
        %3005 = vmatpush1.bf16.msra.mxu0 %v651
        %3006 = vmatprep.subr.bf16.mxu0 0
        %3007 = vmatpush1.bf16.msra.mxu0 %v652
        %3008 = vmatprep.subr.bf16.mxu0 0
        %3009 = vmatpush1.bf16.msra.mxu0 %v653
        %3010 = vmatprep.subr.bf16.mxu0 0
        %3011 = vmatpush1.bf16.msra.mxu0 %v654
        %3012 = vmatprep.subr.bf16.mxu0 0
        %3013 = vmatpush1.bf16.msra.mxu0 %v655
        %3014 = vmatprep.subr.bf16.mxu0 0
        %3015 = vmatpush1.bf16.msra.mxu0 %v656
        %3016 = vmatprep.subr.bf16.mxu0 0
        %3017 = vmatpush1.bf16.msra.mxu0 0
        %3018 = vmatprep.subr.bf16.mxu0 0
        %3019 = vmatpush1.bf16.msra.mxu0 0
        %3020 = vmatprep.subr.bf16.mxu0 0
        %3021 = vmatpush1.bf16.msra.mxu0 0
        %3022 = vmatprep.subr.bf16.mxu0 0
        %3023 = vmatpush1.bf16.msra.mxu0 0
        %3024 = vmatprep.subr.bf16.mxu0 0
        %3025 = vmatpush1.bf16.msra.mxu0 0
        %3026 = vmatprep.subr.bf16.mxu0 0
        %3027 = vmatpush1.bf16.msra.mxu0 0
        %3028 = vmatprep.subr.bf16.mxu0 0
        %3029 = vmatpush1.bf16.msra.mxu0 0
        %3030 = vmatprep.subr.bf16.mxu0 0
        %3031 = vmatpush1.bf16.msra.mxu0 0
        %3032 = vmatprep.mubr.bf16.mxu0 0
        %3033 = vmatmul.mubr.bf16.gmra.mrb[0].mxu0 %v2798
        %v3034 = vpop.f32.mrb[0].mxu0
        %v3035 = vadd.f32 0.0, %v3034
        %v3036 = vpop.f32.mrb[0].mxu0
        %v3037 = vpop.f32.mrb[0].mxu0
        %v3038 = vadd.f32 0.0, %v3037
        %v3039 = vpop.f32.mrb[0].mxu0
        %3040 = vmatprep.mubr.bf16.mxu0 0
        %3041 = vmatmul.mubr.bf16.gmra.mrb[0].mxu0 %v2799
        %v3042 = vpop.f32.mrb[0].mxu0
        %v3043 = vadd.f32 0.0, %v3042
        %v3044 = vpop.f32.mrb[0].mxu0
        %v3045 = vpop.f32.mrb[0].mxu0
        %v3046 = vadd.f32 0.0, %v3045
        %v3047 = vpop.f32.mrb[0].mxu0
        %3048 = vmatprep.mubr.bf16.mxu0 0
        %3049 = vmatmul.mubr.bf16.gmra.mrb[0].mxu0 %v2800
        %v3050 = vpop.f32.mrb[0].mxu0
        %v3051 = vadd.f32 0.0, %v3050
        %v3052 = vpop.f32.mrb[0].mxu0
        %v3053 = vpop.f32.mrb[0].mxu0
        %v3054 = vadd.f32 0.0, %v3053
        %v3055 = vpop.f32.mrb[0].mxu0
        %3056 = vmatprep.mubr.bf16.mxu0 0
        %3057 = vmatmul.mubr.bf16.gmra.mrb[0].mxu0 %v2801
        %v3058 = vpop.f32.mrb[0].mxu0
        %v3059 = vadd.f32 0.0, %v3058
        %v3060 = vpop.f32.mrb[0].mxu0
        %v3061 = vpop.f32.mrb[0].mxu0
        %v3062 = vadd.f32 0.0, %v3061
        %v3063 = vpop.f32.mrb[0].mxu0
        %3064 = vmatprep.mubr.bf16.mxu0 0
        %3065 = vmatmul.mubr.bf16.gmra.mrb[0].mxu0 %v2802
        %v3066 = vpop.f32.mrb[0].mxu0
        %v3067 = vadd.f32 0.0, %v3066
        %v3068 = vpop.f32.mrb[0].mxu0
        %v3069 = vpop.f32.mrb[0].mxu0
        %v3070 = vadd.f32 0.0, %v3069
        %v3071 = vpop.f32.mrb[0].mxu0
        %3072 = vmatprep.mubr.bf16.mxu0 0
        %3073 = vmatmul.mubr.bf16.gmra.mrb[0].mxu0 %v2803
        %v3074 = vpop.f32.mrb[0].mxu0
        %v3075 = vadd.f32 0.0, %v3074
        %v3076 = vpop.f32.mrb[0].mxu0
        %v3077 = vpop.f32.mrb[0].mxu0
        %v3078 = vadd.f32 0.0, %v3077
        %v3079 = vpop.f32.mrb[0].mxu0
        %3080 = vmatprep.mubr.bf16.mxu0 0
        %3081 = vmatmul.mubr.bf16.gmra.mrb[0].mxu0 %v2804
        %v3082 = vpop.f32.mrb[0].mxu0
        %v3083 = vadd.f32 0.0, %v3082
        %v3084 = vpop.f32.mrb[0].mxu0
        %v3085 = vpop.f32.mrb[0].mxu0
        %v3086 = vadd.f32 0.0, %v3085
        %v3087 = vpop.f32.mrb[0].mxu0
        %3088 = vmatprep.mubr.bf16.mxu0 0
        %3089 = vmatmul.mubr.bf16.gmra.mrb[0].mxu0 %v2805
        %v3090 = vpop.f32.mrb[0].mxu0
        %v3091 = vadd.f32 0.0, %v3090
        %v3092 = vpop.f32.mrb[0].mxu0
        %v3093 = vpop.f32.mrb[0].mxu0
        %v3094 = vadd.f32 0.0, %v3093
        %v3095 = vpop.f32.mrb[0].mxu0
        %3096 = vdwg.mxu0
        %v3097 = vadd.f32 %v2938, %v3035
        %v3098 = vadd.f32 %v2941, %v3038
        %v3099 = vadd.f32 %v2946, %v3043
        %v3100 = vadd.f32 %v2949, %v3046
        %v3101 = vadd.f32 %v2954, %v3051
        %v3102 = vadd.f32 %v2957, %v3054
        %v3103 = vadd.f32 %v2962, %v3059
        %v3104 = vadd.f32 %v2965, %v3062
        %v3105 = vadd.f32 %v2970, %v3067
        %v3106 = vadd.f32 %v2973, %v3070
        %v3107 = vadd.f32 %v2978, %v3075
        %v3108 = vadd.f32 %v2981, %v3078
        %v3109 = vadd.f32 %v2986, %v3083
        %v3110 = vadd.f32 %v2989, %v3086
        %v3111 = vadd.f32 %v2994, %v3091
        %v3112 = vadd.f32 %v2997, %v3094
        %s3113 = scalar_lea.vmem %s183, 256 [#allocation2]
        %3114 = vst [vmem:[%s3113] sm:$0xff] %v2394
        %3115 = vst [vmem:[%s3113 + $0x8] sm:$0xff] %v3097
        %3116 = vst [vmem:[%s3113 + $0x10] sm:$0xff] %v2395
        %3117 = vst [vmem:[%s3113 + $0x18] sm:$0xff] %v3098
        %3118 = vst [vmem:[%s3113 + $0x20] sm:$0xff] %v2396
        %3119 = vst [vmem:[%s3113 + $0x28] sm:$0xff] %v3099
        %3120 = vst [vmem:[%s3113 + $0x30] sm:$0xff] %v2397
        %3121 = vst [vmem:[%s3113 + $0x38] sm:$0xff] %v3100
        %3122 = vst [vmem:[%s3113 + $0x40] sm:$0xff] %v2398
        %3123 = vst [vmem:[%s3113 + $0x48] sm:$0xff] %v3101
        %3124 = vst [vmem:[%s3113 + $0x50] sm:$0xff] %v2399
        %3125 = vst [vmem:[%s3113 + $0x58] sm:$0xff] %v3102
        %3126 = vst [vmem:[%s3113 + $0x60] sm:$0xff] %v2400
        %3127 = vst [vmem:[%s3113 + $0x68] sm:$0xff] %v3103
        %3128 = vst [vmem:[%s3113 + $0x70] sm:$0xff] %v2401
        %3129 = vst [vmem:[%s3113 + $0x78] sm:$0xff] %v3104
        %3130 = vst [vmem:[%s3113 + $0x80] sm:$0xff] %v2402
        %3131 = vst [vmem:[%s3113 + $0x88] sm:$0xff] %v3105
        %3132 = vst [vmem:[%s3113 + $0x90] sm:$0xff] %v2403
        %3133 = vst [vmem:[%s3113 + $0x98] sm:$0xff] %v3106
        %3134 = vst [vmem:[%s3113 + $0xa0] sm:$0xff] %v2404
        %3135 = vst [vmem:[%s3113 + $0xa8] sm:$0xff] %v3107
        %3136 = vst [vmem:[%s3113 + $0xb0] sm:$0xff] %v2405
        %3137 = vst [vmem:[%s3113 + $0xb8] sm:$0xff] %v3108
        %3138 = vst [vmem:[%s3113 + $0xc0] sm:$0xff] %v2406
        %3139 = vst [vmem:[%s3113 + $0xc8] sm:$0xff] %v3109
        %3140 = vst [vmem:[%s3113 + $0xd0] sm:$0xff] %v2407
        %3141 = vst [vmem:[%s3113 + $0xd8] sm:$0xff] %v3110
        %3142 = vst [vmem:[%s3113 + $0xe0] sm:$0xff] %v2408
        %3143 = vst [vmem:[%s3113 + $0xe8] sm:$0xff] %v3111
        %3144 = vst [vmem:[%s3113 + $0xf0] sm:$0xff] %v2409
        %3145 = vst [vmem:[%s3113 + $0xf8] sm:$0xff] %v3112
        %s3146 = sand.u32 %s98, 1
        %s3147 = scalar_lea.sflag [#allocation3], %s3146
        %s3148 = sand.u32 %s98, 1
        %s3149 = smul.addr %s3148, 512
        %s3150 = scalar_lea.vmem [#allocation2], %s3149
        // Predicated region
        $region29: #{tpu_custom_call.1} parent=27 // pred_check
          %p3151 = pneg %p108
        $region30: #{tpu_custom_call.1} parent=27 // pred_check_branch
          %3153 = sbr.rel (%p3151) target = $region32
        $region31: #{tpu_custom_call.1} parent=27 // pred_region
          %s3154 = smul.u32 2, %s22
          %s3155 = smul.u32 32, %s23
          %s3157 = ssub.s32 8192, 8192
          %3158 = vsyncadd %s3147, %s3157
          %s3159 = smul.addr %s3154, 32
          %s3160 = sadd.s32 %s3155, %s3159
          %s3161 = smul.addr %s21, 64
          %s3162 = sadd.s32 %s3160, %s3161
          %s3163 = smul.addr %s3162, 128
          %s3164 = scalar_lea.hbm %s2, %s3163
          %s3165 = sshll.u32 %s3150, 4
          %s3166 = int_to_ptr.vmem [resolvable:$true] %s3165
          %3171 = dma.vmem_to_hbm [thread:$0]  %s3166, 8192, %s3164, %s3147, 128, 128, 8
        $region32: #{tpu_custom_call.1} parent=27 // pred_fallthru
          _
      $region28: #{tpu_custom_call.1} parent=5 // pred_fallthru
        _
      %p3172 = scmp.le.s32.totalorder 2, %s11
      // Predicated region
      $region33: #{tpu_custom_call.1} parent=5 // pred_check
        %p3173 = pneg %p3172
      $region34: #{tpu_custom_call.1} parent=5 // pred_check_branch
        %3175 = sbr.rel (%p3173) target = $region36
      $region35: #{tpu_custom_call.1} parent=5 // pred_region
        %s3176 = ssub.s32 %s11, 2
        // Predicated region
        $region37: #{tpu_custom_call.1} parent=35 // pred_check
          %p3177 = pneg %p114
        $region38: #{tpu_custom_call.1} parent=35 // pred_check_branch
          %3179 = sbr.rel (%p3177) target = $region40
        $region39: #{tpu_custom_call.1} parent=35 // pred_region
          %s3180 = sand.u32 %s99, 1
          %s3181 = scalar_lea.sflag [#allocation3], %s3180
          %s3182 = sand.u32 %s99, 1
          %s3183 = smul.addr %s3182, 512
          %s3184 = scalar_lea.vmem [#allocation2], %s3183
          %3185 = dma.done %s3181, 8192
        $region40: #{tpu_custom_call.1} parent=35 // pred_fallthru
          _
      $region36: #{tpu_custom_call.1} parent=5 // pred_fallthru
        _
    $region6: #{tpu_custom_call.1} parent=1 // loop_footer
      %s15 = sadd.s32 1, %s11
    $region7: #{tpu_custom_call.1} parent=1 // loop_footer_branch
      %10 = sbr.rel target = $region3
    $region8: #{tpu_custom_call.1} parent=1 // loop_exit
      _
    %3186 = vsyncpa [#allocation3], 1
    %s3187 = scalar_lea.sflag [#allocation3], 1
    %3188 = vsyncpa %s3187, 1

</llo_original>
